<compile_context>
chip_gen: v5e
topology: v5e:2x2
jax: 0.10.0
libtpu: 0.0.40
codegen_flags: <defaults>
</compile_context>

<pallas_src>
import math
import functools

import jax
import jax.numpy as jnp
from jax.experimental import pallas as pl
from jax.experimental.pallas import tpu as pltpu

IN_SHAPE = (1, 28, 28)
IN_DIM = math.prod(IN_SHAPE)           # 784
IN_PAD = 896                           # 784 padded to 7*128 (lane-dense input)
LATENT_DIM = 32
HIDDEN_DIMS = [256, 256, 512, 32]
BN_EPS = 1e-5

HEAD_PAD = 128                         # [mu | logvar | z | zero-pad] lane width
OUT_PAD = 896                          # 784 padded to a multiple of 128


def _round_up(x, m):
    return ((x + m - 1) // m) * m


# ------------------------------ fused kernel ------------------------------- #

def _mlp_vae_kernel(*refs, n_enc, n_dec, latent):
    """Full fused forward.
    refs = x, (W,b)*n_enc, W_head, b_head, (W,b)*n_dec, recon_ref, head_ref
    Weights have eval-mode BatchNorm folded in; W_head = [W_mu | W_logvar | 0].
    head_ref layout (lane-dense 128 wide): [mu(32) | logvar(32) | z(32) | 0(32)].
    """
    n_param = 2 * (n_enc + 1 + n_dec)
    x_ref = refs[0]
    p = refs[1:1 + n_param]
    recon_ref, head_ref = refs[1 + n_param:]

    def linear(h_bf16, w_ref, b_ref):
        # bf16 MXU matmul with f32 accumulation; bias add stays in f32.
        return jnp.dot(h_bf16, w_ref[...],
                       preferred_element_type=jnp.float32) + b_ref[...]

    # ---- encoder: Tanh(BN(Linear(.))) x n_enc  (BN folded into W, b) ----
    h = x_ref[...]                                    # (TB, 896) bf16
    k = 0
    for _ in range(n_enc):
        # bf16 tanh (EUP bf16 path on v6e/v7x); activation stays bf16 between layers.
        h = jnp.tanh(linear(h, p[k], p[k + 1]).astype(jnp.bfloat16))
        k += 2

    # ---- mu / logvar head (single padded matmul) + reparameterize ----
    head = linear(h, p[k], p[k + 1])                  # (TB, 128) f32 = [mu|logvar|0|0]
    k += 2
    mu = head[:, :latent]
    logvar = head[:, latent:2 * latent]
    # eval-mode reparameterize: z = mu + exp(0.5 * logvar)
    # TODO(synk): training mode multiplies std by randn_like noise; omitted (eval path).
    z = mu + jnp.exp(0.5 * logvar)
    # Pack z into the head's pad lanes -> one lane-dense (TB, 128) store, no
    # separate lane-sparse output stream.
    head_ref[...] = jnp.concatenate(
        [head[:, :2 * latent], z, head[:, 3 * latent:]], axis=-1)

    # ---- decoder: Tanh(BN(Linear(.))) x n_dec, then sigmoid ----
    d = z.astype(jnp.bfloat16)
    for _ in range(n_dec):
        d = jnp.tanh(linear(d, p[k], p[k + 1]).astype(jnp.bfloat16))
        k += 2
    recon_ref[...] = jax.nn.sigmoid(d)                # (TB, 896) bf16 lane-dense store


# ----------------------------- parameter glue ------------------------------ #

def init_raw_params(key):
    """torch-default init: Linear W,b ~ U(-1/sqrt(fan_in), ...); BatchNorm1d
    gamma=1, beta=0, running_mean=0, running_var=1."""
    enc_dims = [IN_DIM] + HIDDEN_DIMS              # [784, 256, 256, 512, 32]
    dec_dims = list(reversed(enc_dims))            # [32, 512, 256, 256, 784]

    def linear(k, fi, fo):
        kw, kb = jax.random.split(k)
        bound = 1.0 / math.sqrt(fi)
        w = jax.random.uniform(kw, (fi, fo), jnp.float32, -bound, bound)
        b = jax.random.uniform(kb, (fo,), jnp.float32, -bound, bound)
        return w, b

    def bn(d):
        return dict(gamma=jnp.ones((d,), jnp.float32),
                    beta=jnp.zeros((d,), jnp.float32),
                    mean=jnp.zeros((d,), jnp.float32),
                    var=jnp.ones((d,), jnp.float32))

    nk = (len(enc_dims) - 1) + 2 + (len(dec_dims) - 1)
    keys = list(jax.random.split(key, nk))
    raw = {"enc": [], "dec": []}
    for i in range(len(enc_dims) - 1):
        w, b = linear(keys.pop(0), enc_dims[i], enc_dims[i + 1])
        raw["enc"].append((w, b, bn(enc_dims[i + 1])))
    raw["fc_mu"] = linear(keys.pop(0), enc_dims[-1], LATENT_DIM)
    raw["fc_logvar"] = linear(keys.pop(0), enc_dims[-1], LATENT_DIM)
    for i in range(len(dec_dims) - 1):
        w, b = linear(keys.pop(0), dec_dims[i], dec_dims[i + 1])
        raw["dec"].append((w, b, bn(dec_dims[i + 1])))
    return raw


def pack_params(raw, param_dtype=jnp.bfloat16):
    """Fold eval-mode BN into the Linear weights, pad lane/K dims, cast weights
    to bf16 (biases stay f32, pre-shaped (1, N)).  Returns the flat kernel arg
    list."""

    def fold(w, b, bn_p):
        scale = bn_p["gamma"] / jnp.sqrt(bn_p["var"] + BN_EPS)
        shift = bn_p["beta"] - bn_p["mean"] * scale
        return w * scale[None, :], b * scale + shift

    flat = []

    def emit(w, b, pad_out=None, pad_in=None):
        if pad_in is not None and pad_in > w.shape[0]:
            w = jnp.pad(w, ((0, pad_in - w.shape[0]), (0, 0)))
        if pad_out is not None and pad_out > w.shape[1]:
            extra = pad_out - w.shape[1]
            w = jnp.pad(w, ((0, 0), (0, extra)))
            b = jnp.pad(b, ((0, extra),))
        flat.append(w.astype(param_dtype))
        flat.append(b.reshape(1, -1).astype(jnp.float32))

    for i, (w, b, bn_p) in enumerate(raw["enc"]):
        # First layer's K dim zero-padded to 896 to match the lane-padded input.
        emit(*fold(w, b, bn_p), pad_in=IN_PAD if i == 0 else None)

    # fc_mu ++ fc_logvar -> single (32, 128) zero-padded head weight.
    wmu, bmu = raw["fc_mu"]
    wlv, blv = raw["fc_logvar"]
    emit(jnp.concatenate([wmu, wlv], axis=1),
         jnp.concatenate([bmu, blv], axis=0), pad_out=HEAD_PAD)

    for i, (w, b, bn_p) in enumerate(raw["dec"]):
        last = i == len(raw["dec"]) - 1
        emit(*fold(w, b, bn_p), pad_out=OUT_PAD if last else None)

    return flat


# ------------------------------- forward pass ------------------------------ #

def mlp_vae_forward(params, x, *, batch_tile=256):
    n_enc = len(HIDDEN_DIMS)
    n_dec = len(HIDDEN_DIMS)
    B = x.shape[0]

    # x.flatten(start_dim=1); cast to bf16 (first matmul is bf16 anyway) and
    # lane-pad 784 -> 896 so the input block and first matmul K are unmasked.
    xf = x.reshape(B, -1).astype(jnp.bfloat16)
    xf = jnp.pad(xf, ((0, 0), (0, IN_PAD - IN_DIM)))

    tb = min(batch_tile, _round_up(B, 8))               # sublane-aligned batch tile
    if B > 8:
        # Guarantee >= 2 grid steps so both v7x TensorCores get work on the
        # "parallel" axis (no-op for very small B).
        tb = min(tb, _round_up(-(-B // 2), 8))
    bp = _round_up(B, tb)
    if bp != B:
        xf = jnp.pad(xf, ((0, bp - B), (0, 0)))
    grid = (bp // tb,)

    def batch_spec(cols):
        return pl.BlockSpec((tb, cols), lambda i: (i, 0))

    def resident_spec(shape):
        # Same block for every grid step -> DMA'd once, stays VMEM-resident.
        # (If the MLIR shows these double-buffered, pipeline_mode=pl.Buffered(1)
        # would reclaim ~1.7 MB; footprint is small enough that we leave the
        # default to avoid changing compile behavior.)
        return pl.BlockSpec(shape, lambda i: (0,) * len(shape))

    in_specs = [batch_spec(IN_PAD)] + [resident_spec(p.shape) for p in params]
    out_specs = (batch_spec(OUT_PAD), batch_spec(HEAD_PAD))
    out_shape = (jax.ShapeDtypeStruct((bp, OUT_PAD), jnp.bfloat16),   # recon (pad)
                 jax.ShapeDtypeStruct((bp, HEAD_PAD), jnp.float32))   # [mu|logvar|z|0]

    # Advisory cost estimate so XLA schedules the surrounding pad/slice/reshape.
    enc_dims = [IN_PAD] + HIDDEN_DIMS
    dec_dims = list(reversed([IN_DIM] + HIDDEN_DIMS))
    dec_dims[-1] = OUT_PAD
    per_row_flops = 2 * sum(a * b for a, b in zip(enc_dims[:-1], enc_dims[1:]))
    per_row_flops += 2 * HIDDEN_DIMS[-1] * HEAD_PAD
    per_row_flops += 2 * sum(a * b for a, b in zip(dec_dims[:-1], dec_dims[1:]))
    per_row_trans = sum(HIDDEN_DIMS) + LATENT_DIM + sum(dec_dims[1:]) + OUT_PAD
    bytes_accessed = (int(xf.size) * 2 + bp * OUT_PAD * 2 + bp * HEAD_PAD * 4 +
                      sum(int(p.size) * p.dtype.itemsize for p in params))
    cost = pl.CostEstimate(flops=int(bp * per_row_flops),
                           transcendentals=int(bp * per_row_trans),
                           bytes_accessed=int(bytes_accessed))

    kernel = functools.partial(_mlp_vae_kernel, n_enc=n_enc, n_dec=n_dec,
                               latent=LATENT_DIM)
    recon_pad, head = pl.pallas_call(
        kernel,
        grid=grid,
        in_specs=in_specs,
        out_specs=out_specs,
        out_shape=out_shape,
        compiler_params=pltpu.CompilerParams(
            dimension_semantics=("parallel",)),   # v7x: both TCs split batch tiles
        cost_estimate=cost,
    )(xf, *params)

    recon = recon_pad[:B, :IN_DIM].astype(jnp.float32).reshape((B,) + IN_SHAPE)
    mu = head[:B, :LATENT_DIM]
    logvar = head[:B, LATENT_DIM:2 * LATENT_DIM]
    z = head[:B, 2 * LATENT_DIM:3 * LATENT_DIM]
    return recon, mu, logvar, z


if __name__ == "__main__":
    key = jax.random.PRNGKey(0)
    pkey, xkey = jax.random.split(key)
    params = pack_params(init_raw_params(pkey))

    B = 4
    x = jax.random.uniform(xkey, (B,) + IN_SHAPE, jnp.float32)

    fwd = jax.jit(mlp_vae_forward)
    recon, mu, logvar, z = fwd(params, x)
    jax.block_until_ready((recon, mu, logvar, z))

    assert recon.shape == (B,) + IN_SHAPE
    assert mu.shape == (B, LATENT_DIM)
    assert logvar.shape == (B, LATENT_DIM)
    assert z.shape == (B, LATENT_DIM)
    for t in (recon, mu, logvar, z):
        assert bool(jnp.all(jnp.isfinite(t)))
    assert bool(jnp.all((recon >= 0.0) & (recon <= 1.0)))
    print("KERNEL_OK")
</pallas_src>

<mosaic_0001>
module attributes {stable_mosaic.version = 11 : i64} {
  func.func @_mlp_vae_kernel(%arg0: i32, %arg1: memref<8x896xbf16, #tpu.memory_space<vmem>>, %arg2: memref<896x256xbf16, #tpu.memory_space<vmem>>, %arg3: memref<1x256xf32, #tpu.memory_space<vmem>>, %arg4: memref<256x256xbf16, #tpu.memory_space<vmem>>, %arg5: memref<1x256xf32, #tpu.memory_space<vmem>>, %arg6: memref<256x512xbf16, #tpu.memory_space<vmem>>, %arg7: memref<1x512xf32, #tpu.memory_space<vmem>>, %arg8: memref<512x32xbf16, #tpu.memory_space<vmem>>, %arg9: memref<1x32xf32, #tpu.memory_space<vmem>>, %arg10: memref<32x128xbf16, #tpu.memory_space<vmem>>, %arg11: memref<1x128xf32, #tpu.memory_space<vmem>>, %arg12: memref<32x512xbf16, #tpu.memory_space<vmem>>, %arg13: memref<1x512xf32, #tpu.memory_space<vmem>>, %arg14: memref<512x256xbf16, #tpu.memory_space<vmem>>, %arg15: memref<1x256xf32, #tpu.memory_space<vmem>>, %arg16: memref<256x256xbf16, #tpu.memory_space<vmem>>, %arg17: memref<1x256xf32, #tpu.memory_space<vmem>>, %arg18: memref<256x896xbf16, #tpu.memory_space<vmem>>, %arg19: memref<1x896xf32, #tpu.memory_space<vmem>>, %arg20: memref<8x896xbf16, #tpu.memory_space<vmem>>, %arg21: memref<8x128xf32, #tpu.memory_space<vmem>>) attributes {dimension_semantics = [#tpu.dimension_semantics<parallel>], iteration_bounds = array<i64: 1>, scalar_prefetch = 0 : i64, scratch_operands = 0 : i64, tpu.core_type = #tpu.core_type<tc>, window_params = [{transform_indices = @transform_0, window_bounds = array<i64: 8, 896>}, {pipeline_mode = #tpu.pipeline_mode<synchronous>, transform_indices = @transform_1, window_bounds = array<i64: 896, 256>}, {pipeline_mode = #tpu.pipeline_mode<synchronous>, transform_indices = @transform_2, window_bounds = array<i64: 1, 256>}, {pipeline_mode = #tpu.pipeline_mode<synchronous>, transform_indices = @transform_3, window_bounds = array<i64: 256, 256>}, {pipeline_mode = #tpu.pipeline_mode<synchronous>, transform_indices = @transform_4, window_bounds = array<i64: 1, 256>}, {pipeline_mode = #tpu.pipeline_mode<synchronous>, transform_indices = @transform_5, window_bounds = array<i64: 256, 512>}, {pipeline_mode = #tpu.pipeline_mode<synchronous>, transform_indices = @transform_6, window_bounds = array<i64: 1, 512>}, {pipeline_mode = #tpu.pipeline_mode<synchronous>, transform_indices = @transform_7, window_bounds = array<i64: 512, 32>}, {pipeline_mode = #tpu.pipeline_mode<synchronous>, transform_indices = @transform_8, window_bounds = array<i64: 1, 32>}, {pipeline_mode = #tpu.pipeline_mode<synchronous>, transform_indices = @transform_9, window_bounds = array<i64: 32, 128>}, {pipeline_mode = #tpu.pipeline_mode<synchronous>, transform_indices = @transform_10, window_bounds = array<i64: 1, 128>}, {pipeline_mode = #tpu.pipeline_mode<synchronous>, transform_indices = @transform_11, window_bounds = array<i64: 32, 512>}, {pipeline_mode = #tpu.pipeline_mode<synchronous>, transform_indices = @transform_12, window_bounds = array<i64: 1, 512>}, {pipeline_mode = #tpu.pipeline_mode<synchronous>, transform_indices = @transform_13, window_bounds = array<i64: 512, 256>}, {pipeline_mode = #tpu.pipeline_mode<synchronous>, transform_indices = @transform_14, window_bounds = array<i64: 1, 256>}, {pipeline_mode = #tpu.pipeline_mode<synchronous>, transform_indices = @transform_15, window_bounds = array<i64: 256, 256>}, {pipeline_mode = #tpu.pipeline_mode<synchronous>, transform_indices = @transform_16, window_bounds = array<i64: 1, 256>}, {pipeline_mode = #tpu.pipeline_mode<synchronous>, transform_indices = @transform_17, window_bounds = array<i64: 256, 896>}, {pipeline_mode = #tpu.pipeline_mode<synchronous>, transform_indices = @transform_18, window_bounds = array<i64: 1, 896>}, {transform_indices = @transform_19, window_bounds = array<i64: 8, 896>}, {transform_indices = @transform_20, window_bounds = array<i64: 8, 128>}]} {
    %c0 = arith.constant 0 : index
    %c0_0 = arith.constant 0 : index
    %0 = vector.load %arg1[%c0, %c0_0] : memref<8x896xbf16, #tpu.memory_space<vmem>>, vector<8x896xbf16>
    %c0_1 = arith.constant 0 : index
    %c0_2 = arith.constant 0 : index
    %1 = vector.load %arg2[%c0_1, %c0_2] : memref<896x256xbf16, #tpu.memory_space<vmem>>, vector<896x256xbf16>
    %cst = arith.constant dense<0.000000e+00> : vector<8x256xf32>
    %2 = tpu.matmul %0, %1, %cst {dimension_numbers = #tpu.dot_dimension_numbers<[1], [0], [0], [1], [0, 0, 1, 1], [], []>} : vector<8x896xbf16>, vector<896x256xbf16>, vector<8x256xf32> -> vector<8x256xf32>
    %c0_3 = arith.constant 0 : index
    %c0_4 = arith.constant 0 : index
    %3 = vector.load %arg3[%c0_3, %c0_4] : memref<1x256xf32, #tpu.memory_space<vmem>>, vector<1x256xf32>
    %4 = vector.broadcast %3 : vector<1x256xf32> to vector<8x256xf32>
    %5 = arith.addf %2, %4 : vector<8x256xf32>
    %6 = arith.truncf %5 : vector<8x256xf32> to vector<8x256xbf16>
    %7 = math.tanh %6 : vector<8x256xbf16>
    %c0_5 = arith.constant 0 : index
    %c0_6 = arith.constant 0 : index
    %8 = vector.load %arg4[%c0_5, %c0_6] : memref<256x256xbf16, #tpu.memory_space<vmem>>, vector<256x256xbf16>
    %cst_7 = arith.constant dense<0.000000e+00> : vector<8x256xf32>
    %9 = tpu.matmul %7, %8, %cst_7 {dimension_numbers = #tpu.dot_dimension_numbers<[1], [0], [0], [1], [0, 0, 1, 1], [], []>} : vector<8x256xbf16>, vector<256x256xbf16>, vector<8x256xf32> -> vector<8x256xf32>
    %c0_8 = arith.constant 0 : index
    %c0_9 = arith.constant 0 : index
    %10 = vector.load %arg5[%c0_8, %c0_9] : memref<1x256xf32, #tpu.memory_space<vmem>>, vector<1x256xf32>
    %11 = vector.broadcast %10 : vector<1x256xf32> to vector<8x256xf32>
    %12 = arith.addf %9, %11 : vector<8x256xf32>
    %13 = arith.truncf %12 : vector<8x256xf32> to vector<8x256xbf16>
    %14 = math.tanh %13 : vector<8x256xbf16>
    %c0_10 = arith.constant 0 : index
    %c0_11 = arith.constant 0 : index
    %15 = vector.load %arg6[%c0_10, %c0_11] : memref<256x512xbf16, #tpu.memory_space<vmem>>, vector<256x512xbf16>
    %cst_12 = arith.constant dense<0.000000e+00> : vector<8x512xf32>
    %16 = tpu.matmul %14, %15, %cst_12 {dimension_numbers = #tpu.dot_dimension_numbers<[1], [0], [0], [1], [0, 0, 1, 1], [], []>} : vector<8x256xbf16>, vector<256x512xbf16>, vector<8x512xf32> -> vector<8x512xf32>
    %c0_13 = arith.constant 0 : index
    %c0_14 = arith.constant 0 : index
    %17 = vector.load %arg7[%c0_13, %c0_14] : memref<1x512xf32, #tpu.memory_space<vmem>>, vector<1x512xf32>
    %18 = vector.broadcast %17 : vector<1x512xf32> to vector<8x512xf32>
    %19 = arith.addf %16, %18 : vector<8x512xf32>
    %20 = arith.truncf %19 : vector<8x512xf32> to vector<8x512xbf16>
    %21 = math.tanh %20 : vector<8x512xbf16>
    %c0_15 = arith.constant 0 : index
    %c0_16 = arith.constant 0 : index
    %22 = vector.load %arg8[%c0_15, %c0_16] : memref<512x32xbf16, #tpu.memory_space<vmem>>, vector<512x32xbf16>
    %cst_17 = arith.constant dense<0.000000e+00> : vector<8x32xf32>
    %23 = tpu.matmul %21, %22, %cst_17 {dimension_numbers = #tpu.dot_dimension_numbers<[1], [0], [0], [1], [0, 0, 1, 1], [], []>} : vector<8x512xbf16>, vector<512x32xbf16>, vector<8x32xf32> -> vector<8x32xf32>
    %c0_18 = arith.constant 0 : index
    %c0_19 = arith.constant 0 : index
    %24 = vector.load %arg9[%c0_18, %c0_19] : memref<1x32xf32, #tpu.memory_space<vmem>>, vector<1x32xf32>
    %25 = vector.broadcast %24 : vector<1x32xf32> to vector<8x32xf32>
    %26 = arith.addf %23, %25 : vector<8x32xf32>
    %27 = arith.truncf %26 : vector<8x32xf32> to vector<8x32xbf16>
    %28 = math.tanh %27 : vector<8x32xbf16>
    %c0_20 = arith.constant 0 : index
    %c0_21 = arith.constant 0 : index
    %29 = vector.load %arg10[%c0_20, %c0_21] : memref<32x128xbf16, #tpu.memory_space<vmem>>, vector<32x128xbf16>
    %cst_22 = arith.constant dense<0.000000e+00> : vector<8x128xf32>
    %30 = tpu.matmul %28, %29, %cst_22 {dimension_numbers = #tpu.dot_dimension_numbers<[1], [0], [0], [1], [0, 0, 1, 1], [], []>} : vector<8x32xbf16>, vector<32x128xbf16>, vector<8x128xf32> -> vector<8x128xf32>
    %c0_23 = arith.constant 0 : index
    %c0_24 = arith.constant 0 : index
    %31 = vector.load %arg11[%c0_23, %c0_24] : memref<1x128xf32, #tpu.memory_space<vmem>>, vector<1x128xf32>
    %32 = vector.broadcast %31 : vector<1x128xf32> to vector<8x128xf32>
    %33 = arith.addf %30, %32 : vector<8x128xf32>
    %34 = vector.extract_strided_slice %33 {offsets = [0, 0], sizes = [8, 32], strides = [1, 1]} : vector<8x128xf32> to vector<8x32xf32>
    %35 = vector.extract_strided_slice %33 {offsets = [0, 32], sizes = [8, 32], strides = [1, 1]} : vector<8x128xf32> to vector<8x32xf32>
    %cst_25 = arith.constant 5.000000e-01 : f32
    %36 = vector.broadcast %cst_25 : f32 to vector<8x32xf32>
    %37 = arith.mulf %36, %35 : vector<8x32xf32>
    %38 = math.exp %37 : vector<8x32xf32>
    %39 = arith.addf %34, %38 : vector<8x32xf32>
    %40 = vector.extract_strided_slice %33 {offsets = [0, 0], sizes = [8, 64], strides = [1, 1]} : vector<8x128xf32> to vector<8x64xf32>
    %41 = vector.extract_strided_slice %33 {offsets = [0, 96], sizes = [8, 32], strides = [1, 1]} : vector<8x128xf32> to vector<8x32xf32>
    %42 = tpu.concatenate %40, %39, %41 in 1 : vector<8x64xf32>, vector<8x32xf32>, vector<8x32xf32> -> vector<8x128xf32>
    %c0_26 = arith.constant 0 : index
    %c0_27 = arith.constant 0 : index
    %43 = vector.load %arg21[%c0_26, %c0_27] : memref<8x128xf32, #tpu.memory_space<vmem>>, vector<8x128xf32>
    tpu.vector_store %arg21[%c0_26, %c0_27], %42 {strides = array<i32>} : memref<8x128xf32, #tpu.memory_space<vmem>>, vector<8x128xf32>,
    %44 = arith.truncf %39 : vector<8x32xf32> to vector<8x32xbf16>
    %c0_28 = arith.constant 0 : index
    %c0_29 = arith.constant 0 : index
    %45 = vector.load %arg12[%c0_28, %c0_29] : memref<32x512xbf16, #tpu.memory_space<vmem>>, vector<32x512xbf16>
    %cst_30 = arith.constant dense<0.000000e+00> : vector<8x512xf32>
    %46 = tpu.matmul %44, %45, %cst_30 {dimension_numbers = #tpu.dot_dimension_numbers<[1], [0], [0], [1], [0, 0, 1, 1], [], []>} : vector<8x32xbf16>, vector<32x512xbf16>, vector<8x512xf32> -> vector<8x512xf32>
    %c0_31 = arith.constant 0 : index
    %c0_32 = arith.constant 0 : index
    %47 = vector.load %arg13[%c0_31, %c0_32] : memref<1x512xf32, #tpu.memory_space<vmem>>, vector<1x512xf32>
    %48 = vector.broadcast %47 : vector<1x512xf32> to vector<8x512xf32>
    %49 = arith.addf %46, %48 : vector<8x512xf32>
    %50 = arith.truncf %49 : vector<8x512xf32> to vector<8x512xbf16>
    %51 = math.tanh %50 : vector<8x512xbf16>
    %c0_33 = arith.constant 0 : index
    %c0_34 = arith.constant 0 : index
    %52 = vector.load %arg14[%c0_33, %c0_34] : memref<512x256xbf16, #tpu.memory_space<vmem>>, vector<512x256xbf16>
    %cst_35 = arith.constant dense<0.000000e+00> : vector<8x256xf32>
    %53 = tpu.matmul %51, %52, %cst_35 {dimension_numbers = #tpu.dot_dimension_numbers<[1], [0], [0], [1], [0, 0, 1, 1], [], []>} : vector<8x512xbf16>, vector<512x256xbf16>, vector<8x256xf32> -> vector<8x256xf32>
    %c0_36 = arith.constant 0 : index
    %c0_37 = arith.constant 0 : index
    %54 = vector.load %arg15[%c0_36, %c0_37] : memref<1x256xf32, #tpu.memory_space<vmem>>, vector<1x256xf32>
    %55 = vector.broadcast %54 : vector<1x256xf32> to vector<8x256xf32>
    %56 = arith.addf %53, %55 : vector<8x256xf32>
    %57 = arith.truncf %56 : vector<8x256xf32> to vector<8x256xbf16>
    %58 = math.tanh %57 : vector<8x256xbf16>
    %c0_38 = arith.constant 0 : index
    %c0_39 = arith.constant 0 : index
    %59 = vector.load %arg16[%c0_38, %c0_39] : memref<256x256xbf16, #tpu.memory_space<vmem>>, vector<256x256xbf16>
    %cst_40 = arith.constant dense<0.000000e+00> : vector<8x256xf32>
    %60 = tpu.matmul %58, %59, %cst_40 {dimension_numbers = #tpu.dot_dimension_numbers<[1], [0], [0], [1], [0, 0, 1, 1], [], []>} : vector<8x256xbf16>, vector<256x256xbf16>, vector<8x256xf32> -> vector<8x256xf32>
    %c0_41 = arith.constant 0 : index
    %c0_42 = arith.constant 0 : index
    %61 = vector.load %arg17[%c0_41, %c0_42] : memref<1x256xf32, #tpu.memory_space<vmem>>, vector<1x256xf32>
    %62 = vector.broadcast %61 : vector<1x256xf32> to vector<8x256xf32>
    %63 = arith.addf %60, %62 : vector<8x256xf32>
    %64 = arith.truncf %63 : vector<8x256xf32> to vector<8x256xbf16>
    %65 = math.tanh %64 : vector<8x256xbf16>
    %c0_43 = arith.constant 0 : index
    %c0_44 = arith.constant 0 : index
    %66 = vector.load %arg18[%c0_43, %c0_44] : memref<256x896xbf16, #tpu.memory_space<vmem>>, vector<256x896xbf16>
    %cst_45 = arith.constant dense<0.000000e+00> : vector<8x896xf32>
    %67 = tpu.matmul %65, %66, %cst_45 {dimension_numbers = #tpu.dot_dimension_numbers<[1], [0], [0], [1], [0, 0, 1, 1], [], []>} : vector<8x256xbf16>, vector<256x896xbf16>, vector<8x896xf32> -> vector<8x896xf32>
    %c0_46 = arith.constant 0 : index
    %c0_47 = arith.constant 0 : index
    %68 = vector.load %arg19[%c0_46, %c0_47] : memref<1x896xf32, #tpu.memory_space<vmem>>, vector<1x896xf32>
    %69 = vector.broadcast %68 : vector<1x896xf32> to vector<8x896xf32>
    %70 = arith.addf %67, %69 : vector<8x896xf32>
    %71 = arith.truncf %70 : vector<8x896xf32> to vector<8x896xbf16>
    %72 = math.tanh %71 : vector<8x896xbf16>
    %73 = arith.negf %72 : vector<8x896xbf16>
    %74 = math.exp %73 : vector<8x896xbf16>
    %cst_48 = arith.constant 1.000000e+00 : bf16
    %75 = vector.broadcast %cst_48 : bf16 to vector<8x896xbf16>
    %76 = arith.addf %75, %74 : vector<8x896xbf16>
    %77 = arith.divf %75, %76 : vector<8x896xbf16>
    %c0_49 = arith.constant 0 : index
    %c0_50 = arith.constant 0 : index
    %78 = vector.load %arg20[%c0_49, %c0_50] : memref<8x896xbf16, #tpu.memory_space<vmem>>, vector<8x896xbf16>
    tpu.vector_store %arg20[%c0_49, %c0_50], %77 {strides = array<i32>} : memref<8x896xbf16, #tpu.memory_space<vmem>>, vector<8x896xbf16>,
    return
  }
  func.func @transform_0(%arg0: i32) -> (i32, i32) {
    %c0_i32 = arith.constant 0 : i32
    %c0_i32_0 = arith.constant 0 : i32
    return %arg0, %c0_i32 : i32, i32
  }
  func.func @transform_1(%arg0: i32) -> (i32, i32) {
    %c0_i32 = arith.constant 0 : i32
    %c0_i32_0 = arith.constant 0 : i32
    %c0_i32_1 = arith.constant 0 : i32
    return %c0_i32, %c0_i32_0 : i32, i32
  }
  func.func @transform_2(%arg0: i32) -> (i32, i32) {
    %c0_i32 = arith.constant 0 : i32
    %c0_i32_0 = arith.constant 0 : i32
    %c0_i32_1 = arith.constant 0 : i32
    return %c0_i32, %c0_i32_0 : i32, i32
  }
  func.func @transform_3(%arg0: i32) -> (i32, i32) {
    %c0_i32 = arith.constant 0 : i32
    %c0_i32_0 = arith.constant 0 : i32
    %c0_i32_1 = arith.constant 0 : i32
    return %c0_i32, %c0_i32_0 : i32, i32
  }
  func.func @transform_4(%arg0: i32) -> (i32, i32) {
    %c0_i32 = arith.constant 0 : i32
    %c0_i32_0 = arith.constant 0 : i32
    %c0_i32_1 = arith.constant 0 : i32
    return %c0_i32, %c0_i32_0 : i32, i32
  }
  func.func @transform_5(%arg0: i32) -> (i32, i32) {
    %c0_i32 = arith.constant 0 : i32
    %c0_i32_0 = arith.constant 0 : i32
    %c0_i32_1 = arith.constant 0 : i32
    return %c0_i32, %c0_i32_0 : i32, i32
  }
  func.func @transform_6(%arg0: i32) -> (i32, i32) {
    %c0_i32 = arith.constant 0 : i32
    %c0_i32_0 = arith.constant 0 : i32
    %c0_i32_1 = arith.constant 0 : i32
    return %c0_i32, %c0_i32_0 : i32, i32
  }
  func.func @transform_7(%arg0: i32) -> (i32, i32) {
    %c0_i32 = arith.constant 0 : i32
    %c0_i32_0 = arith.constant 0 : i32
    %c0_i32_1 = arith.constant 0 : i32
    return %c0_i32, %c0_i32_0 : i32, i32
  }
  func.func @transform_8(%arg0: i32) -> (i32, i32) {
    %c0_i32 = arith.constant 0 : i32
    %c0_i32_0 = arith.constant 0 : i32
    %c0_i32_1 = arith.constant 0 : i32
    return %c0_i32, %c0_i32_0 : i32, i32
  }
  func.func @transform_9(%arg0: i32) -> (i32, i32) {
    %c0_i32 = arith.constant 0 : i32
    %c0_i32_0 = arith.constant 0 : i32
    %c0_i32_1 = arith.constant 0 : i32
    return %c0_i32, %c0_i32_0 : i32, i32
  }
  func.func @transform_10(%arg0: i32) -> (i32, i32) {
    %c0_i32 = arith.constant 0 : i32
    %c0_i32_0 = arith.constant 0 : i32
    %c0_i32_1 = arith.constant 0 : i32
    return %c0_i32, %c0_i32_0 : i32, i32
  }
  func.func @transform_11(%arg0: i32) -> (i32, i32) {
    %c0_i32 = arith.constant 0 : i32
    %c0_i32_0 = arith.constant 0 : i32
    %c0_i32_1 = arith.constant 0 : i32
    return %c0_i32, %c0_i32_0 : i32, i32
  }
  func.func @transform_12(%arg0: i32) -> (i32, i32) {
    %c0_i32 = arith.constant 0 : i32
    %c0_i32_0 = arith.constant 0 : i32
    %c0_i32_1 = arith.constant 0 : i32
    return %c0_i32, %c0_i32_0 : i32, i32
  }
  func.func @transform_13(%arg0: i32) -> (i32, i32) {
    %c0_i32 = arith.constant 0 : i32
    %c0_i32_0 = arith.constant 0 : i32
    %c0_i32_1 = arith.constant 0 : i32
    return %c0_i32, %c0_i32_0 : i32, i32
  }
  func.func @transform_14(%arg0: i32) -> (i32, i32) {
    %c0_i32 = arith.constant 0 : i32
    %c0_i32_0 = arith.constant 0 : i32
    %c0_i32_1 = arith.constant 0 : i32
    return %c0_i32, %c0_i32_0 : i32, i32
  }
  func.func @transform_15(%arg0: i32) -> (i32, i32) {
    %c0_i32 = arith.constant 0 : i32
    %c0_i32_0 = arith.constant 0 : i32
    %c0_i32_1 = arith.constant 0 : i32
    return %c0_i32, %c0_i32_0 : i32, i32
  }
  func.func @transform_16(%arg0: i32) -> (i32, i32) {
    %c0_i32 = arith.constant 0 : i32
    %c0_i32_0 = arith.constant 0 : i32
    %c0_i32_1 = arith.constant 0 : i32
    return %c0_i32, %c0_i32_0 : i32, i32
  }
  func.func @transform_17(%arg0: i32) -> (i32, i32) {
    %c0_i32 = arith.constant 0 : i32
    %c0_i32_0 = arith.constant 0 : i32
    %c0_i32_1 = arith.constant 0 : i32
    return %c0_i32, %c0_i32_0 : i32, i32
  }
  func.func @transform_18(%arg0: i32) -> (i32, i32) {
    %c0_i32 = arith.constant 0 : i32
    %c0_i32_0 = arith.constant 0 : i32
    %c0_i32_1 = arith.constant 0 : i32
    return %c0_i32, %c0_i32_0 : i32, i32
  }
  func.func @transform_19(%arg0: i32) -> (i32, i32) {
    %c0_i32 = arith.constant 0 : i32
    %c0_i32_0 = arith.constant 0 : i32
    return %arg0, %c0_i32 : i32, i32
  }
  func.func @transform_20(%arg0: i32) -> (i32, i32) {
    %c0_i32 = arith.constant 0 : i32
    %c0_i32_0 = arith.constant 0 : i32
    return %arg0, %c0_i32 : i32, i32
  }
}

</mosaic_0001>

<llo_original>
// kernel: mlp_vae_forward.1
$region0: #{mlp_vae_forward.1}
  #allocation0 [shape = 'u32[]', space=smem, size = 0x4, offset = 0x4, fixed_abs, tag = 'smem constant byte address 0x4 - core index']
  #allocation1 [shape = 'u32[72,128]{1,0:T(1,128)}', space=vmem, size = 0x9000, scoped, tag = 'internal scratch']
  %s0 = inlined_call_operand.vmem [shape: bf16[8,896], index: 0, kind: input, shape index: {}]
  %s1 = inlined_call_operand.hbm [shape: bf16[896,256], index: 1, kind: input, shape index: {}]
  %s2 = inlined_call_operand.vmem [shape: f32[1,256], index: 2, kind: input, shape index: {}]
  %s3 = inlined_call_operand.hbm [shape: bf16[256,256], index: 3, kind: input, shape index: {}]
  %s4 = inlined_call_operand.vmem [shape: f32[1,256], index: 4, kind: input, shape index: {}]
  %s5 = inlined_call_operand.vmem [shape: bf16[256,512], index: 5, kind: input, shape index: {}]
  %s6 = inlined_call_operand.vmem [shape: f32[1,512], index: 6, kind: input, shape index: {}]
  %s7 = inlined_call_operand.vmem [shape: bf16[512,32], index: 7, kind: input, shape index: {}]
  %s8 = inlined_call_operand.vmem [shape: f32[1,32], index: 8, kind: input, shape index: {}]
  %s9 = inlined_call_operand.vmem [shape: bf16[32,128], index: 9, kind: input, shape index: {}]
  %s10 = inlined_call_operand.vmem [shape: f32[1,128], index: 10, kind: input, shape index: {}]
  %s11 = inlined_call_operand.vmem [shape: bf16[32,512], index: 11, kind: input, shape index: {}]
  %s12 = inlined_call_operand.vmem [shape: f32[1,512], index: 12, kind: input, shape index: {}]
  %s13 = inlined_call_operand.hbm [shape: bf16[512,256], index: 13, kind: input, shape index: {}]
  %s14 = inlined_call_operand.vmem [shape: f32[1,256], index: 14, kind: input, shape index: {}]
  %s15 = inlined_call_operand.hbm [shape: bf16[256,256], index: 15, kind: input, shape index: {}]
  %s16 = inlined_call_operand.vmem [shape: f32[1,256], index: 16, kind: input, shape index: {}]
  %s17 = inlined_call_operand.hbm [shape: bf16[256,896], index: 17, kind: input, shape index: {}]
  %s18 = inlined_call_operand.vmem [shape: f32[1,896], index: 18, kind: input, shape index: {}]
  %s19 = inlined_call_operand.vmem [shape: bf16[8,896], index: 19, kind: output, shape index: {0}]
  %s20 = inlined_call_operand.vmem [shape: f32[8,128], index: 20, kind: output, shape index: {1}]
  %21 = xla_tuple %s19, %s20
  %s22 = sld [smem:[#allocation0]]
  $region114: #{mlp_vae_forward.1} parent=0
    _
  %s24 = ssub.s32 1, %s22
  %s25 = scalar_select 0, %s24, %s22
  $region1: #{mlp_vae_forward.1} parent=0
    #allocation2 [shape = 'u8[458752]{0}', space=vmem, size = 0x70000, scoped, tag = 'input window, operand 1, single buffered']
    #allocation3 [shape = 's32[1]{0}', space=sflag, size = 0x4, scoped, tag = 'scoped memory for mlp_vae_forward.1']
    #allocation4 [shape = 'u8[131072]{0}', space=vmem, size = 0x20000, scoped, tag = 'input window, operand 3, single buffered']
    #allocation5 [shape = 's32[1]{0}', space=sflag, size = 0x4, scoped, tag = 'scoped memory for mlp_vae_forward.1']
    #allocation6 [shape = 'u8[262144]{0}', space=vmem, size = 0x40000, scoped, tag = 'input window, operand 13, single buffered']
    #allocation7 [shape = 'u8[131072]{0}', space=vmem, size = 0x20000, scoped, tag = 'input window, operand 15, single buffered']
    #allocation8 [shape = 's32[1]{0}', space=sflag, size = 0x4, scoped, tag = 'scoped memory for mlp_vae_forward.1']
    #allocation9 [shape = 'u8[458752]{0}', space=vmem, size = 0x70000, scoped, tag = 'input window, operand 17, single buffered']
    %26 = vsyncpa [#allocation3], 0
    %27 = vsyncpa [#allocation5], 0
    %28 = vsyncpa [#allocation8], 0
    // Predicated region
    $region2: #{mlp_vae_forward.1} parent=1 // pred_check
      _
    $region3: #{mlp_vae_forward.1} parent=1 // pred_check_branch
      %30 = sbr.rel (0) target = $region5
    $region4: #{mlp_vae_forward.1} parent=1 // pred_region
      _
    $region5: #{mlp_vae_forward.1} parent=1 // pred_fallthru
      _
    // Predicated region
    $region6: #{mlp_vae_forward.1} parent=1 // pred_check
      _
    $region7: #{mlp_vae_forward.1} parent=1 // pred_check_branch
      %32 = sbr.rel (0) target = $region9
    $region8: #{mlp_vae_forward.1} parent=1 // pred_region
      %34 = vsyncadd [#allocation3], 0
      %s35 = sshll.u32 %s1, 4
      %s36 = int_to_ptr.hbm [resolvable:$true] %s35
      %s37 = sshll.u32 [#allocation2], 4
      %s38 = int_to_ptr.vmem [resolvable:$true] %s37
      %43 = dma.hbm_to_vmem [thread:$0]  %s36, 14336, %s38, [#allocation3], 128, 128, 8
    $region9: #{mlp_vae_forward.1} parent=1 // pred_fallthru
      _
    // Predicated region
    $region10: #{mlp_vae_forward.1} parent=1 // pred_check
      _
    $region11: #{mlp_vae_forward.1} parent=1 // pred_check_branch
      %45 = sbr.rel (0) target = $region13
    $region12: #{mlp_vae_forward.1} parent=1 // pred_region
      _
    $region13: #{mlp_vae_forward.1} parent=1 // pred_fallthru
      _
    // Predicated region
    $region14: #{mlp_vae_forward.1} parent=1 // pred_check
      _
    $region15: #{mlp_vae_forward.1} parent=1 // pred_check_branch
      %47 = sbr.rel (0) target = $region17
    $region16: #{mlp_vae_forward.1} parent=1 // pred_region
      %49 = vsyncadd [#allocation5], 0
      %s50 = sshll.u32 %s3, 4
      %s51 = int_to_ptr.hbm [resolvable:$true] %s50
      %s52 = sshll.u32 [#allocation4], 4
      %s53 = int_to_ptr.vmem [resolvable:$true] %s52
      %58 = dma.hbm_to_vmem [thread:$0]  %s51, 4096, %s53, [#allocation5], 128, 128, 8
    $region17: #{mlp_vae_forward.1} parent=1 // pred_fallthru
      _
    // Predicated region
    $region18: #{mlp_vae_forward.1} parent=1 // pred_check
      _
    $region19: #{mlp_vae_forward.1} parent=1 // pred_check_branch
      %60 = sbr.rel (0) target = $region21
    $region20: #{mlp_vae_forward.1} parent=1 // pred_region
      _
    $region21: #{mlp_vae_forward.1} parent=1 // pred_fallthru
      _
    // Predicated region
    $region22: #{mlp_vae_forward.1} parent=1 // pred_check
      _
    $region23: #{mlp_vae_forward.1} parent=1 // pred_check_branch
      %62 = sbr.rel (0) target = $region25
    $region24: #{mlp_vae_forward.1} parent=1 // pred_region
      _
    $region25: #{mlp_vae_forward.1} parent=1 // pred_fallthru
      _
    // Predicated region
    $region26: #{mlp_vae_forward.1} parent=1 // pred_check
      _
    $region27: #{mlp_vae_forward.1} parent=1 // pred_check_branch
      %64 = sbr.rel (0) target = $region29
    $region28: #{mlp_vae_forward.1} parent=1 // pred_region
      _
    $region29: #{mlp_vae_forward.1} parent=1 // pred_fallthru
      _
    // Predicated region
    $region30: #{mlp_vae_forward.1} parent=1 // pred_check
      _
    $region31: #{mlp_vae_forward.1} parent=1 // pred_check_branch
      %66 = sbr.rel (0) target = $region33
    $region32: #{mlp_vae_forward.1} parent=1 // pred_region
      _
    $region33: #{mlp_vae_forward.1} parent=1 // pred_fallthru
      _
    // Predicated region
    $region34: #{mlp_vae_forward.1} parent=1 // pred_check
      _
    $region35: #{mlp_vae_forward.1} parent=1 // pred_check_branch
      %68 = sbr.rel (0) target = $region37
    $region36: #{mlp_vae_forward.1} parent=1 // pred_region
      _
    $region37: #{mlp_vae_forward.1} parent=1 // pred_fallthru
      _
    // Predicated region
    $region38: #{mlp_vae_forward.1} parent=1 // pred_check
      _
    $region39: #{mlp_vae_forward.1} parent=1 // pred_check_branch
      %70 = sbr.rel (0) target = $region41
    $region40: #{mlp_vae_forward.1} parent=1 // pred_region
      _
    $region41: #{mlp_vae_forward.1} parent=1 // pred_fallthru
      _
    // Predicated region
    $region42: #{mlp_vae_forward.1} parent=1 // pred_check
      _
    $region43: #{mlp_vae_forward.1} parent=1 // pred_check_branch
      %72 = sbr.rel (0) target = $region45
    $region44: #{mlp_vae_forward.1} parent=1 // pred_region
      _
    $region45: #{mlp_vae_forward.1} parent=1 // pred_fallthru
      _
    // Predicated region
    $region46: #{mlp_vae_forward.1} parent=1 // pred_check
      _
    $region47: #{mlp_vae_forward.1} parent=1 // pred_check_branch
      %74 = sbr.rel (0) target = $region49
    $region48: #{mlp_vae_forward.1} parent=1 // pred_region
      _
    $region49: #{mlp_vae_forward.1} parent=1 // pred_fallthru
      _
    // Predicated region
    $region50: #{mlp_vae_forward.1} parent=1 // pred_check
      _
    $region51: #{mlp_vae_forward.1} parent=1 // pred_check_branch
      %76 = sbr.rel (0) target = $region53
    $region52: #{mlp_vae_forward.1} parent=1 // pred_region
      _
    $region53: #{mlp_vae_forward.1} parent=1 // pred_fallthru
      _
    // Predicated region
    $region54: #{mlp_vae_forward.1} parent=1 // pred_check
      _
    $region55: #{mlp_vae_forward.1} parent=1 // pred_check_branch
      %78 = sbr.rel (0) target = $region57
    $region56: #{mlp_vae_forward.1} parent=1 // pred_region
      %80 = vsyncadd [#allocation5], 0
      %s81 = sshll.u32 %s13, 4
      %s82 = int_to_ptr.hbm [resolvable:$true] %s81
      %s83 = sshll.u32 [#allocation6], 4
      %s84 = int_to_ptr.vmem [resolvable:$true] %s83
      %89 = dma.hbm_to_vmem [thread:$0]  %s82, 8192, %s84, [#allocation5], 128, 128, 8
    $region57: #{mlp_vae_forward.1} parent=1 // pred_fallthru
      _
    // Predicated region
    $region58: #{mlp_vae_forward.1} parent=1 // pred_check
      _
    $region59: #{mlp_vae_forward.1} parent=1 // pred_check_branch
      %91 = sbr.rel (0) target = $region61
    $region60: #{mlp_vae_forward.1} parent=1 // pred_region
      _
    $region61: #{mlp_vae_forward.1} parent=1 // pred_fallthru
      _
    // Predicated region
    $region62: #{mlp_vae_forward.1} parent=1 // pred_check
      _
    $region63: #{mlp_vae_forward.1} parent=1 // pred_check_branch
      %93 = sbr.rel (0) target = $region65
    $region64: #{mlp_vae_forward.1} parent=1 // pred_region
      %95 = vsyncadd [#allocation8], 0
      %s96 = sshll.u32 %s15, 4
      %s97 = int_to_ptr.hbm [resolvable:$true] %s96
      %s98 = sshll.u32 [#allocation7], 4
      %s99 = int_to_ptr.vmem [resolvable:$true] %s98
      %104 = dma.hbm_to_vmem [thread:$0]  %s97, 4096, %s99, [#allocation8], 128, 128, 8
    $region65: #{mlp_vae_forward.1} parent=1 // pred_fallthru
      _
    // Predicated region
    $region66: #{mlp_vae_forward.1} parent=1 // pred_check
      _
    $region67: #{mlp_vae_forward.1} parent=1 // pred_check_branch
      %106 = sbr.rel (0) target = $region69
    $region68: #{mlp_vae_forward.1} parent=1 // pred_region
      _
    $region69: #{mlp_vae_forward.1} parent=1 // pred_fallthru
      _
    // Predicated region
    $region70: #{mlp_vae_forward.1} parent=1 // pred_check
      _
    $region71: #{mlp_vae_forward.1} parent=1 // pred_check_branch
      %108 = sbr.rel (0) target = $region73
    $region72: #{mlp_vae_forward.1} parent=1 // pred_region
      %110 = vsyncadd [#allocation8], 0
      %s111 = sshll.u32 %s17, 4
      %s112 = int_to_ptr.hbm [resolvable:$true] %s111
      %s113 = sshll.u32 [#allocation9], 4
      %s114 = int_to_ptr.vmem [resolvable:$true] %s113
      %119 = dma.hbm_to_vmem [thread:$0]  %s112, 14336, %s114, [#allocation8], 448, 448, 28
    $region73: #{mlp_vae_forward.1} parent=1 // pred_fallthru
      _
    // Predicated region
    $region74: #{mlp_vae_forward.1} parent=1 // pred_check
      _
    $region75: #{mlp_vae_forward.1} parent=1 // pred_check_branch
      %121 = sbr.rel (0) target = $region77
    $region76: #{mlp_vae_forward.1} parent=1 // pred_region
      _
    $region77: #{mlp_vae_forward.1} parent=1 // pred_fallthru
      _
    // Predicated region
    $region78: #{mlp_vae_forward.1} parent=1 // pred_check
      _
    $region79: #{mlp_vae_forward.1} parent=1 // pred_check_branch
      %123 = sbr.rel (0) target = $region81
    $region80: #{mlp_vae_forward.1} parent=1 // pred_region
      %125 = dma.done [#allocation3], 14336
    $region81: #{mlp_vae_forward.1} parent=1 // pred_fallthru
      _
    // Predicated region
    $region82: #{mlp_vae_forward.1} parent=1 // pred_check
      _
    $region83: #{mlp_vae_forward.1} parent=1 // pred_check_branch
      %127 = sbr.rel (0) target = $region85
    $region84: #{mlp_vae_forward.1} parent=1 // pred_region
      %129 = dma.done [#allocation5], 4096
    $region85: #{mlp_vae_forward.1} parent=1 // pred_fallthru
      _
    // Predicated region
    $region86: #{mlp_vae_forward.1} parent=1 // pred_check
      _
    $region87: #{mlp_vae_forward.1} parent=1 // pred_check_branch
      %131 = sbr.rel (0) target = $region89
    $region88: #{mlp_vae_forward.1} parent=1 // pred_region
      %133 = dma.done [#allocation5], 8192
    $region89: #{mlp_vae_forward.1} parent=1 // pred_fallthru
      _
    // Predicated region
    $region90: #{mlp_vae_forward.1} parent=1 // pred_check
      _
    $region91: #{mlp_vae_forward.1} parent=1 // pred_check_branch
      %135 = sbr.rel (0) target = $region93
    $region92: #{mlp_vae_forward.1} parent=1 // pred_region
      %137 = dma.done [#allocation8], 4096
    $region93: #{mlp_vae_forward.1} parent=1 // pred_fallthru
      _
    // Predicated region
    $region94: #{mlp_vae_forward.1} parent=1 // pred_check
      _
    $region95: #{mlp_vae_forward.1} parent=1 // pred_check_branch
      %139 = sbr.rel (0) target = $region97
    $region96: #{mlp_vae_forward.1} parent=1 // pred_region
      %141 = dma.done [#allocation8], 14336
    $region97: #{mlp_vae_forward.1} parent=1 // pred_fallthru
      _
    %v144 = vld [vmem:[%s0] sm:$0xff]
    %v145 = vld [vmem:[%s0 + $0x8] sm:$0xff]
    %v146 = vld [vmem:[%s0 + $0x10] sm:$0xff]
    %v147 = vld [vmem:[%s0 + $0x18] sm:$0xf]
    %v148 = vld [vmem:[#allocation2] sm:$0xff]
    %v149 = vld [vmem:[#allocation2 + $0x8] sm:$0xff]
    %v150 = vld [vmem:[#allocation2 + $0x10] sm:$0xff]
    %v151 = vld [vmem:[#allocation2 + $0x18] sm:$0xff]
    %v152 = vld [vmem:[#allocation2 + $0x20] sm:$0xff]
    %v153 = vld [vmem:[#allocation2 + $0x28] sm:$0xff]
    %v154 = vld [vmem:[#allocation2 + $0x30] sm:$0xff]
    %v155 = vld [vmem:[#allocation2 + $0x38] sm:$0xff]
    %v156 = vld [vmem:[#allocation2 + $0x40] sm:$0xff]
    %v157 = vld [vmem:[#allocation2 + $0x48] sm:$0xff]
    %v158 = vld [vmem:[#allocation2 + $0x50] sm:$0xff]
    %v159 = vld [vmem:[#allocation2 + $0x58] sm:$0xff]
    %v160 = vld [vmem:[#allocation2 + $0x60] sm:$0xff]
    %v161 = vld [vmem:[#allocation2 + $0x68] sm:$0xff]
    %v162 = vld [vmem:[#allocation2 + $0x70] sm:$0xff]
    %v163 = vld [vmem:[#allocation2 + $0x78] sm:$0xff]
    %v164 = vld [vmem:[#allocation2 + $0x80] sm:$0xff]
    %v165 = vld [vmem:[#allocation2 + $0x88] sm:$0xff]
    %v166 = vld [vmem:[#allocation2 + $0x90] sm:$0xff]
    %v167 = vld [vmem:[#allocation2 + $0x98] sm:$0xff]
    %v168 = vld [vmem:[#allocation2 + $0xa0] sm:$0xff]
    %v169 = vld [vmem:[#allocation2 + $0xa8] sm:$0xff]
    %v170 = vld [vmem:[#allocation2 + $0xb0] sm:$0xff]
    %v171 = vld [vmem:[#allocation2 + $0xb8] sm:$0xff]
    %v172 = vld [vmem:[#allocation2 + $0xc0] sm:$0xff]
    %v173 = vld [vmem:[#allocation2 + $0xc8] sm:$0xff]
    %v174 = vld [vmem:[#allocation2 + $0xd0] sm:$0xff]
    %v175 = vld [vmem:[#allocation2 + $0xd8] sm:$0xff]
    %v176 = vld [vmem:[#allocation2 + $0xe0] sm:$0xff]
    %v177 = vld [vmem:[#allocation2 + $0xe8] sm:$0xff]
    %v178 = vld [vmem:[#allocation2 + $0xf0] sm:$0xff]
    %v179 = vld [vmem:[#allocation2 + $0xf8] sm:$0xff]
    %v180 = vld [vmem:[#allocation2 + $0x100] sm:$0xff]
    %v181 = vld [vmem:[#allocation2 + $0x108] sm:$0xff]
    %v182 = vld [vmem:[#allocation2 + $0x110] sm:$0xff]
    %v183 = vld [vmem:[#allocation2 + $0x118] sm:$0xff]
    %v184 = vld [vmem:[#allocation2 + $0x120] sm:$0xff]
    %v185 = vld [vmem:[#allocation2 + $0x128] sm:$0xff]
    %v186 = vld [vmem:[#allocation2 + $0x130] sm:$0xff]
    %v187 = vld [vmem:[#allocation2 + $0x138] sm:$0xff]
    %v188 = vld [vmem:[#allocation2 + $0x140] sm:$0xff]
    %v189 = vld [vmem:[#allocation2 + $0x148] sm:$0xff]
    %v190 = vld [vmem:[#allocation2 + $0x150] sm:$0xff]
    %v191 = vld [vmem:[#allocation2 + $0x158] sm:$0xff]
    %v192 = vld [vmem:[#allocation2 + $0x160] sm:$0xff]
    %v193 = vld [vmem:[#allocation2 + $0x168] sm:$0xff]
    %v194 = vld [vmem:[#allocation2 + $0x170] sm:$0xff]
    %v195 = vld [vmem:[#allocation2 + $0x178] sm:$0xff]
    %v196 = vld [vmem:[#allocation2 + $0x180] sm:$0xff]
    %v197 = vld [vmem:[#allocation2 + $0x188] sm:$0xff]
    %v198 = vld [vmem:[#allocation2 + $0x190] sm:$0xff]
    %v199 = vld [vmem:[#allocation2 + $0x198] sm:$0xff]
    %v200 = vld [vmem:[#allocation2 + $0x1a0] sm:$0xff]
    %v201 = vld [vmem:[#allocation2 + $0x1a8] sm:$0xff]
    %v202 = vld [vmem:[#allocation2 + $0x1b0] sm:$0xff]
    %v203 = vld [vmem:[#allocation2 + $0x1b8] sm:$0xff]
    %v204 = vld [vmem:[#allocation2 + $0x1c0] sm:$0xff]
    %v205 = vld [vmem:[#allocation2 + $0x1c8] sm:$0xff]
    %v206 = vld [vmem:[#allocation2 + $0x1d0] sm:$0xff]
    %v207 = vld [vmem:[#allocation2 + $0x1d8] sm:$0xff]
    %v208 = vld [vmem:[#allocation2 + $0x1e0] sm:$0xff]
    %v209 = vld [vmem:[#allocation2 + $0x1e8] sm:$0xff]
    %v210 = vld [vmem:[#allocation2 + $0x1f0] sm:$0xff]
    %v211 = vld [vmem:[#allocation2 + $0x1f8] sm:$0xff]
    %v212 = vld [vmem:[#allocation2 + $0x200] sm:$0xff]
    %v213 = vld [vmem:[#allocation2 + $0x208] sm:$0xff]
    %v214 = vld [vmem:[#allocation2 + $0x210] sm:$0xff]
    %v215 = vld [vmem:[#allocation2 + $0x218] sm:$0xff]
    %v216 = vld [vmem:[#allocation2 + $0x220] sm:$0xff]
    %v217 = vld [vmem:[#allocation2 + $0x228] sm:$0xff]
    %v218 = vld [vmem:[#allocation2 + $0x230] sm:$0xff]
    %v219 = vld [vmem:[#allocation2 + $0x238] sm:$0xff]
    %v220 = vld [vmem:[#allocation2 + $0x240] sm:$0xff]
    %v221 = vld [vmem:[#allocation2 + $0x248] sm:$0xff]
    %v222 = vld [vmem:[#allocation2 + $0x250] sm:$0xff]
    %v223 = vld [vmem:[#allocation2 + $0x258] sm:$0xff]
    %v224 = vld [vmem:[#allocation2 + $0x260] sm:$0xff]
    %v225 = vld [vmem:[#allocation2 + $0x268] sm:$0xff]
    %v226 = vld [vmem:[#allocation2 + $0x270] sm:$0xff]
    %v227 = vld [vmem:[#allocation2 + $0x278] sm:$0xff]
    %v228 = vld [vmem:[#allocation2 + $0x280] sm:$0xff]
    %v229 = vld [vmem:[#allocation2 + $0x288] sm:$0xff]
    %v230 = vld [vmem:[#allocation2 + $0x290] sm:$0xff]
    %v231 = vld [vmem:[#allocation2 + $0x298] sm:$0xff]
    %v232 = vld [vmem:[#allocation2 + $0x2a0] sm:$0xff]
    %v233 = vld [vmem:[#allocation2 + $0x2a8] sm:$0xff]
    %v234 = vld [vmem:[#allocation2 + $0x2b0] sm:$0xff]
    %v235 = vld [vmem:[#allocation2 + $0x2b8] sm:$0xff]
    %v236 = vld [vmem:[#allocation2 + $0x2c0] sm:$0xff]
    %v237 = vld [vmem:[#allocation2 + $0x2c8] sm:$0xff]
    %v238 = vld [vmem:[#allocation2 + $0x2d0] sm:$0xff]
    %v239 = vld [vmem:[#allocation2 + $0x2d8] sm:$0xff]
    %v240 = vld [vmem:[#allocation2 + $0x2e0] sm:$0xff]
    %v241 = vld [vmem:[#allocation2 + $0x2e8] sm:$0xff]
    %v242 = vld [vmem:[#allocation2 + $0x2f0] sm:$0xff]
    %v243 = vld [vmem:[#allocation2 + $0x2f8] sm:$0xff]
    %v244 = vld [vmem:[#allocation2 + $0x300] sm:$0xff]
    %v245 = vld [vmem:[#allocation2 + $0x308] sm:$0xff]
    %v246 = vld [vmem:[#allocation2 + $0x310] sm:$0xff]
    %v247 = vld [vmem:[#allocation2 + $0x318] sm:$0xff]
    %v248 = vld [vmem:[#allocation2 + $0x320] sm:$0xff]
    %v249 = vld [vmem:[#allocation2 + $0x328] sm:$0xff]
    %v250 = vld [vmem:[#allocation2 + $0x330] sm:$0xff]
    %v251 = vld [vmem:[#allocation2 + $0x338] sm:$0xff]
    %v252 = vld [vmem:[#allocation2 + $0x340] sm:$0xff]
    %v253 = vld [vmem:[#allocation2 + $0x348] sm:$0xff]
    %v254 = vld [vmem:[#allocation2 + $0x350] sm:$0xff]
    %v255 = vld [vmem:[#allocation2 + $0x358] sm:$0xff]
    %v256 = vld [vmem:[#allocation2 + $0x360] sm:$0xff]
    %v257 = vld [vmem:[#allocation2 + $0x368] sm:$0xff]
    %v258 = vld [vmem:[#allocation2 + $0x370] sm:$0xff]
    %v259 = vld [vmem:[#allocation2 + $0x378] sm:$0xff]
    %v260 = vld [vmem:[%s2] sm:$0x3]
    %v262 = vperm.slane %v260, 0
    %v263 = vperm.slane %v260, 1
    %v270 = vunpack.c.l.b16 %v144
    %v271 = vunpack.c.h.b16 %v144
    %v272 = vunpack.c.l.b16 %v145
    %v273 = vunpack.c.h.b16 %v145
    %v274 = vunpack.c.l.b16 %v146
    %v275 = vunpack.c.h.b16 %v146
    %v276 = vunpack.c.l.b16 %v147
    %v277 = vpack.c.b16 %v270, %v270
    %v278 = vpack.c.b16 %v271, %v271
    %v279 = vpack.c.b16 %v272, %v272
    %v280 = vpack.c.b16 %v273, %v273
    %v281 = vpack.c.b16 %v274, %v274
    %v282 = vpack.c.b16 %v275, %v275
    %v283 = vpack.c.b16 %v276, %v276
    %v403 = vunpack.c.l.b16 %v148
    %v404 = vunpack.c.h.b16 %v148
    %v405 = vunpack.c.l.b16 %v149
    %v406 = vunpack.c.h.b16 %v149
    %v407 = vunpack.c.l.b16 %v150
    %v408 = vunpack.c.h.b16 %v150
    %v409 = vunpack.c.l.b16 %v151
    %v410 = vunpack.c.h.b16 %v151
    %v411 = vunpack.c.l.b16 %v152
    %v412 = vunpack.c.h.b16 %v152
    %v413 = vunpack.c.l.b16 %v153
    %v414 = vunpack.c.h.b16 %v153
    %v415 = vunpack.c.l.b16 %v154
    %v416 = vunpack.c.h.b16 %v154
    %v417 = vunpack.c.l.b16 %v155
    %v418 = vunpack.c.h.b16 %v155
    %v419 = vunpack.c.l.b16 %v156
    %v420 = vunpack.c.h.b16 %v156
    %v421 = vunpack.c.l.b16 %v157
    %v422 = vunpack.c.h.b16 %v157
    %v423 = vunpack.c.l.b16 %v158
    %v424 = vunpack.c.h.b16 %v158
    %v425 = vunpack.c.l.b16 %v159
    %v426 = vunpack.c.h.b16 %v159
    %v427 = vunpack.c.l.b16 %v160
    %v428 = vunpack.c.h.b16 %v160
    %v429 = vunpack.c.l.b16 %v161
    %v430 = vunpack.c.h.b16 %v161
    %v431 = vunpack.c.l.b16 %v162
    %v432 = vunpack.c.h.b16 %v162
    %v433 = vunpack.c.l.b16 %v163
    %v434 = vunpack.c.h.b16 %v163
    %v435 = vunpack.c.l.b16 %v164
    %v436 = vunpack.c.h.b16 %v164
    %v437 = vunpack.c.l.b16 %v165
    %v438 = vunpack.c.h.b16 %v165
    %v439 = vunpack.c.l.b16 %v166
    %v440 = vunpack.c.h.b16 %v166
    %v441 = vunpack.c.l.b16 %v167
    %v442 = vunpack.c.h.b16 %v167
    %v443 = vunpack.c.l.b16 %v168
    %v444 = vunpack.c.h.b16 %v168
    %v445 = vunpack.c.l.b16 %v169
    %v446 = vunpack.c.h.b16 %v169
    %v447 = vunpack.c.l.b16 %v170
    %v448 = vunpack.c.h.b16 %v170
    %v449 = vunpack.c.l.b16 %v171
    %v450 = vunpack.c.h.b16 %v171
    %v451 = vunpack.c.l.b16 %v172
    %v452 = vunpack.c.h.b16 %v172
    %v453 = vunpack.c.l.b16 %v173
    %v454 = vunpack.c.h.b16 %v173
    %v455 = vunpack.c.l.b16 %v174
    %v456 = vunpack.c.h.b16 %v174
    %v457 = vunpack.c.l.b16 %v175
    %v458 = vunpack.c.h.b16 %v175
    %v459 = vunpack.c.l.b16 %v176
    %v460 = vunpack.c.h.b16 %v176
    %v461 = vunpack.c.l.b16 %v177
    %v462 = vunpack.c.h.b16 %v177
    %v463 = vunpack.c.l.b16 %v178
    %v464 = vunpack.c.h.b16 %v178
    %v465 = vunpack.c.l.b16 %v179
    %v466 = vunpack.c.h.b16 %v179
    %v467 = vunpack.c.l.b16 %v180
    %v468 = vunpack.c.h.b16 %v180
    %v469 = vunpack.c.l.b16 %v181
    %v470 = vunpack.c.h.b16 %v181
    %v471 = vunpack.c.l.b16 %v182
    %v472 = vunpack.c.h.b16 %v182
    %v473 = vunpack.c.l.b16 %v183
    %v474 = vunpack.c.h.b16 %v183
    %v475 = vunpack.c.l.b16 %v184
    %v476 = vunpack.c.h.b16 %v184
    %v477 = vunpack.c.l.b16 %v185
    %v478 = vunpack.c.h.b16 %v185
    %v479 = vunpack.c.l.b16 %v186
    %v480 = vunpack.c.h.b16 %v186
    %v481 = vunpack.c.l.b16 %v187
    %v482 = vunpack.c.h.b16 %v187
    %v483 = vunpack.c.l.b16 %v188
    %v484 = vunpack.c.h.b16 %v188
    %v485 = vunpack.c.l.b16 %v189
    %v486 = vunpack.c.h.b16 %v189
    %v487 = vunpack.c.l.b16 %v190
    %v488 = vunpack.c.h.b16 %v190
    %v489 = vunpack.c.l.b16 %v191
    %v490 = vunpack.c.h.b16 %v191
    %v491 = vunpack.c.l.b16 %v192
    %v492 = vunpack.c.h.b16 %v192
    %v493 = vunpack.c.l.b16 %v193
    %v494 = vunpack.c.h.b16 %v193
    %v495 = vunpack.c.l.b16 %v194
    %v496 = vunpack.c.h.b16 %v194
    %v497 = vunpack.c.l.b16 %v195
    %v498 = vunpack.c.h.b16 %v195
    %v499 = vunpack.c.l.b16 %v196
    %v500 = vunpack.c.h.b16 %v196
    %v501 = vunpack.c.l.b16 %v197
    %v502 = vunpack.c.h.b16 %v197
    %v503 = vunpack.c.l.b16 %v198
    %v504 = vunpack.c.h.b16 %v198
    %v505 = vunpack.c.l.b16 %v199
    %v506 = vunpack.c.h.b16 %v199
    %v507 = vunpack.c.l.b16 %v200
    %v508 = vunpack.c.h.b16 %v200
    %v509 = vunpack.c.l.b16 %v201
    %v510 = vunpack.c.h.b16 %v201
    %v511 = vunpack.c.l.b16 %v202
    %v512 = vunpack.c.h.b16 %v202
    %v513 = vunpack.c.l.b16 %v203
    %v514 = vunpack.c.h.b16 %v203
    %v515 = vunpack.c.l.b16 %v204
    %v516 = vunpack.c.h.b16 %v204
    %v517 = vunpack.c.l.b16 %v205
    %v518 = vunpack.c.h.b16 %v205
    %v519 = vunpack.c.l.b16 %v206
    %v520 = vunpack.c.h.b16 %v206
    %v521 = vunpack.c.l.b16 %v207
    %v522 = vunpack.c.h.b16 %v207
    %v523 = vunpack.c.l.b16 %v208
    %v524 = vunpack.c.h.b16 %v208
    %v525 = vunpack.c.l.b16 %v209
    %v526 = vunpack.c.h.b16 %v209
    %v527 = vunpack.c.l.b16 %v210
    %v528 = vunpack.c.h.b16 %v210
    %v529 = vunpack.c.l.b16 %v211
    %v530 = vunpack.c.h.b16 %v211
    %v531 = vunpack.c.l.b16 %v212
    %v532 = vunpack.c.h.b16 %v212
    %v533 = vunpack.c.l.b16 %v213
    %v534 = vunpack.c.h.b16 %v213
    %v535 = vunpack.c.l.b16 %v214
    %v536 = vunpack.c.h.b16 %v214
    %v537 = vunpack.c.l.b16 %v215
    %v538 = vunpack.c.h.b16 %v215
    %v539 = vunpack.c.l.b16 %v216
    %v540 = vunpack.c.h.b16 %v216
    %v541 = vunpack.c.l.b16 %v217
    %v542 = vunpack.c.h.b16 %v217
    %v543 = vunpack.c.l.b16 %v218
    %v544 = vunpack.c.h.b16 %v218
    %v545 = vunpack.c.l.b16 %v219
    %v546 = vunpack.c.h.b16 %v219
    %v547 = vunpack.c.l.b16 %v220
    %v548 = vunpack.c.h.b16 %v220
    %v549 = vunpack.c.l.b16 %v221
    %v550 = vunpack.c.h.b16 %v221
    %v551 = vunpack.c.l.b16 %v222
    %v552 = vunpack.c.h.b16 %v222
    %v553 = vunpack.c.l.b16 %v223
    %v554 = vunpack.c.h.b16 %v223
    %v555 = vunpack.c.l.b16 %v224
    %v556 = vunpack.c.h.b16 %v224
    %v557 = vunpack.c.l.b16 %v225
    %v558 = vunpack.c.h.b16 %v225
    %v559 = vunpack.c.l.b16 %v226
    %v560 = vunpack.c.h.b16 %v226
    %v561 = vunpack.c.l.b16 %v227
    %v562 = vunpack.c.h.b16 %v227
    %v563 = vunpack.c.l.b16 %v228
    %v564 = vunpack.c.h.b16 %v228
    %v565 = vunpack.c.l.b16 %v229
    %v566 = vunpack.c.h.b16 %v229
    %v567 = vunpack.c.l.b16 %v230
    %v568 = vunpack.c.h.b16 %v230
    %v569 = vunpack.c.l.b16 %v231
    %v570 = vunpack.c.h.b16 %v231
    %v571 = vunpack.c.l.b16 %v232
    %v572 = vunpack.c.h.b16 %v232
    %v573 = vunpack.c.l.b16 %v233
    %v574 = vunpack.c.h.b16 %v233
    %v575 = vunpack.c.l.b16 %v234
    %v576 = vunpack.c.h.b16 %v234
    %v577 = vunpack.c.l.b16 %v235
    %v578 = vunpack.c.h.b16 %v235
    %v579 = vunpack.c.l.b16 %v236
    %v580 = vunpack.c.h.b16 %v236
    %v581 = vunpack.c.l.b16 %v237
    %v582 = vunpack.c.h.b16 %v237
    %v583 = vunpack.c.l.b16 %v238
    %v584 = vunpack.c.h.b16 %v238
    %v585 = vunpack.c.l.b16 %v239
    %v586 = vunpack.c.h.b16 %v239
    %v587 = vunpack.c.l.b16 %v240
    %v588 = vunpack.c.h.b16 %v240
    %v589 = vunpack.c.l.b16 %v241
    %v590 = vunpack.c.h.b16 %v241
    %v591 = vunpack.c.l.b16 %v242
    %v592 = vunpack.c.h.b16 %v242
    %v593 = vunpack.c.l.b16 %v243
    %v594 = vunpack.c.h.b16 %v243
    %v595 = vunpack.c.l.b16 %v244
    %v596 = vunpack.c.h.b16 %v244
    %v597 = vunpack.c.l.b16 %v245
    %v598 = vunpack.c.h.b16 %v245
    %v599 = vunpack.c.l.b16 %v246
    %v600 = vunpack.c.h.b16 %v246
    %v601 = vunpack.c.l.b16 %v247
    %v602 = vunpack.c.h.b16 %v247
    %v603 = vunpack.c.l.b16 %v248
    %v604 = vunpack.c.h.b16 %v248
    %v605 = vunpack.c.l.b16 %v249
    %v606 = vunpack.c.h.b16 %v249
    %v607 = vunpack.c.l.b16 %v250
    %v608 = vunpack.c.h.b16 %v250
    %v609 = vunpack.c.l.b16 %v251
    %v610 = vunpack.c.h.b16 %v251
    %v611 = vunpack.c.l.b16 %v252
    %v612 = vunpack.c.h.b16 %v252
    %v613 = vunpack.c.l.b16 %v253
    %v614 = vunpack.c.h.b16 %v253
    %v615 = vunpack.c.l.b16 %v254
    %v616 = vunpack.c.h.b16 %v254
    %v617 = vunpack.c.l.b16 %v255
    %v618 = vunpack.c.h.b16 %v255
    %v619 = vunpack.c.l.b16 %v256
    %v620 = vunpack.c.h.b16 %v256
    %v621 = vunpack.c.l.b16 %v257
    %v622 = vunpack.c.h.b16 %v257
    %v623 = vunpack.c.l.b16 %v258
    %v624 = vunpack.c.h.b16 %v258
    %v625 = vunpack.c.l.b16 %v259
    %v626 = vunpack.c.h.b16 %v259
    %v627 = vpack.c.b16 %v405, %v403
    %v628 = vpack.c.b16 %v406, %v404
    %v629 = vpack.c.b16 %v409, %v407
    %v630 = vpack.c.b16 %v410, %v408
    %v631 = vpack.c.b16 %v413, %v411
    %v632 = vpack.c.b16 %v414, %v412
    %v633 = vpack.c.b16 %v417, %v415
    %v634 = vpack.c.b16 %v418, %v416
    %v635 = vpack.c.b16 %v421, %v419
    %v636 = vpack.c.b16 %v422, %v420
    %v637 = vpack.c.b16 %v425, %v423
    %v638 = vpack.c.b16 %v426, %v424
    %v639 = vpack.c.b16 %v429, %v427
    %v640 = vpack.c.b16 %v430, %v428
    %v641 = vpack.c.b16 %v433, %v431
    %v642 = vpack.c.b16 %v434, %v432
    %v643 = vpack.c.b16 %v437, %v435
    %v644 = vpack.c.b16 %v438, %v436
    %v645 = vpack.c.b16 %v441, %v439
    %v646 = vpack.c.b16 %v442, %v440
    %v647 = vpack.c.b16 %v445, %v443
    %v648 = vpack.c.b16 %v446, %v444
    %v649 = vpack.c.b16 %v449, %v447
    %v650 = vpack.c.b16 %v450, %v448
    %v651 = vpack.c.b16 %v453, %v451
    %v652 = vpack.c.b16 %v454, %v452
    %v653 = vpack.c.b16 %v457, %v455
    %v654 = vpack.c.b16 %v458, %v456
    %v655 = vpack.c.b16 %v461, %v459
    %v656 = vpack.c.b16 %v462, %v460
    %v657 = vpack.c.b16 %v465, %v463
    %v658 = vpack.c.b16 %v466, %v464
    %v659 = vpack.c.b16 %v469, %v467
    %v660 = vpack.c.b16 %v470, %v468
    %v661 = vpack.c.b16 %v473, %v471
    %v662 = vpack.c.b16 %v474, %v472
    %v663 = vpack.c.b16 %v477, %v475
    %v664 = vpack.c.b16 %v478, %v476
    %v665 = vpack.c.b16 %v481, %v479
    %v666 = vpack.c.b16 %v482, %v480
    %v667 = vpack.c.b16 %v485, %v483
    %v668 = vpack.c.b16 %v486, %v484
    %v669 = vpack.c.b16 %v489, %v487
    %v670 = vpack.c.b16 %v490, %v488
    %v671 = vpack.c.b16 %v493, %v491
    %v672 = vpack.c.b16 %v494, %v492
    %v673 = vpack.c.b16 %v497, %v495
    %v674 = vpack.c.b16 %v498, %v496
    %v675 = vpack.c.b16 %v501, %v499
    %v676 = vpack.c.b16 %v502, %v500
    %v677 = vpack.c.b16 %v505, %v503
    %v678 = vpack.c.b16 %v506, %v504
    %v679 = vpack.c.b16 %v509, %v507
    %v680 = vpack.c.b16 %v510, %v508
    %v681 = vpack.c.b16 %v513, %v511
    %v682 = vpack.c.b16 %v514, %v512
    %v683 = vpack.c.b16 %v517, %v515
    %v684 = vpack.c.b16 %v518, %v516
    %v685 = vpack.c.b16 %v521, %v519
    %v686 = vpack.c.b16 %v522, %v520
    %v687 = vpack.c.b16 %v525, %v523
    %v688 = vpack.c.b16 %v526, %v524
    %v689 = vpack.c.b16 %v529, %v527
    %v690 = vpack.c.b16 %v530, %v528
    %v691 = vpack.c.b16 %v533, %v531
    %v692 = vpack.c.b16 %v534, %v532
    %v693 = vpack.c.b16 %v537, %v535
    %v694 = vpack.c.b16 %v538, %v536
    %v695 = vpack.c.b16 %v541, %v539
    %v696 = vpack.c.b16 %v542, %v540
    %v697 = vpack.c.b16 %v545, %v543
    %v698 = vpack.c.b16 %v546, %v544
    %v699 = vpack.c.b16 %v549, %v547
    %v700 = vpack.c.b16 %v550, %v548
    %v701 = vpack.c.b16 %v553, %v551
    %v702 = vpack.c.b16 %v554, %v552
    %v703 = vpack.c.b16 %v557, %v555
    %v704 = vpack.c.b16 %v558, %v556
    %v705 = vpack.c.b16 %v561, %v559
    %v706 = vpack.c.b16 %v562, %v560
    %v707 = vpack.c.b16 %v565, %v563
    %v708 = vpack.c.b16 %v566, %v564
    %v709 = vpack.c.b16 %v569, %v567
    %v710 = vpack.c.b16 %v570, %v568
    %v711 = vpack.c.b16 %v573, %v571
    %v712 = vpack.c.b16 %v574, %v572
    %v713 = vpack.c.b16 %v577, %v575
    %v714 = vpack.c.b16 %v578, %v576
    %v715 = vpack.c.b16 %v581, %v579
    %v716 = vpack.c.b16 %v582, %v580
    %v717 = vpack.c.b16 %v585, %v583
    %v718 = vpack.c.b16 %v586, %v584
    %v719 = vpack.c.b16 %v589, %v587
    %v720 = vpack.c.b16 %v590, %v588
    %v721 = vpack.c.b16 %v593, %v591
    %v722 = vpack.c.b16 %v594, %v592
    %v723 = vpack.c.b16 %v597, %v595
    %v724 = vpack.c.b16 %v598, %v596
    %v725 = vpack.c.b16 %v601, %v599
    %v726 = vpack.c.b16 %v602, %v600
    %v727 = vpack.c.b16 %v605, %v603
    %v728 = vpack.c.b16 %v606, %v604
    %v729 = vpack.c.b16 %v609, %v607
    %v730 = vpack.c.b16 %v610, %v608
    %v731 = vpack.c.b16 %v613, %v611
    %v732 = vpack.c.b16 %v614, %v612
    %v733 = vpack.c.b16 %v617, %v615
    %v734 = vpack.c.b16 %v618, %v616
    %v735 = vpack.c.b16 %v621, %v619
    %v736 = vpack.c.b16 %v622, %v620
    %v737 = vpack.c.b16 %v625, %v623
    %v738 = vpack.c.b16 %v626, %v624
    %851 = vmatpush.bf16.msra.mxu0 %v641
    %852 = vmatpush.bf16.msra.mxu0 %v639
    %853 = vmatpush.bf16.msra.mxu0 %v637
    %854 = vmatpush.bf16.msra.mxu0 %v635
    %855 = vmatpush.bf16.msra.mxu0 %v633
    %856 = vmatpush.bf16.msra.mxu0 %v631
    %857 = vmatpush.bf16.msra.mxu0 %v629
    %858 = vmatpush.bf16.msra.mxu0 %v627
    %859 = vmatmul.bf16.gmra.mxu0 %v277
    %v860 = vpop.f32.mrf.mxu0
    %v861 = vadd.f32 %v262, %v860
    %v862 = vpop.f32.mrf.mxu0
    %863 = vdwg.mxu0
    %864 = vmatpush.bf16.msra.mxu0 %v657
    %865 = vmatpush.bf16.msra.mxu0 %v655
    %866 = vmatpush.bf16.msra.mxu0 %v653
    %867 = vmatpush.bf16.msra.mxu0 %v651
    %868 = vmatpush.bf16.msra.mxu0 %v649
    %869 = vmatpush.bf16.msra.mxu0 %v647
    %870 = vmatpush.bf16.msra.mxu0 %v645
    %871 = vmatpush.bf16.msra.mxu0 %v643
    %872 = vmatmul.bf16.gmra.mxu0 %v278
    %v873 = vpop.f32.mrf.mxu0
    %v874 = vadd.f32 %v861, %v873
    %v875 = vpop.f32.mrf.mxu0
    %876 = vdwg.mxu0
    %877 = vmatpush.bf16.msra.mxu0 %v673
    %878 = vmatpush.bf16.msra.mxu0 %v671
    %879 = vmatpush.bf16.msra.mxu0 %v669
    %880 = vmatpush.bf16.msra.mxu0 %v667
    %881 = vmatpush.bf16.msra.mxu0 %v665
    %882 = vmatpush.bf16.msra.mxu0 %v663
    %883 = vmatpush.bf16.msra.mxu0 %v661
    %884 = vmatpush.bf16.msra.mxu0 %v659
    %885 = vmatmul.bf16.gmra.mxu0 %v279
    %v886 = vpop.f32.mrf.mxu0
    %v887 = vadd.f32 %v874, %v886
    %v888 = vpop.f32.mrf.mxu0
    %889 = vdwg.mxu0
    %890 = vmatpush.bf16.msra.mxu0 %v689
    %891 = vmatpush.bf16.msra.mxu0 %v687
    %892 = vmatpush.bf16.msra.mxu0 %v685
    %893 = vmatpush.bf16.msra.mxu0 %v683
    %894 = vmatpush.bf16.msra.mxu0 %v681
    %895 = vmatpush.bf16.msra.mxu0 %v679
    %896 = vmatpush.bf16.msra.mxu0 %v677
    %897 = vmatpush.bf16.msra.mxu0 %v675
    %898 = vmatmul.bf16.gmra.mxu0 %v280
    %v899 = vpop.f32.mrf.mxu0
    %v900 = vadd.f32 %v887, %v899
    %v901 = vpop.f32.mrf.mxu0
    %902 = vdwg.mxu0
    %903 = vmatpush.bf16.msra.mxu0 %v705
    %904 = vmatpush.bf16.msra.mxu0 %v703
    %905 = vmatpush.bf16.msra.mxu0 %v701
    %906 = vmatpush.bf16.msra.mxu0 %v699
    %907 = vmatpush.bf16.msra.mxu0 %v697
    %908 = vmatpush.bf16.msra.mxu0 %v695
    %909 = vmatpush.bf16.msra.mxu0 %v693
    %910 = vmatpush.bf16.msra.mxu0 %v691
    %911 = vmatmul.bf16.gmra.mxu0 %v281
    %v912 = vpop.f32.mrf.mxu0
    %v913 = vadd.f32 %v900, %v912
    %v914 = vpop.f32.mrf.mxu0
    %915 = vdwg.mxu0
    %916 = vmatpush.bf16.msra.mxu0 %v721
    %917 = vmatpush.bf16.msra.mxu0 %v719
    %918 = vmatpush.bf16.msra.mxu0 %v717
    %919 = vmatpush.bf16.msra.mxu0 %v715
    %920 = vmatpush.bf16.msra.mxu0 %v713
    %921 = vmatpush.bf16.msra.mxu0 %v711
    %922 = vmatpush.bf16.msra.mxu0 %v709
    %923 = vmatpush.bf16.msra.mxu0 %v707
    %924 = vmatmul.bf16.gmra.mxu0 %v282
    %v925 = vpop.f32.mrf.mxu0
    %v926 = vadd.f32 %v913, %v925
    %v927 = vpop.f32.mrf.mxu0
    %928 = vdwg.mxu0
    %929 = vmatpush.bf16.msra.mxu0 %v737
    %930 = vmatpush.bf16.msra.mxu0 %v735
    %931 = vmatpush.bf16.msra.mxu0 %v733
    %932 = vmatpush.bf16.msra.mxu0 %v731
    %933 = vmatpush.bf16.msra.mxu0 %v729
    %934 = vmatpush.bf16.msra.mxu0 %v727
    %935 = vmatpush.bf16.msra.mxu0 %v725
    %936 = vmatpush.bf16.msra.mxu0 %v723
    %937 = vmatmul.bf16.gmra.mxu0 %v283
    %v938 = vpop.f32.mrf.mxu0
    %v939 = vadd.f32 %v926, %v938
    %v940 = vpop.f32.mrf.mxu0
    %941 = vdwg.mxu0
    %942 = vmatpush.bf16.msra.mxu0 %v642
    %943 = vmatpush.bf16.msra.mxu0 %v640
    %944 = vmatpush.bf16.msra.mxu0 %v638
    %945 = vmatpush.bf16.msra.mxu0 %v636
    %946 = vmatpush.bf16.msra.mxu0 %v634
    %947 = vmatpush.bf16.msra.mxu0 %v632
    %948 = vmatpush.bf16.msra.mxu0 %v630
    %949 = vmatpush.bf16.msra.mxu0 %v628
    %950 = vmatmul.bf16.gmra.mxu0 %v277
    %v951 = vpop.f32.mrf.mxu0
    %v952 = vadd.f32 %v263, %v951
    %v953 = vpop.f32.mrf.mxu0
    %954 = vdwg.mxu0
    %955 = vmatpush.bf16.msra.mxu0 %v658
    %956 = vmatpush.bf16.msra.mxu0 %v656
    %957 = vmatpush.bf16.msra.mxu0 %v654
    %958 = vmatpush.bf16.msra.mxu0 %v652
    %959 = vmatpush.bf16.msra.mxu0 %v650
    %960 = vmatpush.bf16.msra.mxu0 %v648
    %961 = vmatpush.bf16.msra.mxu0 %v646
    %962 = vmatpush.bf16.msra.mxu0 %v644
    %963 = vmatmul.bf16.gmra.mxu0 %v278
    %v964 = vpop.f32.mrf.mxu0
    %v965 = vadd.f32 %v952, %v964
    %v966 = vpop.f32.mrf.mxu0
    %967 = vdwg.mxu0
    %968 = vmatpush.bf16.msra.mxu0 %v674
    %969 = vmatpush.bf16.msra.mxu0 %v672
    %970 = vmatpush.bf16.msra.mxu0 %v670
    %971 = vmatpush.bf16.msra.mxu0 %v668
    %972 = vmatpush.bf16.msra.mxu0 %v666
    %973 = vmatpush.bf16.msra.mxu0 %v664
    %974 = vmatpush.bf16.msra.mxu0 %v662
    %975 = vmatpush.bf16.msra.mxu0 %v660
    %976 = vmatmul.bf16.gmra.mxu0 %v279
    %v977 = vpop.f32.mrf.mxu0
    %v978 = vadd.f32 %v965, %v977
    %v979 = vpop.f32.mrf.mxu0
    %980 = vdwg.mxu0
    %981 = vmatpush.bf16.msra.mxu0 %v690
    %982 = vmatpush.bf16.msra.mxu0 %v688
    %983 = vmatpush.bf16.msra.mxu0 %v686
    %984 = vmatpush.bf16.msra.mxu0 %v684
    %985 = vmatpush.bf16.msra.mxu0 %v682
    %986 = vmatpush.bf16.msra.mxu0 %v680
    %987 = vmatpush.bf16.msra.mxu0 %v678
    %988 = vmatpush.bf16.msra.mxu0 %v676
    %989 = vmatmul.bf16.gmra.mxu0 %v280
    %v990 = vpop.f32.mrf.mxu0
    %v991 = vadd.f32 %v978, %v990
    %v992 = vpop.f32.mrf.mxu0
    %993 = vdwg.mxu0
    %994 = vmatpush.bf16.msra.mxu0 %v706
    %995 = vmatpush.bf16.msra.mxu0 %v704
    %996 = vmatpush.bf16.msra.mxu0 %v702
    %997 = vmatpush.bf16.msra.mxu0 %v700
    %998 = vmatpush.bf16.msra.mxu0 %v698
    %999 = vmatpush.bf16.msra.mxu0 %v696
    %1000 = vmatpush.bf16.msra.mxu0 %v694
    %1001 = vmatpush.bf16.msra.mxu0 %v692
    %1002 = vmatmul.bf16.gmra.mxu0 %v281
    %v1003 = vpop.f32.mrf.mxu0
    %v1004 = vadd.f32 %v991, %v1003
    %v1005 = vpop.f32.mrf.mxu0
    %1006 = vdwg.mxu0
    %1007 = vmatpush.bf16.msra.mxu0 %v722
    %1008 = vmatpush.bf16.msra.mxu0 %v720
    %1009 = vmatpush.bf16.msra.mxu0 %v718
    %1010 = vmatpush.bf16.msra.mxu0 %v716
    %1011 = vmatpush.bf16.msra.mxu0 %v714
    %1012 = vmatpush.bf16.msra.mxu0 %v712
    %1013 = vmatpush.bf16.msra.mxu0 %v710
    %1014 = vmatpush.bf16.msra.mxu0 %v708
    %1015 = vmatmul.bf16.gmra.mxu0 %v282
    %v1016 = vpop.f32.mrf.mxu0
    %v1017 = vadd.f32 %v1004, %v1016
    %v1018 = vpop.f32.mrf.mxu0
    %1019 = vdwg.mxu0
    %1020 = vmatpush.bf16.msra.mxu0 %v738
    %1021 = vmatpush.bf16.msra.mxu0 %v736
    %1022 = vmatpush.bf16.msra.mxu0 %v734
    %1023 = vmatpush.bf16.msra.mxu0 %v732
    %1024 = vmatpush.bf16.msra.mxu0 %v730
    %1025 = vmatpush.bf16.msra.mxu0 %v728
    %1026 = vmatpush.bf16.msra.mxu0 %v726
    %1027 = vmatpush.bf16.msra.mxu0 %v724
    %1028 = vmatmul.bf16.gmra.mxu0 %v283
    %v1029 = vpop.f32.mrf.mxu0
    %v1030 = vadd.f32 %v1017, %v1029
    %v1031 = vpop.f32.mrf.mxu0
    %1032 = vdwg.mxu0
    %v1033 = vpack.c.bf16 %v939, %v939
    %v1034 = vpack.c.bf16 %v1030, %v1030
    %v1035 = vunpack.c.l.bf16 %v1033
    %v1036 = vunpack.c.l.bf16 %v1034
    %v1037 = vtanh.pop %v1035
    %v1038 = vtanh.pop %v1036
    %v1039 = vpack.c.bf16 %v1037, %v1037
    %v1040 = vpack.c.bf16 %v1038, %v1038
    %v1041 = vld [vmem:[#allocation4] sm:$0xff]
    %v1042 = vld [vmem:[#allocation4 + $0x8] sm:$0xff]
    %v1043 = vld [vmem:[#allocation4 + $0x10] sm:$0xff]
    %v1044 = vld [vmem:[#allocation4 + $0x18] sm:$0xff]
    %v1045 = vld [vmem:[#allocation4 + $0x20] sm:$0xff]
    %v1046 = vld [vmem:[#allocation4 + $0x28] sm:$0xff]
    %v1047 = vld [vmem:[#allocation4 + $0x30] sm:$0xff]
    %v1048 = vld [vmem:[#allocation4 + $0x38] sm:$0xff]
    %v1049 = vld [vmem:[#allocation4 + $0x40] sm:$0xff]
    %v1050 = vld [vmem:[#allocation4 + $0x48] sm:$0xff]
    %v1051 = vld [vmem:[#allocation4 + $0x50] sm:$0xff]
    %v1052 = vld [vmem:[#allocation4 + $0x58] sm:$0xff]
    %v1053 = vld [vmem:[#allocation4 + $0x60] sm:$0xff]
    %v1054 = vld [vmem:[#allocation4 + $0x68] sm:$0xff]
    %v1055 = vld [vmem:[#allocation4 + $0x70] sm:$0xff]
    %v1056 = vld [vmem:[#allocation4 + $0x78] sm:$0xff]
    %v1057 = vld [vmem:[#allocation4 + $0x80] sm:$0xff]
    %v1058 = vld [vmem:[#allocation4 + $0x88] sm:$0xff]
    %v1059 = vld [vmem:[#allocation4 + $0x90] sm:$0xff]
    %v1060 = vld [vmem:[#allocation4 + $0x98] sm:$0xff]
    %v1061 = vld [vmem:[#allocation4 + $0xa0] sm:$0xff]
    %v1062 = vld [vmem:[#allocation4 + $0xa8] sm:$0xff]
    %v1063 = vld [vmem:[#allocation4 + $0xb0] sm:$0xff]
    %v1064 = vld [vmem:[#allocation4 + $0xb8] sm:$0xff]
    %v1065 = vld [vmem:[#allocation4 + $0xc0] sm:$0xff]
    %v1066 = vld [vmem:[#allocation4 + $0xc8] sm:$0xff]
    %v1067 = vld [vmem:[#allocation4 + $0xd0] sm:$0xff]
    %v1068 = vld [vmem:[#allocation4 + $0xd8] sm:$0xff]
    %v1069 = vld [vmem:[#allocation4 + $0xe0] sm:$0xff]
    %v1070 = vld [vmem:[#allocation4 + $0xe8] sm:$0xff]
    %v1071 = vld [vmem:[#allocation4 + $0xf0] sm:$0xff]
    %v1072 = vld [vmem:[#allocation4 + $0xf8] sm:$0xff]
    %v1073 = vld [vmem:[%s4] sm:$0x3]
    %v1075 = vperm.slane %v1073, 0
    %v1076 = vperm.slane %v1073, 1
    %v1111 = vunpack.c.l.b16 %v1041
    %v1112 = vunpack.c.h.b16 %v1041
    %v1113 = vunpack.c.l.b16 %v1042
    %v1114 = vunpack.c.h.b16 %v1042
    %v1115 = vunpack.c.l.b16 %v1043
    %v1116 = vunpack.c.h.b16 %v1043
    %v1117 = vunpack.c.l.b16 %v1044
    %v1118 = vunpack.c.h.b16 %v1044
    %v1119 = vunpack.c.l.b16 %v1045
    %v1120 = vunpack.c.h.b16 %v1045
    %v1121 = vunpack.c.l.b16 %v1046
    %v1122 = vunpack.c.h.b16 %v1046
    %v1123 = vunpack.c.l.b16 %v1047
    %v1124 = vunpack.c.h.b16 %v1047
    %v1125 = vunpack.c.l.b16 %v1048
    %v1126 = vunpack.c.h.b16 %v1048
    %v1127 = vunpack.c.l.b16 %v1049
    %v1128 = vunpack.c.h.b16 %v1049
    %v1129 = vunpack.c.l.b16 %v1050
    %v1130 = vunpack.c.h.b16 %v1050
    %v1131 = vunpack.c.l.b16 %v1051
    %v1132 = vunpack.c.h.b16 %v1051
    %v1133 = vunpack.c.l.b16 %v1052
    %v1134 = vunpack.c.h.b16 %v1052
    %v1135 = vunpack.c.l.b16 %v1053
    %v1136 = vunpack.c.h.b16 %v1053
    %v1137 = vunpack.c.l.b16 %v1054
    %v1138 = vunpack.c.h.b16 %v1054
    %v1139 = vunpack.c.l.b16 %v1055
    %v1140 = vunpack.c.h.b16 %v1055
    %v1141 = vunpack.c.l.b16 %v1056
    %v1142 = vunpack.c.h.b16 %v1056
    %v1143 = vunpack.c.l.b16 %v1057
    %v1144 = vunpack.c.h.b16 %v1057
    %v1145 = vunpack.c.l.b16 %v1058
    %v1146 = vunpack.c.h.b16 %v1058
    %v1147 = vunpack.c.l.b16 %v1059
    %v1148 = vunpack.c.h.b16 %v1059
    %v1149 = vunpack.c.l.b16 %v1060
    %v1150 = vunpack.c.h.b16 %v1060
    %v1151 = vunpack.c.l.b16 %v1061
    %v1152 = vunpack.c.h.b16 %v1061
    %v1153 = vunpack.c.l.b16 %v1062
    %v1154 = vunpack.c.h.b16 %v1062
    %v1155 = vunpack.c.l.b16 %v1063
    %v1156 = vunpack.c.h.b16 %v1063
    %v1157 = vunpack.c.l.b16 %v1064
    %v1158 = vunpack.c.h.b16 %v1064
    %v1159 = vunpack.c.l.b16 %v1065
    %v1160 = vunpack.c.h.b16 %v1065
    %v1161 = vunpack.c.l.b16 %v1066
    %v1162 = vunpack.c.h.b16 %v1066
    %v1163 = vunpack.c.l.b16 %v1067
    %v1164 = vunpack.c.h.b16 %v1067
    %v1165 = vunpack.c.l.b16 %v1068
    %v1166 = vunpack.c.h.b16 %v1068
    %v1167 = vunpack.c.l.b16 %v1069
    %v1168 = vunpack.c.h.b16 %v1069
    %v1169 = vunpack.c.l.b16 %v1070
    %v1170 = vunpack.c.h.b16 %v1070
    %v1171 = vunpack.c.l.b16 %v1071
    %v1172 = vunpack.c.h.b16 %v1071
    %v1173 = vunpack.c.l.b16 %v1072
    %v1174 = vunpack.c.h.b16 %v1072
    %v1175 = vpack.c.b16 %v1113, %v1111
    %v1176 = vpack.c.b16 %v1114, %v1112
    %v1177 = vpack.c.b16 %v1117, %v1115
    %v1178 = vpack.c.b16 %v1118, %v1116
    %v1179 = vpack.c.b16 %v1121, %v1119
    %v1180 = vpack.c.b16 %v1122, %v1120
    %v1181 = vpack.c.b16 %v1125, %v1123
    %v1182 = vpack.c.b16 %v1126, %v1124
    %v1183 = vpack.c.b16 %v1129, %v1127
    %v1184 = vpack.c.b16 %v1130, %v1128
    %v1185 = vpack.c.b16 %v1133, %v1131
    %v1186 = vpack.c.b16 %v1134, %v1132
    %v1187 = vpack.c.b16 %v1137, %v1135
    %v1188 = vpack.c.b16 %v1138, %v1136
    %v1189 = vpack.c.b16 %v1141, %v1139
    %v1190 = vpack.c.b16 %v1142, %v1140
    %v1191 = vpack.c.b16 %v1145, %v1143
    %v1192 = vpack.c.b16 %v1146, %v1144
    %v1193 = vpack.c.b16 %v1149, %v1147
    %v1194 = vpack.c.b16 %v1150, %v1148
    %v1195 = vpack.c.b16 %v1153, %v1151
    %v1196 = vpack.c.b16 %v1154, %v1152
    %v1197 = vpack.c.b16 %v1157, %v1155
    %v1198 = vpack.c.b16 %v1158, %v1156
    %v1199 = vpack.c.b16 %v1161, %v1159
    %v1200 = vpack.c.b16 %v1162, %v1160
    %v1201 = vpack.c.b16 %v1165, %v1163
    %v1202 = vpack.c.b16 %v1166, %v1164
    %v1203 = vpack.c.b16 %v1169, %v1167
    %v1204 = vpack.c.b16 %v1170, %v1168
    %v1205 = vpack.c.b16 %v1173, %v1171
    %v1206 = vpack.c.b16 %v1174, %v1172
    %1239 = vmatpush.bf16.msra.mxu0 %v1189
    %1240 = vmatpush.bf16.msra.mxu0 %v1187
    %1241 = vmatpush.bf16.msra.mxu0 %v1185
    %1242 = vmatpush.bf16.msra.mxu0 %v1183
    %1243 = vmatpush.bf16.msra.mxu0 %v1181
    %1244 = vmatpush.bf16.msra.mxu0 %v1179
    %1245 = vmatpush.bf16.msra.mxu0 %v1177
    %1246 = vmatpush.bf16.msra.mxu0 %v1175
    %1247 = vmatmul.bf16.gmra.mxu0 %v1039
    %v1248 = vpop.f32.mrf.mxu0
    %v1249 = vadd.f32 %v1075, %v1248
    %v1250 = vpop.f32.mrf.mxu0
    %1251 = vdwg.mxu0
    %1252 = vmatpush.bf16.msra.mxu0 %v1205
    %1253 = vmatpush.bf16.msra.mxu0 %v1203
    %1254 = vmatpush.bf16.msra.mxu0 %v1201
    %1255 = vmatpush.bf16.msra.mxu0 %v1199
    %1256 = vmatpush.bf16.msra.mxu0 %v1197
    %1257 = vmatpush.bf16.msra.mxu0 %v1195
    %1258 = vmatpush.bf16.msra.mxu0 %v1193
    %1259 = vmatpush.bf16.msra.mxu0 %v1191
    %1260 = vmatmul.bf16.gmra.mxu0 %v1040
    %v1261 = vpop.f32.mrf.mxu0
    %v1262 = vadd.f32 %v1249, %v1261
    %v1263 = vpop.f32.mrf.mxu0
    %1264 = vdwg.mxu0
    %1265 = vmatpush.bf16.msra.mxu0 %v1190
    %1266 = vmatpush.bf16.msra.mxu0 %v1188
    %1267 = vmatpush.bf16.msra.mxu0 %v1186
    %1268 = vmatpush.bf16.msra.mxu0 %v1184
    %1269 = vmatpush.bf16.msra.mxu0 %v1182
    %1270 = vmatpush.bf16.msra.mxu0 %v1180
    %1271 = vmatpush.bf16.msra.mxu0 %v1178
    %1272 = vmatpush.bf16.msra.mxu0 %v1176
    %1273 = vmatmul.bf16.gmra.mxu0 %v1039
    %v1274 = vpop.f32.mrf.mxu0
    %v1275 = vadd.f32 %v1076, %v1274
    %v1276 = vpop.f32.mrf.mxu0
    %1277 = vdwg.mxu0
    %1278 = vmatpush.bf16.msra.mxu0 %v1206
    %1279 = vmatpush.bf16.msra.mxu0 %v1204
    %1280 = vmatpush.bf16.msra.mxu0 %v1202
    %1281 = vmatpush.bf16.msra.mxu0 %v1200
    %1282 = vmatpush.bf16.msra.mxu0 %v1198
    %1283 = vmatpush.bf16.msra.mxu0 %v1196
    %1284 = vmatpush.bf16.msra.mxu0 %v1194
    %1285 = vmatpush.bf16.msra.mxu0 %v1192
    %1286 = vmatmul.bf16.gmra.mxu0 %v1040
    %v1287 = vpop.f32.mrf.mxu0
    %v1288 = vadd.f32 %v1275, %v1287
    %v1289 = vpop.f32.mrf.mxu0
    %1290 = vdwg.mxu0
    %v1291 = vpack.c.bf16 %v1262, %v1262
    %v1292 = vpack.c.bf16 %v1288, %v1288
    %v1293 = vunpack.c.l.bf16 %v1291
    %v1294 = vunpack.c.l.bf16 %v1292
    %v1295 = vtanh.pop %v1293
    %v1296 = vtanh.pop %v1294
    %v1297 = vpack.c.bf16 %v1295, %v1295
    %v1298 = vpack.c.bf16 %v1296, %v1296
    %v1299 = vld [vmem:[%s5] sm:$0xff]
    %v1300 = vld [vmem:[%s5 + $0x8] sm:$0xff]
    %v1301 = vld [vmem:[%s5 + $0x10] sm:$0xff]
    %v1302 = vld [vmem:[%s5 + $0x18] sm:$0xff]
    %v1303 = vld [vmem:[%s5 + $0x20] sm:$0xff]
    %v1304 = vld [vmem:[%s5 + $0x28] sm:$0xff]
    %v1305 = vld [vmem:[%s5 + $0x30] sm:$0xff]
    %v1306 = vld [vmem:[%s5 + $0x38] sm:$0xff]
    %v1307 = vld [vmem:[%s5 + $0x40] sm:$0xff]
    %v1308 = vld [vmem:[%s5 + $0x48] sm:$0xff]
    %v1309 = vld [vmem:[%s5 + $0x50] sm:$0xff]
    %v1310 = vld [vmem:[%s5 + $0x58] sm:$0xff]
    %v1311 = vld [vmem:[%s5 + $0x60] sm:$0xff]
    %v1312 = vld [vmem:[%s5 + $0x68] sm:$0xff]
    %v1313 = vld [vmem:[%s5 + $0x70] sm:$0xff]
    %v1314 = vld [vmem:[%s5 + $0x78] sm:$0xff]
    %v1315 = vld [vmem:[%s5 + $0x80] sm:$0xff]
    %v1316 = vld [vmem:[%s5 + $0x88] sm:$0xff]
    %v1317 = vld [vmem:[%s5 + $0x90] sm:$0xff]
    %v1318 = vld [vmem:[%s5 + $0x98] sm:$0xff]
    %v1319 = vld [vmem:[%s5 + $0xa0] sm:$0xff]
    %v1320 = vld [vmem:[%s5 + $0xa8] sm:$0xff]
    %v1321 = vld [vmem:[%s5 + $0xb0] sm:$0xff]
    %v1322 = vld [vmem:[%s5 + $0xb8] sm:$0xff]
    %v1323 = vld [vmem:[%s5 + $0xc0] sm:$0xff]
    %v1324 = vld [vmem:[%s5 + $0xc8] sm:$0xff]
    %v1325 = vld [vmem:[%s5 + $0xd0] sm:$0xff]
    %v1326 = vld [vmem:[%s5 + $0xd8] sm:$0xff]
    %v1327 = vld [vmem:[%s5 + $0xe0] sm:$0xff]
    %v1328 = vld [vmem:[%s5 + $0xe8] sm:$0xff]
    %v1329 = vld [vmem:[%s5 + $0xf0] sm:$0xff]
    %v1330 = vld [vmem:[%s5 + $0xf8] sm:$0xff]
    %v1331 = vld [vmem:[%s5 + $0x100] sm:$0xff]
    %v1332 = vld [vmem:[%s5 + $0x108] sm:$0xff]
    %v1333 = vld [vmem:[%s5 + $0x110] sm:$0xff]
    %v1334 = vld [vmem:[%s5 + $0x118] sm:$0xff]
    %v1335 = vld [vmem:[%s5 + $0x120] sm:$0xff]
    %v1336 = vld [vmem:[%s5 + $0x128] sm:$0xff]
    %v1337 = vld [vmem:[%s5 + $0x130] sm:$0xff]
    %v1338 = vld [vmem:[%s5 + $0x138] sm:$0xff]
    %v1339 = vld [vmem:[%s5 + $0x140] sm:$0xff]
    %v1340 = vld [vmem:[%s5 + $0x148] sm:$0xff]
    %v1341 = vld [vmem:[%s5 + $0x150] sm:$0xff]
    %v1342 = vld [vmem:[%s5 + $0x158] sm:$0xff]
    %v1343 = vld [vmem:[%s5 + $0x160] sm:$0xff]
    %v1344 = vld [vmem:[%s5 + $0x168] sm:$0xff]
    %v1345 = vld [vmem:[%s5 + $0x170] sm:$0xff]
    %v1346 = vld [vmem:[%s5 + $0x178] sm:$0xff]
    %v1347 = vld [vmem:[%s5 + $0x180] sm:$0xff]
    %v1348 = vld [vmem:[%s5 + $0x188] sm:$0xff]
    %v1349 = vld [vmem:[%s5 + $0x190] sm:$0xff]
    %v1350 = vld [vmem:[%s5 + $0x198] sm:$0xff]
    %v1351 = vld [vmem:[%s5 + $0x1a0] sm:$0xff]
    %v1352 = vld [vmem:[%s5 + $0x1a8] sm:$0xff]
    %v1353 = vld [vmem:[%s5 + $0x1b0] sm:$0xff]
    %v1354 = vld [vmem:[%s5 + $0x1b8] sm:$0xff]
    %v1355 = vld [vmem:[%s5 + $0x1c0] sm:$0xff]
    %v1356 = vld [vmem:[%s5 + $0x1c8] sm:$0xff]
    %v1357 = vld [vmem:[%s5 + $0x1d0] sm:$0xff]
    %v1358 = vld [vmem:[%s5 + $0x1d8] sm:$0xff]
    %v1359 = vld [vmem:[%s5 + $0x1e0] sm:$0xff]
    %v1360 = vld [vmem:[%s5 + $0x1e8] sm:$0xff]
    %v1361 = vld [vmem:[%s5 + $0x1f0] sm:$0xff]
    %v1362 = vld [vmem:[%s5 + $0x1f8] sm:$0xff]
    %v1363 = vld [vmem:[%s6] sm:$0xf]
    %v1365 = vperm.slane %v1363, 0
    %v1366 = vperm.slane %v1363, 1
    %v1367 = vperm.slane %v1363, 2
    %v1368 = vperm.slane %v1363, 3
    %v1437 = vunpack.c.l.b16 %v1299
    %v1438 = vunpack.c.h.b16 %v1299
    %v1439 = vunpack.c.l.b16 %v1300
    %v1440 = vunpack.c.h.b16 %v1300
    %v1441 = vunpack.c.l.b16 %v1301
    %v1442 = vunpack.c.h.b16 %v1301
    %v1443 = vunpack.c.l.b16 %v1302
    %v1444 = vunpack.c.h.b16 %v1302
    %v1445 = vunpack.c.l.b16 %v1303
    %v1446 = vunpack.c.h.b16 %v1303
    %v1447 = vunpack.c.l.b16 %v1304
    %v1448 = vunpack.c.h.b16 %v1304
    %v1449 = vunpack.c.l.b16 %v1305
    %v1450 = vunpack.c.h.b16 %v1305
    %v1451 = vunpack.c.l.b16 %v1306
    %v1452 = vunpack.c.h.b16 %v1306
    %v1453 = vunpack.c.l.b16 %v1307
    %v1454 = vunpack.c.h.b16 %v1307
    %v1455 = vunpack.c.l.b16 %v1308
    %v1456 = vunpack.c.h.b16 %v1308
    %v1457 = vunpack.c.l.b16 %v1309
    %v1458 = vunpack.c.h.b16 %v1309
    %v1459 = vunpack.c.l.b16 %v1310
    %v1460 = vunpack.c.h.b16 %v1310
    %v1461 = vunpack.c.l.b16 %v1311
    %v1462 = vunpack.c.h.b16 %v1311
    %v1463 = vunpack.c.l.b16 %v1312
    %v1464 = vunpack.c.h.b16 %v1312
    %v1465 = vunpack.c.l.b16 %v1313
    %v1466 = vunpack.c.h.b16 %v1313
    %v1467 = vunpack.c.l.b16 %v1314
    %v1468 = vunpack.c.h.b16 %v1314
    %v1469 = vunpack.c.l.b16 %v1315
    %v1470 = vunpack.c.h.b16 %v1315
    %v1471 = vunpack.c.l.b16 %v1316
    %v1472 = vunpack.c.h.b16 %v1316
    %v1473 = vunpack.c.l.b16 %v1317
    %v1474 = vunpack.c.h.b16 %v1317
    %v1475 = vunpack.c.l.b16 %v1318
    %v1476 = vunpack.c.h.b16 %v1318
    %v1477 = vunpack.c.l.b16 %v1319
    %v1478 = vunpack.c.h.b16 %v1319
    %v1479 = vunpack.c.l.b16 %v1320
    %v1480 = vunpack.c.h.b16 %v1320
    %v1481 = vunpack.c.l.b16 %v1321
    %v1482 = vunpack.c.h.b16 %v1321
    %v1483 = vunpack.c.l.b16 %v1322
    %v1484 = vunpack.c.h.b16 %v1322
    %v1485 = vunpack.c.l.b16 %v1323
    %v1486 = vunpack.c.h.b16 %v1323
    %v1487 = vunpack.c.l.b16 %v1324
    %v1488 = vunpack.c.h.b16 %v1324
    %v1489 = vunpack.c.l.b16 %v1325
    %v1490 = vunpack.c.h.b16 %v1325
    %v1491 = vunpack.c.l.b16 %v1326
    %v1492 = vunpack.c.h.b16 %v1326
    %v1493 = vunpack.c.l.b16 %v1327
    %v1494 = vunpack.c.h.b16 %v1327
    %v1495 = vunpack.c.l.b16 %v1328
    %v1496 = vunpack.c.h.b16 %v1328
    %v1497 = vunpack.c.l.b16 %v1329
    %v1498 = vunpack.c.h.b16 %v1329
    %v1499 = vunpack.c.l.b16 %v1330
    %v1500 = vunpack.c.h.b16 %v1330
    %v1501 = vunpack.c.l.b16 %v1331
    %v1502 = vunpack.c.h.b16 %v1331
    %v1503 = vunpack.c.l.b16 %v1332
    %v1504 = vunpack.c.h.b16 %v1332
    %v1505 = vunpack.c.l.b16 %v1333
    %v1506 = vunpack.c.h.b16 %v1333
    %v1507 = vunpack.c.l.b16 %v1334
    %v1508 = vunpack.c.h.b16 %v1334
    %v1509 = vunpack.c.l.b16 %v1335
    %v1510 = vunpack.c.h.b16 %v1335
    %v1511 = vunpack.c.l.b16 %v1336
    %v1512 = vunpack.c.h.b16 %v1336
    %v1513 = vunpack.c.l.b16 %v1337
    %v1514 = vunpack.c.h.b16 %v1337
    %v1515 = vunpack.c.l.b16 %v1338
    %v1516 = vunpack.c.h.b16 %v1338
    %v1517 = vunpack.c.l.b16 %v1339
    %v1518 = vunpack.c.h.b16 %v1339
    %v1519 = vunpack.c.l.b16 %v1340
    %v1520 = vunpack.c.h.b16 %v1340
    %v1521 = vunpack.c.l.b16 %v1341
    %v1522 = vunpack.c.h.b16 %v1341
    %v1523 = vunpack.c.l.b16 %v1342
    %v1524 = vunpack.c.h.b16 %v1342
    %v1525 = vunpack.c.l.b16 %v1343
    %v1526 = vunpack.c.h.b16 %v1343
    %v1527 = vunpack.c.l.b16 %v1344
    %v1528 = vunpack.c.h.b16 %v1344
    %v1529 = vunpack.c.l.b16 %v1345
    %v1530 = vunpack.c.h.b16 %v1345
    %v1531 = vunpack.c.l.b16 %v1346
    %v1532 = vunpack.c.h.b16 %v1346
    %v1533 = vunpack.c.l.b16 %v1347
    %v1534 = vunpack.c.h.b16 %v1347
    %v1535 = vunpack.c.l.b16 %v1348
    %v1536 = vunpack.c.h.b16 %v1348
    %v1537 = vunpack.c.l.b16 %v1349
    %v1538 = vunpack.c.h.b16 %v1349
    %v1539 = vunpack.c.l.b16 %v1350
    %v1540 = vunpack.c.h.b16 %v1350
    %v1541 = vunpack.c.l.b16 %v1351
    %v1542 = vunpack.c.h.b16 %v1351
    %v1543 = vunpack.c.l.b16 %v1352
    %v1544 = vunpack.c.h.b16 %v1352
    %v1545 = vunpack.c.l.b16 %v1353
    %v1546 = vunpack.c.h.b16 %v1353
    %v1547 = vunpack.c.l.b16 %v1354
    %v1548 = vunpack.c.h.b16 %v1354
    %v1549 = vunpack.c.l.b16 %v1355
    %v1550 = vunpack.c.h.b16 %v1355
    %v1551 = vunpack.c.l.b16 %v1356
    %v1552 = vunpack.c.h.b16 %v1356
    %v1553 = vunpack.c.l.b16 %v1357
    %v1554 = vunpack.c.h.b16 %v1357
    %v1555 = vunpack.c.l.b16 %v1358
    %v1556 = vunpack.c.h.b16 %v1358
    %v1557 = vunpack.c.l.b16 %v1359
    %v1558 = vunpack.c.h.b16 %v1359
    %v1559 = vunpack.c.l.b16 %v1360
    %v1560 = vunpack.c.h.b16 %v1360
    %v1561 = vunpack.c.l.b16 %v1361
    %v1562 = vunpack.c.h.b16 %v1361
    %v1563 = vunpack.c.l.b16 %v1362
    %v1564 = vunpack.c.h.b16 %v1362
    %v1565 = vpack.c.b16 %v1441, %v1437
    %v1566 = vpack.c.b16 %v1442, %v1438
    %v1567 = vpack.c.b16 %v1443, %v1439
    %v1568 = vpack.c.b16 %v1444, %v1440
    %v1569 = vpack.c.b16 %v1449, %v1445
    %v1570 = vpack.c.b16 %v1450, %v1446
    %v1571 = vpack.c.b16 %v1451, %v1447
    %v1572 = vpack.c.b16 %v1452, %v1448
    %v1573 = vpack.c.b16 %v1457, %v1453
    %v1574 = vpack.c.b16 %v1458, %v1454
    %v1575 = vpack.c.b16 %v1459, %v1455
    %v1576 = vpack.c.b16 %v1460, %v1456
    %v1577 = vpack.c.b16 %v1465, %v1461
    %v1578 = vpack.c.b16 %v1466, %v1462
    %v1579 = vpack.c.b16 %v1467, %v1463
    %v1580 = vpack.c.b16 %v1468, %v1464
    %v1581 = vpack.c.b16 %v1473, %v1469
    %v1582 = vpack.c.b16 %v1474, %v1470
    %v1583 = vpack.c.b16 %v1475, %v1471
    %v1584 = vpack.c.b16 %v1476, %v1472
    %v1585 = vpack.c.b16 %v1481, %v1477
    %v1586 = vpack.c.b16 %v1482, %v1478
    %v1587 = vpack.c.b16 %v1483, %v1479
    %v1588 = vpack.c.b16 %v1484, %v1480
    %v1589 = vpack.c.b16 %v1489, %v1485
    %v1590 = vpack.c.b16 %v1490, %v1486
    %v1591 = vpack.c.b16 %v1491, %v1487
    %v1592 = vpack.c.b16 %v1492, %v1488
    %v1593 = vpack.c.b16 %v1497, %v1493
    %v1594 = vpack.c.b16 %v1498, %v1494
    %v1595 = vpack.c.b16 %v1499, %v1495
    %v1596 = vpack.c.b16 %v1500, %v1496
    %v1597 = vpack.c.b16 %v1505, %v1501
    %v1598 = vpack.c.b16 %v1506, %v1502
    %v1599 = vpack.c.b16 %v1507, %v1503
    %v1600 = vpack.c.b16 %v1508, %v1504
    %v1601 = vpack.c.b16 %v1513, %v1509
    %v1602 = vpack.c.b16 %v1514, %v1510
    %v1603 = vpack.c.b16 %v1515, %v1511
    %v1604 = vpack.c.b16 %v1516, %v1512
    %v1605 = vpack.c.b16 %v1521, %v1517
    %v1606 = vpack.c.b16 %v1522, %v1518
    %v1607 = vpack.c.b16 %v1523, %v1519
    %v1608 = vpack.c.b16 %v1524, %v1520
    %v1609 = vpack.c.b16 %v1529, %v1525
    %v1610 = vpack.c.b16 %v1530, %v1526
    %v1611 = vpack.c.b16 %v1531, %v1527
    %v1612 = vpack.c.b16 %v1532, %v1528
    %v1613 = vpack.c.b16 %v1537, %v1533
    %v1614 = vpack.c.b16 %v1538, %v1534
    %v1615 = vpack.c.b16 %v1539, %v1535
    %v1616 = vpack.c.b16 %v1540, %v1536
    %v1617 = vpack.c.b16 %v1545, %v1541
    %v1618 = vpack.c.b16 %v1546, %v1542
    %v1619 = vpack.c.b16 %v1547, %v1543
    %v1620 = vpack.c.b16 %v1548, %v1544
    %v1621 = vpack.c.b16 %v1553, %v1549
    %v1622 = vpack.c.b16 %v1554, %v1550
    %v1623 = vpack.c.b16 %v1555, %v1551
    %v1624 = vpack.c.b16 %v1556, %v1552
    %v1625 = vpack.c.b16 %v1561, %v1557
    %v1626 = vpack.c.b16 %v1562, %v1558
    %v1627 = vpack.c.b16 %v1563, %v1559
    %v1628 = vpack.c.b16 %v1564, %v1560
    %1693 = vmatpush.bf16.msra.mxu0 %v1593
    %1694 = vmatpush.bf16.msra.mxu0 %v1589
    %1695 = vmatpush.bf16.msra.mxu0 %v1585
    %1696 = vmatpush.bf16.msra.mxu0 %v1581
    %1697 = vmatpush.bf16.msra.mxu0 %v1577
    %1698 = vmatpush.bf16.msra.mxu0 %v1573
    %1699 = vmatpush.bf16.msra.mxu0 %v1569
    %1700 = vmatpush.bf16.msra.mxu0 %v1565
    %1701 = vmatmul.bf16.gmra.mxu0 %v1297
    %v1702 = vpop.f32.mrf.mxu0
    %v1703 = vadd.f32 %v1365, %v1702
    %v1704 = vpop.f32.mrf.mxu0
    %1705 = vdwg.mxu0
    %1706 = vmatpush.bf16.msra.mxu0 %v1625
    %1707 = vmatpush.bf16.msra.mxu0 %v1621
    %1708 = vmatpush.bf16.msra.mxu0 %v1617
    %1709 = vmatpush.bf16.msra.mxu0 %v1613
    %1710 = vmatpush.bf16.msra.mxu0 %v1609
    %1711 = vmatpush.bf16.msra.mxu0 %v1605
    %1712 = vmatpush.bf16.msra.mxu0 %v1601
    %1713 = vmatpush.bf16.msra.mxu0 %v1597
    %1714 = vmatmul.bf16.gmra.mxu0 %v1298
    %v1715 = vpop.f32.mrf.mxu0
    %v1716 = vadd.f32 %v1703, %v1715
    %v1717 = vpop.f32.mrf.mxu0
    %1718 = vdwg.mxu0
    %1719 = vmatpush.bf16.msra.mxu0 %v1594
    %1720 = vmatpush.bf16.msra.mxu0 %v1590
    %1721 = vmatpush.bf16.msra.mxu0 %v1586
    %1722 = vmatpush.bf16.msra.mxu0 %v1582
    %1723 = vmatpush.bf16.msra.mxu0 %v1578
    %1724 = vmatpush.bf16.msra.mxu0 %v1574
    %1725 = vmatpush.bf16.msra.mxu0 %v1570
    %1726 = vmatpush.bf16.msra.mxu0 %v1566
    %1727 = vmatmul.bf16.gmra.mxu0 %v1297
    %v1728 = vpop.f32.mrf.mxu0
    %v1729 = vadd.f32 %v1366, %v1728
    %v1730 = vpop.f32.mrf.mxu0
    %1731 = vdwg.mxu0
    %1732 = vmatpush.bf16.msra.mxu0 %v1626
    %1733 = vmatpush.bf16.msra.mxu0 %v1622
    %1734 = vmatpush.bf16.msra.mxu0 %v1618
    %1735 = vmatpush.bf16.msra.mxu0 %v1614
    %1736 = vmatpush.bf16.msra.mxu0 %v1610
    %1737 = vmatpush.bf16.msra.mxu0 %v1606
    %1738 = vmatpush.bf16.msra.mxu0 %v1602
    %1739 = vmatpush.bf16.msra.mxu0 %v1598
    %1740 = vmatmul.bf16.gmra.mxu0 %v1298
    %v1741 = vpop.f32.mrf.mxu0
    %v1742 = vadd.f32 %v1729, %v1741
    %v1743 = vpop.f32.mrf.mxu0
    %1744 = vdwg.mxu0
    %1745 = vmatpush.bf16.msra.mxu0 %v1595
    %1746 = vmatpush.bf16.msra.mxu0 %v1591
    %1747 = vmatpush.bf16.msra.mxu0 %v1587
    %1748 = vmatpush.bf16.msra.mxu0 %v1583
    %1749 = vmatpush.bf16.msra.mxu0 %v1579
    %1750 = vmatpush.bf16.msra.mxu0 %v1575
    %1751 = vmatpush.bf16.msra.mxu0 %v1571
    %1752 = vmatpush.bf16.msra.mxu0 %v1567
    %1753 = vmatmul.bf16.gmra.mxu0 %v1297
    %v1754 = vpop.f32.mrf.mxu0
    %v1755 = vadd.f32 %v1367, %v1754
    %v1756 = vpop.f32.mrf.mxu0
    %1757 = vdwg.mxu0
    %1758 = vmatpush.bf16.msra.mxu0 %v1627
    %1759 = vmatpush.bf16.msra.mxu0 %v1623
    %1760 = vmatpush.bf16.msra.mxu0 %v1619
    %1761 = vmatpush.bf16.msra.mxu0 %v1615
    %1762 = vmatpush.bf16.msra.mxu0 %v1611
    %1763 = vmatpush.bf16.msra.mxu0 %v1607
    %1764 = vmatpush.bf16.msra.mxu0 %v1603
    %1765 = vmatpush.bf16.msra.mxu0 %v1599
    %1766 = vmatmul.bf16.gmra.mxu0 %v1298
    %v1767 = vpop.f32.mrf.mxu0
    %v1768 = vadd.f32 %v1755, %v1767
    %v1769 = vpop.f32.mrf.mxu0
    %1770 = vdwg.mxu0
    %1771 = vmatpush.bf16.msra.mxu0 %v1596
    %1772 = vmatpush.bf16.msra.mxu0 %v1592
    %1773 = vmatpush.bf16.msra.mxu0 %v1588
    %1774 = vmatpush.bf16.msra.mxu0 %v1584
    %1775 = vmatpush.bf16.msra.mxu0 %v1580
    %1776 = vmatpush.bf16.msra.mxu0 %v1576
    %1777 = vmatpush.bf16.msra.mxu0 %v1572
    %1778 = vmatpush.bf16.msra.mxu0 %v1568
    %1779 = vmatmul.bf16.gmra.mxu0 %v1297
    %v1780 = vpop.f32.mrf.mxu0
    %v1781 = vadd.f32 %v1368, %v1780
    %v1782 = vpop.f32.mrf.mxu0
    %1783 = vdwg.mxu0
    %1784 = vmatpush.bf16.msra.mxu0 %v1628
    %1785 = vmatpush.bf16.msra.mxu0 %v1624
    %1786 = vmatpush.bf16.msra.mxu0 %v1620
    %1787 = vmatpush.bf16.msra.mxu0 %v1616
    %1788 = vmatpush.bf16.msra.mxu0 %v1612
    %1789 = vmatpush.bf16.msra.mxu0 %v1608
    %1790 = vmatpush.bf16.msra.mxu0 %v1604
    %1791 = vmatpush.bf16.msra.mxu0 %v1600
    %1792 = vmatmul.bf16.gmra.mxu0 %v1298
    %v1793 = vpop.f32.mrf.mxu0
    %v1794 = vadd.f32 %v1781, %v1793
    %v1795 = vpop.f32.mrf.mxu0
    %1796 = vdwg.mxu0
    %v1797 = vpack.c.bf16 %v1716, %v1716
    %v1798 = vpack.c.bf16 %v1742, %v1742
    %v1799 = vpack.c.bf16 %v1768, %v1768
    %v1800 = vpack.c.bf16 %v1794, %v1794
    %v1801 = vunpack.c.l.bf16 %v1797
    %v1802 = vunpack.c.l.bf16 %v1798
    %v1803 = vunpack.c.l.bf16 %v1799
    %v1804 = vunpack.c.l.bf16 %v1800
    %v1805 = vtanh.pop %v1801
    %v1806 = vtanh.pop %v1802
    %v1807 = vtanh.pop %v1803
    %v1808 = vtanh.pop %v1804
    %v1809 = vpack.c.bf16 %v1805, %v1805
    %v1810 = vpack.c.bf16 %v1806, %v1806
    %v1811 = vpack.c.bf16 %v1807, %v1807
    %v1812 = vpack.c.bf16 %v1808, %v1808
    %v1813 = vld [vmem:[%s7] sm:$0xf]
    %v1814 = vld [vmem:[%s7 + $0x4] sm:$0xf]
    %v1815 = vld [vmem:[%s7 + $0x8] sm:$0xf]
    %v1816 = vld [vmem:[%s7 + $0xc] sm:$0xf]
    %v1817 = vld [vmem:[%s7 + $0x10] sm:$0xf]
    %v1818 = vld [vmem:[%s7 + $0x14] sm:$0xf]
    %v1819 = vld [vmem:[%s7 + $0x18] sm:$0xf]
    %v1820 = vld [vmem:[%s7 + $0x1c] sm:$0xf]
    %v1821 = vld [vmem:[%s7 + $0x20] sm:$0xf]
    %v1822 = vld [vmem:[%s7 + $0x24] sm:$0xf]
    %v1823 = vld [vmem:[%s7 + $0x28] sm:$0xf]
    %v1824 = vld [vmem:[%s7 + $0x2c] sm:$0xf]
    %v1825 = vld [vmem:[%s7 + $0x30] sm:$0xf]
    %v1826 = vld [vmem:[%s7 + $0x34] sm:$0xf]
    %v1827 = vld [vmem:[%s7 + $0x38] sm:$0xf]
    %v1828 = vld [vmem:[%s7 + $0x3c] sm:$0xf]
    %v1829 = vld [vmem:[%s7 + $0x40] sm:$0xf]
    %v1830 = vld [vmem:[%s7 + $0x44] sm:$0xf]
    %v1831 = vld [vmem:[%s7 + $0x48] sm:$0xf]
    %v1832 = vld [vmem:[%s7 + $0x4c] sm:$0xf]
    %v1833 = vld [vmem:[%s7 + $0x50] sm:$0xf]
    %v1834 = vld [vmem:[%s7 + $0x54] sm:$0xf]
    %v1835 = vld [vmem:[%s7 + $0x58] sm:$0xf]
    %v1836 = vld [vmem:[%s7 + $0x5c] sm:$0xf]
    %v1837 = vld [vmem:[%s7 + $0x60] sm:$0xf]
    %v1838 = vld [vmem:[%s7 + $0x64] sm:$0xf]
    %v1839 = vld [vmem:[%s7 + $0x68] sm:$0xf]
    %v1840 = vld [vmem:[%s7 + $0x6c] sm:$0xf]
    %v1841 = vld [vmem:[%s7 + $0x70] sm:$0xf]
    %v1842 = vld [vmem:[%s7 + $0x74] sm:$0xf]
    %v1843 = vld [vmem:[%s7 + $0x78] sm:$0xf]
    %v1844 = vld [vmem:[%s7 + $0x7c] sm:$0xf]
    %v1845 = vld [vmem:[%s7 + $0x80] sm:$0xf]
    %v1846 = vld [vmem:[%s7 + $0x84] sm:$0xf]
    %v1847 = vld [vmem:[%s7 + $0x88] sm:$0xf]
    %v1848 = vld [vmem:[%s7 + $0x8c] sm:$0xf]
    %v1849 = vld [vmem:[%s7 + $0x90] sm:$0xf]
    %v1850 = vld [vmem:[%s7 + $0x94] sm:$0xf]
    %v1851 = vld [vmem:[%s7 + $0x98] sm:$0xf]
    %v1852 = vld [vmem:[%s7 + $0x9c] sm:$0xf]
    %v1853 = vld [vmem:[%s7 + $0xa0] sm:$0xf]
    %v1854 = vld [vmem:[%s7 + $0xa4] sm:$0xf]
    %v1855 = vld [vmem:[%s7 + $0xa8] sm:$0xf]
    %v1856 = vld [vmem:[%s7 + $0xac] sm:$0xf]
    %v1857 = vld [vmem:[%s7 + $0xb0] sm:$0xf]
    %v1858 = vld [vmem:[%s7 + $0xb4] sm:$0xf]
    %v1859 = vld [vmem:[%s7 + $0xb8] sm:$0xf]
    %v1860 = vld [vmem:[%s7 + $0xbc] sm:$0xf]
    %v1861 = vld [vmem:[%s7 + $0xc0] sm:$0xf]
    %v1862 = vld [vmem:[%s7 + $0xc4] sm:$0xf]
    %v1863 = vld [vmem:[%s7 + $0xc8] sm:$0xf]
    %v1864 = vld [vmem:[%s7 + $0xcc] sm:$0xf]
    %v1865 = vld [vmem:[%s7 + $0xd0] sm:$0xf]
    %v1866 = vld [vmem:[%s7 + $0xd4] sm:$0xf]
    %v1867 = vld [vmem:[%s7 + $0xd8] sm:$0xf]
    %v1868 = vld [vmem:[%s7 + $0xdc] sm:$0xf]
    %v1869 = vld [vmem:[%s7 + $0xe0] sm:$0xf]
    %v1870 = vld [vmem:[%s7 + $0xe4] sm:$0xf]
    %v1871 = vld [vmem:[%s7 + $0xe8] sm:$0xf]
    %v1872 = vld [vmem:[%s7 + $0xec] sm:$0xf]
    %v1873 = vld [vmem:[%s7 + $0xf0] sm:$0xf]
    %v1874 = vld [vmem:[%s7 + $0xf4] sm:$0xf]
    %v1875 = vld [vmem:[%s7 + $0xf8] sm:$0xf]
    %v1876 = vld [vmem:[%s7 + $0xfc] sm:$0xf]
    %v1877 = vld [vmem:[%s8] sm:$0x1]
    %v1879 = vperm.slane %v1877, 0
    %v1945 = vunpack.c.l.b16 %v1813
    %v1946 = vunpack.c.l.b16 %v1814
    %v1947 = vunpack.c.l.b16 %v1815
    %v1948 = vunpack.c.l.b16 %v1816
    %v1949 = vunpack.c.l.b16 %v1817
    %v1950 = vunpack.c.l.b16 %v1818
    %v1951 = vunpack.c.l.b16 %v1819
    %v1952 = vunpack.c.l.b16 %v1820
    %v1953 = vunpack.c.l.b16 %v1821
    %v1954 = vunpack.c.l.b16 %v1822
    %v1955 = vunpack.c.l.b16 %v1823
    %v1956 = vunpack.c.l.b16 %v1824
    %v1957 = vunpack.c.l.b16 %v1825
    %v1958 = vunpack.c.l.b16 %v1826
    %v1959 = vunpack.c.l.b16 %v1827
    %v1960 = vunpack.c.l.b16 %v1828
    %v1961 = vunpack.c.l.b16 %v1829
    %v1962 = vunpack.c.l.b16 %v1830
    %v1963 = vunpack.c.l.b16 %v1831
    %v1964 = vunpack.c.l.b16 %v1832
    %v1965 = vunpack.c.l.b16 %v1833
    %v1966 = vunpack.c.l.b16 %v1834
    %v1967 = vunpack.c.l.b16 %v1835
    %v1968 = vunpack.c.l.b16 %v1836
    %v1969 = vunpack.c.l.b16 %v1837
    %v1970 = vunpack.c.l.b16 %v1838
    %v1971 = vunpack.c.l.b16 %v1839
    %v1972 = vunpack.c.l.b16 %v1840
    %v1973 = vunpack.c.l.b16 %v1841
    %v1974 = vunpack.c.l.b16 %v1842
    %v1975 = vunpack.c.l.b16 %v1843
    %v1976 = vunpack.c.l.b16 %v1844
    %v1977 = vunpack.c.l.b16 %v1845
    %v1978 = vunpack.c.l.b16 %v1846
    %v1979 = vunpack.c.l.b16 %v1847
    %v1980 = vunpack.c.l.b16 %v1848
    %v1981 = vunpack.c.l.b16 %v1849
    %v1982 = vunpack.c.l.b16 %v1850
    %v1983 = vunpack.c.l.b16 %v1851
    %v1984 = vunpack.c.l.b16 %v1852
    %v1985 = vunpack.c.l.b16 %v1853
    %v1986 = vunpack.c.l.b16 %v1854
    %v1987 = vunpack.c.l.b16 %v1855
    %v1988 = vunpack.c.l.b16 %v1856
    %v1989 = vunpack.c.l.b16 %v1857
    %v1990 = vunpack.c.l.b16 %v1858
    %v1991 = vunpack.c.l.b16 %v1859
    %v1992 = vunpack.c.l.b16 %v1860
    %v1993 = vunpack.c.l.b16 %v1861
    %v1994 = vunpack.c.l.b16 %v1862
    %v1995 = vunpack.c.l.b16 %v1863
    %v1996 = vunpack.c.l.b16 %v1864
    %v1997 = vunpack.c.l.b16 %v1865
    %v1998 = vunpack.c.l.b16 %v1866
    %v1999 = vunpack.c.l.b16 %v1867
    %v2000 = vunpack.c.l.b16 %v1868
    %v2001 = vunpack.c.l.b16 %v1869
    %v2002 = vunpack.c.l.b16 %v1870
    %v2003 = vunpack.c.l.b16 %v1871
    %v2004 = vunpack.c.l.b16 %v1872
    %v2005 = vunpack.c.l.b16 %v1873
    %v2006 = vunpack.c.l.b16 %v1874
    %v2007 = vunpack.c.l.b16 %v1875
    %v2008 = vunpack.c.l.b16 %v1876
    %v2009 = vpack.c.b16 %v1946, %v1945
    %v2010 = vpack.c.b16 %v1948, %v1947
    %v2011 = vpack.c.b16 %v1950, %v1949
    %v2012 = vpack.c.b16 %v1952, %v1951
    %v2013 = vpack.c.b16 %v1954, %v1953
    %v2014 = vpack.c.b16 %v1956, %v1955
    %v2015 = vpack.c.b16 %v1958, %v1957
    %v2016 = vpack.c.b16 %v1960, %v1959
    %v2017 = vpack.c.b16 %v1962, %v1961
    %v2018 = vpack.c.b16 %v1964, %v1963
    %v2019 = vpack.c.b16 %v1966, %v1965
    %v2020 = vpack.c.b16 %v1968, %v1967
    %v2021 = vpack.c.b16 %v1970, %v1969
    %v2022 = vpack.c.b16 %v1972, %v1971
    %v2023 = vpack.c.b16 %v1974, %v1973
    %v2024 = vpack.c.b16 %v1976, %v1975
    %v2025 = vpack.c.b16 %v1978, %v1977
    %v2026 = vpack.c.b16 %v1980, %v1979
    %v2027 = vpack.c.b16 %v1982, %v1981
    %v2028 = vpack.c.b16 %v1984, %v1983
    %v2029 = vpack.c.b16 %v1986, %v1985
    %v2030 = vpack.c.b16 %v1988, %v1987
    %v2031 = vpack.c.b16 %v1990, %v1989
    %v2032 = vpack.c.b16 %v1992, %v1991
    %v2033 = vpack.c.b16 %v1994, %v1993
    %v2034 = vpack.c.b16 %v1996, %v1995
    %v2035 = vpack.c.b16 %v1998, %v1997
    %v2036 = vpack.c.b16 %v2000, %v1999
    %v2037 = vpack.c.b16 %v2002, %v2001
    %v2038 = vpack.c.b16 %v2004, %v2003
    %v2039 = vpack.c.b16 %v2006, %v2005
    %v2040 = vpack.c.b16 %v2008, %v2007
    %2073 = vmatpush.bf16.msra.mxu0 %v2016
    %2074 = vmatpush.bf16.msra.mxu0 %v2015
    %2075 = vmatpush.bf16.msra.mxu0 %v2014
    %2076 = vmatpush.bf16.msra.mxu0 %v2013
    %2077 = vmatpush.bf16.msra.mxu0 %v2012
    %2078 = vmatpush.bf16.msra.mxu0 %v2011
    %2079 = vmatpush.bf16.msra.mxu0 %v2010
    %2080 = vmatpush.bf16.msra.mxu0 %v2009
    %2081 = vmatmul.bf16.gmra.mxu0 %v1809
    %v2082 = vpop.f32.mrf.mxu0
    %v2083 = vadd.f32 %v1879, %v2082
    %v2084 = vpop.f32.mrf.mxu0
    %2085 = vdwg.mxu0
    %2086 = vmatpush.bf16.msra.mxu0 %v2024
    %2087 = vmatpush.bf16.msra.mxu0 %v2023
    %2088 = vmatpush.bf16.msra.mxu0 %v2022
    %2089 = vmatpush.bf16.msra.mxu0 %v2021
    %2090 = vmatpush.bf16.msra.mxu0 %v2020
    %2091 = vmatpush.bf16.msra.mxu0 %v2019
    %2092 = vmatpush.bf16.msra.mxu0 %v2018
    %2093 = vmatpush.bf16.msra.mxu0 %v2017
    %2094 = vmatmul.bf16.gmra.mxu0 %v1810
    %v2095 = vpop.f32.mrf.mxu0
    %v2096 = vadd.f32 %v2083, %v2095
    %v2097 = vpop.f32.mrf.mxu0
    %2098 = vdwg.mxu0
    %2099 = vmatpush.bf16.msra.mxu0 %v2032
    %2100 = vmatpush.bf16.msra.mxu0 %v2031
    %2101 = vmatpush.bf16.msra.mxu0 %v2030
    %2102 = vmatpush.bf16.msra.mxu0 %v2029
    %2103 = vmatpush.bf16.msra.mxu0 %v2028
    %2104 = vmatpush.bf16.msra.mxu0 %v2027
    %2105 = vmatpush.bf16.msra.mxu0 %v2026
    %2106 = vmatpush.bf16.msra.mxu0 %v2025
    %2107 = vmatmul.bf16.gmra.mxu0 %v1811
    %v2108 = vpop.f32.mrf.mxu0
    %v2109 = vadd.f32 %v2096, %v2108
    %v2110 = vpop.f32.mrf.mxu0
    %2111 = vdwg.mxu0
    %2112 = vmatpush.bf16.msra.mxu0 %v2040
    %2113 = vmatpush.bf16.msra.mxu0 %v2039
    %2114 = vmatpush.bf16.msra.mxu0 %v2038
    %2115 = vmatpush.bf16.msra.mxu0 %v2037
    %2116 = vmatpush.bf16.msra.mxu0 %v2036
    %2117 = vmatpush.bf16.msra.mxu0 %v2035
    %2118 = vmatpush.bf16.msra.mxu0 %v2034
    %2119 = vmatpush.bf16.msra.mxu0 %v2033
    %2120 = vmatmul.bf16.gmra.mxu0 %v1812
    %v2121 = vpop.f32.mrf.mxu0
    %v2122 = vadd.f32 %v2109, %v2121
    %v2123 = vpop.f32.mrf.mxu0
    %2124 = vdwg.mxu0
    %v2125 = vpack.c.bf16 %v2122, %v2122
    %v2126 = vunpack.c.l.bf16 %v2125
    %v2127 = vtanh.pop %v2126
    %v2128 = vpack.c.bf16 %v2127, %v2127
    %v2129 = vld [vmem:[%s9] sm:$0xf]
    %v2130 = vld [vmem:[%s9 + $0x4] sm:$0xf]
    %v2131 = vld [vmem:[%s9 + $0x8] sm:$0xf]
    %v2132 = vld [vmem:[%s9 + $0xc] sm:$0xf]
    %v2133 = vld [vmem:[%s10] sm:$0x1]
    %v2135 = vperm.slane %v2133, 0
    %v2141 = vunpack.c.l.b16 %v2129
    %v2142 = vunpack.c.l.b16 %v2130
    %v2143 = vunpack.c.l.b16 %v2131
    %v2144 = vunpack.c.l.b16 %v2132
    %v2145 = vpack.c.b16 %v2142, %v2141
    %v2146 = vpack.c.b16 %v2144, %v2143
    %vm2149 = vcmask 261120
    %v2151 = vsel %vm2149, %v2128, 0
    %2153 = vmatpush.bf16.msra.mxu0 0
    %2154 = vmatpush.bf16.msra.mxu0 0
    %2155 = vmatpush.bf16.msra.mxu0 0
    %2156 = vmatpush.bf16.msra.mxu0 0
    %2157 = vmatpush.bf16.msra.mxu0 0
    %2158 = vmatpush.bf16.msra.mxu0 0
    %2159 = vmatpush.bf16.msra.mxu0 %v2146
    %2160 = vmatpush.bf16.msra.mxu0 %v2145
    %2161 = vmatmul.bf16.gmra.mxu0 %v2151
    %v2162 = vpop.f32.mrf.mxu0
    %v2163 = vadd.f32 %v2135, %v2162
    %v2164 = vpop.f32.mrf.mxu0
    %2165 = vdwg.mxu0
    %v2166 = vmul.f32 %v2163, 0.5
    %v2167 = vmul.f32 %v2166, 1.442695
    %v2168 = vpow.pop %v2167
    %2170 = vrot.lane.b32.xlu0 %v2168, 96
    %v2171 = vpop.permute.xlu0 %2170
    %v2173 = vadd.f32 %v2163, %v2171
    %2175 = vrot.lane.b32.xlu0 %v2173, 64
    %v2176 = vpop.permute.xlu0 %2175
    %vm2178 = vcmask 523264
    %v2179 = vsel %vm2178, %v2163, %v2176
    %vm2180 = vcmask 785408
    %v2181 = vsel %vm2180, %v2179, %v2163
    %2182 = vst [vmem:[%s20] sm:$0xff] %v2181
    %v2183 = vpack.c.bf16 %v2173, %v2173
    %v2184 = vld [vmem:[%s11] sm:$0xff]
    %v2185 = vld [vmem:[%s11 + $0x8] sm:$0xff]
    %v2186 = vld [vmem:[%s11 + $0x10] sm:$0xff]
    %v2187 = vld [vmem:[%s11 + $0x18] sm:$0xff]
    %v2188 = vld [vmem:[%s11 + $0x20] sm:$0xff]
    %v2189 = vld [vmem:[%s11 + $0x28] sm:$0xff]
    %v2190 = vld [vmem:[%s11 + $0x30] sm:$0xff]
    %v2191 = vld [vmem:[%s11 + $0x38] sm:$0xff]
    %v2192 = vld [vmem:[%s12] sm:$0xf]
    %v2194 = vperm.slane %v2192, 0
    %v2195 = vperm.slane %v2192, 1
    %v2196 = vperm.slane %v2192, 2
    %v2197 = vperm.slane %v2192, 3
    %v2210 = vunpack.c.l.b16 %v2184
    %v2211 = vunpack.c.h.b16 %v2184
    %v2212 = vunpack.c.l.b16 %v2185
    %v2213 = vunpack.c.h.b16 %v2185
    %v2214 = vunpack.c.l.b16 %v2186
    %v2215 = vunpack.c.h.b16 %v2186
    %v2216 = vunpack.c.l.b16 %v2187
    %v2217 = vunpack.c.h.b16 %v2187
    %v2218 = vunpack.c.l.b16 %v2188
    %v2219 = vunpack.c.h.b16 %v2188
    %v2220 = vunpack.c.l.b16 %v2189
    %v2221 = vunpack.c.h.b16 %v2189
    %v2222 = vunpack.c.l.b16 %v2190
    %v2223 = vunpack.c.h.b16 %v2190
    %v2224 = vunpack.c.l.b16 %v2191
    %v2225 = vunpack.c.h.b16 %v2191
    %v2226 = vpack.c.b16 %v2214, %v2210
    %v2227 = vpack.c.b16 %v2215, %v2211
    %v2228 = vpack.c.b16 %v2216, %v2212
    %v2229 = vpack.c.b16 %v2217, %v2213
    %v2230 = vpack.c.b16 %v2222, %v2218
    %v2231 = vpack.c.b16 %v2223, %v2219
    %v2232 = vpack.c.b16 %v2224, %v2220
    %v2233 = vpack.c.b16 %v2225, %v2221
    %v2243 = vsel %vm2149, %v2183, 0
    %2245 = vmatpush.bf16.msra.mxu0 0
    %2246 = vmatpush.bf16.msra.mxu0 0
    %2247 = vmatpush.bf16.msra.mxu0 0
    %2248 = vmatpush.bf16.msra.mxu0 0
    %2249 = vmatpush.bf16.msra.mxu0 0
    %2250 = vmatpush.bf16.msra.mxu0 0
    %2251 = vmatpush.bf16.msra.mxu0 %v2230
    %2252 = vmatpush.bf16.msra.mxu0 %v2226
    %2253 = vmatmul.bf16.gmra.mxu0 %v2243
    %v2254 = vpop.f32.mrf.mxu0
    %v2255 = vadd.f32 %v2194, %v2254
    %v2256 = vpop.f32.mrf.mxu0
    %2257 = vdwg.mxu0
    %2258 = vmatpush.bf16.msra.mxu0 0
    %2259 = vmatpush.bf16.msra.mxu0 0
    %2260 = vmatpush.bf16.msra.mxu0 0
    %2261 = vmatpush.bf16.msra.mxu0 0
    %2262 = vmatpush.bf16.msra.mxu0 0
    %2263 = vmatpush.bf16.msra.mxu0 0
    %2264 = vmatpush.bf16.msra.mxu0 %v2231
    %2265 = vmatpush.bf16.msra.mxu0 %v2227
    %2266 = vmatmul.bf16.gmra.mxu0 %v2243
    %v2267 = vpop.f32.mrf.mxu0
    %v2268 = vadd.f32 %v2195, %v2267
    %v2269 = vpop.f32.mrf.mxu0
    %2270 = vdwg.mxu0
    %2271 = vmatpush.bf16.msra.mxu0 0
    %2272 = vmatpush.bf16.msra.mxu0 0
    %2273 = vmatpush.bf16.msra.mxu0 0
    %2274 = vmatpush.bf16.msra.mxu0 0
    %2275 = vmatpush.bf16.msra.mxu0 0
    %2276 = vmatpush.bf16.msra.mxu0 0
    %2277 = vmatpush.bf16.msra.mxu0 %v2232
    %2278 = vmatpush.bf16.msra.mxu0 %v2228
    %2279 = vmatmul.bf16.gmra.mxu0 %v2243
    %v2280 = vpop.f32.mrf.mxu0
    %v2281 = vadd.f32 %v2196, %v2280
    %v2282 = vpop.f32.mrf.mxu0
    %2283 = vdwg.mxu0
    %2284 = vmatpush.bf16.msra.mxu0 0
    %2285 = vmatpush.bf16.msra.mxu0 0
    %2286 = vmatpush.bf16.msra.mxu0 0
    %2287 = vmatpush.bf16.msra.mxu0 0
    %2288 = vmatpush.bf16.msra.mxu0 0
    %2289 = vmatpush.bf16.msra.mxu0 0
    %2290 = vmatpush.bf16.msra.mxu0 %v2233
    %2291 = vmatpush.bf16.msra.mxu0 %v2229
    %2292 = vmatmul.bf16.gmra.mxu0 %v2243
    %v2293 = vpop.f32.mrf.mxu0
    %v2294 = vadd.f32 %v2197, %v2293
    %v2295 = vpop.f32.mrf.mxu0
    %2296 = vdwg.mxu0
    %v2297 = vpack.c.bf16 %v2255, %v2255
    %v2298 = vpack.c.bf16 %v2268, %v2268
    %v2299 = vpack.c.bf16 %v2281, %v2281
    %v2300 = vpack.c.bf16 %v2294, %v2294
    %v2301 = vunpack.c.l.bf16 %v2297
    %v2302 = vunpack.c.l.bf16 %v2298
    %v2303 = vunpack.c.l.bf16 %v2299
    %v2304 = vunpack.c.l.bf16 %v2300
    %v2305 = vtanh.pop %v2301
    %v2306 = vtanh.pop %v2302
    %v2307 = vtanh.pop %v2303
    %v2308 = vtanh.pop %v2304
    %v2309 = vpack.c.bf16 %v2305, %v2305
    %v2310 = vpack.c.bf16 %v2306, %v2306
    %v2311 = vpack.c.bf16 %v2307, %v2307
    %v2312 = vpack.c.bf16 %v2308, %v2308
    %v2313 = vld [vmem:[#allocation6] sm:$0xff]
    %v2314 = vld [vmem:[#allocation6 + $0x8] sm:$0xff]
    %v2315 = vld [vmem:[#allocation6 + $0x10] sm:$0xff]
    %v2316 = vld [vmem:[#allocation6 + $0x18] sm:$0xff]
    %v2317 = vld [vmem:[#allocation6 + $0x20] sm:$0xff]
    %v2318 = vld [vmem:[#allocation6 + $0x28] sm:$0xff]
    %v2319 = vld [vmem:[#allocation6 + $0x30] sm:$0xff]
    %v2320 = vld [vmem:[#allocation6 + $0x38] sm:$0xff]
    %v2321 = vld [vmem:[#allocation6 + $0x40] sm:$0xff]
    %v2322 = vld [vmem:[#allocation6 + $0x48] sm:$0xff]
    %v2323 = vld [vmem:[#allocation6 + $0x50] sm:$0xff]
    %v2324 = vld [vmem:[#allocation6 + $0x58] sm:$0xff]
    %v2325 = vld [vmem:[#allocation6 + $0x60] sm:$0xff]
    %v2326 = vld [vmem:[#allocation6 + $0x68] sm:$0xff]
    %v2327 = vld [vmem:[#allocation6 + $0x70] sm:$0xff]
    %v2328 = vld [vmem:[#allocation6 + $0x78] sm:$0xff]
    %v2329 = vld [vmem:[#allocation6 + $0x80] sm:$0xff]
    %v2330 = vld [vmem:[#allocation6 + $0x88] sm:$0xff]
    %v2331 = vld [vmem:[#allocation6 + $0x90] sm:$0xff]
    %v2332 = vld [vmem:[#allocation6 + $0x98] sm:$0xff]
    %v2333 = vld [vmem:[#allocation6 + $0xa0] sm:$0xff]
    %v2334 = vld [vmem:[#allocation6 + $0xa8] sm:$0xff]
    %v2335 = vld [vmem:[#allocation6 + $0xb0] sm:$0xff]
    %v2336 = vld [vmem:[#allocation6 + $0xb8] sm:$0xff]
    %v2337 = vld [vmem:[#allocation6 + $0xc0] sm:$0xff]
    %v2338 = vld [vmem:[#allocation6 + $0xc8] sm:$0xff]
    %v2339 = vld [vmem:[#allocation6 + $0xd0] sm:$0xff]
    %v2340 = vld [vmem:[#allocation6 + $0xd8] sm:$0xff]
    %v2341 = vld [vmem:[#allocation6 + $0xe0] sm:$0xff]
    %v2342 = vld [vmem:[#allocation6 + $0xe8] sm:$0xff]
    %v2343 = vld [vmem:[#allocation6 + $0xf0] sm:$0xff]
    %v2344 = vld [vmem:[#allocation6 + $0xf8] sm:$0xff]
    %v2345 = vld [vmem:[#allocation6 + $0x100] sm:$0xff]
    %v2346 = vld [vmem:[#allocation6 + $0x108] sm:$0xff]
    %v2347 = vld [vmem:[#allocation6 + $0x110] sm:$0xff]
    %v2348 = vld [vmem:[#allocation6 + $0x118] sm:$0xff]
    %v2349 = vld [vmem:[#allocation6 + $0x120] sm:$0xff]
    %v2350 = vld [vmem:[#allocation6 + $0x128] sm:$0xff]
    %v2351 = vld [vmem:[#allocation6 + $0x130] sm:$0xff]
    %v2352 = vld [vmem:[#allocation6 + $0x138] sm:$0xff]
    %v2353 = vld [vmem:[#allocation6 + $0x140] sm:$0xff]
    %v2354 = vld [vmem:[#allocation6 + $0x148] sm:$0xff]
    %v2355 = vld [vmem:[#allocation6 + $0x150] sm:$0xff]
    %v2356 = vld [vmem:[#allocation6 + $0x158] sm:$0xff]
    %v2357 = vld [vmem:[#allocation6 + $0x160] sm:$0xff]
    %v2358 = vld [vmem:[#allocation6 + $0x168] sm:$0xff]
    %v2359 = vld [vmem:[#allocation6 + $0x170] sm:$0xff]
    %v2360 = vld [vmem:[#allocation6 + $0x178] sm:$0xff]
    %v2361 = vld [vmem:[#allocation6 + $0x180] sm:$0xff]
    %v2362 = vld [vmem:[#allocation6 + $0x188] sm:$0xff]
    %v2363 = vld [vmem:[#allocation6 + $0x190] sm:$0xff]
    %v2364 = vld [vmem:[#allocation6 + $0x198] sm:$0xff]
    %v2365 = vld [vmem:[#allocation6 + $0x1a0] sm:$0xff]
    %v2366 = vld [vmem:[#allocation6 + $0x1a8] sm:$0xff]
    %v2367 = vld [vmem:[#allocation6 + $0x1b0] sm:$0xff]
    %v2368 = vld [vmem:[#allocation6 + $0x1b8] sm:$0xff]
    %v2369 = vld [vmem:[#allocation6 + $0x1c0] sm:$0xff]
    %v2370 = vld [vmem:[#allocation6 + $0x1c8] sm:$0xff]
    %v2371 = vld [vmem:[#allocation6 + $0x1d0] sm:$0xff]
    %v2372 = vld [vmem:[#allocation6 + $0x1d8] sm:$0xff]
    %v2373 = vld [vmem:[#allocation6 + $0x1e0] sm:$0xff]
    %v2374 = vld [vmem:[#allocation6 + $0x1e8] sm:$0xff]
    %v2375 = vld [vmem:[#allocation6 + $0x1f0] sm:$0xff]
    %v2376 = vld [vmem:[#allocation6 + $0x1f8] sm:$0xff]
    %v2377 = vld [vmem:[%s14] sm:$0x3]
    %v2379 = vperm.slane %v2377, 0
    %v2380 = vperm.slane %v2377, 1
    %v2447 = vunpack.c.l.b16 %v2313
    %v2448 = vunpack.c.h.b16 %v2313
    %v2449 = vunpack.c.l.b16 %v2314
    %v2450 = vunpack.c.h.b16 %v2314
    %v2451 = vunpack.c.l.b16 %v2315
    %v2452 = vunpack.c.h.b16 %v2315
    %v2453 = vunpack.c.l.b16 %v2316
    %v2454 = vunpack.c.h.b16 %v2316
    %v2455 = vunpack.c.l.b16 %v2317
    %v2456 = vunpack.c.h.b16 %v2317
    %v2457 = vunpack.c.l.b16 %v2318
    %v2458 = vunpack.c.h.b16 %v2318
    %v2459 = vunpack.c.l.b16 %v2319
    %v2460 = vunpack.c.h.b16 %v2319
    %v2461 = vunpack.c.l.b16 %v2320
    %v2462 = vunpack.c.h.b16 %v2320
    %v2463 = vunpack.c.l.b16 %v2321
    %v2464 = vunpack.c.h.b16 %v2321
    %v2465 = vunpack.c.l.b16 %v2322
    %v2466 = vunpack.c.h.b16 %v2322
    %v2467 = vunpack.c.l.b16 %v2323
    %v2468 = vunpack.c.h.b16 %v2323
    %v2469 = vunpack.c.l.b16 %v2324
    %v2470 = vunpack.c.h.b16 %v2324
    %v2471 = vunpack.c.l.b16 %v2325
    %v2472 = vunpack.c.h.b16 %v2325
    %v2473 = vunpack.c.l.b16 %v2326
    %v2474 = vunpack.c.h.b16 %v2326
    %v2475 = vunpack.c.l.b16 %v2327
    %v2476 = vunpack.c.h.b16 %v2327
    %v2477 = vunpack.c.l.b16 %v2328
    %v2478 = vunpack.c.h.b16 %v2328
    %v2479 = vunpack.c.l.b16 %v2329
    %v2480 = vunpack.c.h.b16 %v2329
    %v2481 = vunpack.c.l.b16 %v2330
    %v2482 = vunpack.c.h.b16 %v2330
    %v2483 = vunpack.c.l.b16 %v2331
    %v2484 = vunpack.c.h.b16 %v2331
    %v2485 = vunpack.c.l.b16 %v2332
    %v2486 = vunpack.c.h.b16 %v2332
    %v2487 = vunpack.c.l.b16 %v2333
    %v2488 = vunpack.c.h.b16 %v2333
    %v2489 = vunpack.c.l.b16 %v2334
    %v2490 = vunpack.c.h.b16 %v2334
    %v2491 = vunpack.c.l.b16 %v2335
    %v2492 = vunpack.c.h.b16 %v2335
    %v2493 = vunpack.c.l.b16 %v2336
    %v2494 = vunpack.c.h.b16 %v2336
    %v2495 = vunpack.c.l.b16 %v2337
    %v2496 = vunpack.c.h.b16 %v2337
    %v2497 = vunpack.c.l.b16 %v2338
    %v2498 = vunpack.c.h.b16 %v2338
    %v2499 = vunpack.c.l.b16 %v2339
    %v2500 = vunpack.c.h.b16 %v2339
    %v2501 = vunpack.c.l.b16 %v2340
    %v2502 = vunpack.c.h.b16 %v2340
    %v2503 = vunpack.c.l.b16 %v2341
    %v2504 = vunpack.c.h.b16 %v2341
    %v2505 = vunpack.c.l.b16 %v2342
    %v2506 = vunpack.c.h.b16 %v2342
    %v2507 = vunpack.c.l.b16 %v2343
    %v2508 = vunpack.c.h.b16 %v2343
    %v2509 = vunpack.c.l.b16 %v2344
    %v2510 = vunpack.c.h.b16 %v2344
    %v2511 = vunpack.c.l.b16 %v2345
    %v2512 = vunpack.c.h.b16 %v2345
    %v2513 = vunpack.c.l.b16 %v2346
    %v2514 = vunpack.c.h.b16 %v2346
    %v2515 = vunpack.c.l.b16 %v2347
    %v2516 = vunpack.c.h.b16 %v2347
    %v2517 = vunpack.c.l.b16 %v2348
    %v2518 = vunpack.c.h.b16 %v2348
    %v2519 = vunpack.c.l.b16 %v2349
    %v2520 = vunpack.c.h.b16 %v2349
    %v2521 = vunpack.c.l.b16 %v2350
    %v2522 = vunpack.c.h.b16 %v2350
    %v2523 = vunpack.c.l.b16 %v2351
    %v2524 = vunpack.c.h.b16 %v2351
    %v2525 = vunpack.c.l.b16 %v2352
    %v2526 = vunpack.c.h.b16 %v2352
    %v2527 = vunpack.c.l.b16 %v2353
    %v2528 = vunpack.c.h.b16 %v2353
    %v2529 = vunpack.c.l.b16 %v2354
    %v2530 = vunpack.c.h.b16 %v2354
    %v2531 = vunpack.c.l.b16 %v2355
    %v2532 = vunpack.c.h.b16 %v2355
    %v2533 = vunpack.c.l.b16 %v2356
    %v2534 = vunpack.c.h.b16 %v2356
    %v2535 = vunpack.c.l.b16 %v2357
    %v2536 = vunpack.c.h.b16 %v2357
    %v2537 = vunpack.c.l.b16 %v2358
    %v2538 = vunpack.c.h.b16 %v2358
    %v2539 = vunpack.c.l.b16 %v2359
    %v2540 = vunpack.c.h.b16 %v2359
    %v2541 = vunpack.c.l.b16 %v2360
    %v2542 = vunpack.c.h.b16 %v2360
    %v2543 = vunpack.c.l.b16 %v2361
    %v2544 = vunpack.c.h.b16 %v2361
    %v2545 = vunpack.c.l.b16 %v2362
    %v2546 = vunpack.c.h.b16 %v2362
    %v2547 = vunpack.c.l.b16 %v2363
    %v2548 = vunpack.c.h.b16 %v2363
    %v2549 = vunpack.c.l.b16 %v2364
    %v2550 = vunpack.c.h.b16 %v2364
    %v2551 = vunpack.c.l.b16 %v2365
    %v2552 = vunpack.c.h.b16 %v2365
    %v2553 = vunpack.c.l.b16 %v2366
    %v2554 = vunpack.c.h.b16 %v2366
    %v2555 = vunpack.c.l.b16 %v2367
    %v2556 = vunpack.c.h.b16 %v2367
    %v2557 = vunpack.c.l.b16 %v2368
    %v2558 = vunpack.c.h.b16 %v2368
    %v2559 = vunpack.c.l.b16 %v2369
    %v2560 = vunpack.c.h.b16 %v2369
    %v2561 = vunpack.c.l.b16 %v2370
    %v2562 = vunpack.c.h.b16 %v2370
    %v2563 = vunpack.c.l.b16 %v2371
    %v2564 = vunpack.c.h.b16 %v2371
    %v2565 = vunpack.c.l.b16 %v2372
    %v2566 = vunpack.c.h.b16 %v2372
    %v2567 = vunpack.c.l.b16 %v2373
    %v2568 = vunpack.c.h.b16 %v2373
    %v2569 = vunpack.c.l.b16 %v2374
    %v2570 = vunpack.c.h.b16 %v2374
    %v2571 = vunpack.c.l.b16 %v2375
    %v2572 = vunpack.c.h.b16 %v2375
    %v2573 = vunpack.c.l.b16 %v2376
    %v2574 = vunpack.c.h.b16 %v2376
    %v2575 = vpack.c.b16 %v2449, %v2447
    %v2576 = vpack.c.b16 %v2450, %v2448
    %v2577 = vpack.c.b16 %v2453, %v2451
    %v2578 = vpack.c.b16 %v2454, %v2452
    %v2579 = vpack.c.b16 %v2457, %v2455
    %v2580 = vpack.c.b16 %v2458, %v2456
    %v2581 = vpack.c.b16 %v2461, %v2459
    %v2582 = vpack.c.b16 %v2462, %v2460
    %v2583 = vpack.c.b16 %v2465, %v2463
    %v2584 = vpack.c.b16 %v2466, %v2464
    %v2585 = vpack.c.b16 %v2469, %v2467
    %v2586 = vpack.c.b16 %v2470, %v2468
    %v2587 = vpack.c.b16 %v2473, %v2471
    %v2588 = vpack.c.b16 %v2474, %v2472
    %v2589 = vpack.c.b16 %v2477, %v2475
    %v2590 = vpack.c.b16 %v2478, %v2476
    %v2591 = vpack.c.b16 %v2481, %v2479
    %v2592 = vpack.c.b16 %v2482, %v2480
    %v2593 = vpack.c.b16 %v2485, %v2483
    %v2594 = vpack.c.b16 %v2486, %v2484
    %v2595 = vpack.c.b16 %v2489, %v2487
    %v2596 = vpack.c.b16 %v2490, %v2488
    %v2597 = vpack.c.b16 %v2493, %v2491
    %v2598 = vpack.c.b16 %v2494, %v2492
    %v2599 = vpack.c.b16 %v2497, %v2495
    %v2600 = vpack.c.b16 %v2498, %v2496
    %v2601 = vpack.c.b16 %v2501, %v2499
    %v2602 = vpack.c.b16 %v2502, %v2500
    %v2603 = vpack.c.b16 %v2505, %v2503
    %v2604 = vpack.c.b16 %v2506, %v2504
    %v2605 = vpack.c.b16 %v2509, %v2507
    %v2606 = vpack.c.b16 %v2510, %v2508
    %v2607 = vpack.c.b16 %v2513, %v2511
    %v2608 = vpack.c.b16 %v2514, %v2512
    %v2609 = vpack.c.b16 %v2517, %v2515
    %v2610 = vpack.c.b16 %v2518, %v2516
    %v2611 = vpack.c.b16 %v2521, %v2519
    %v2612 = vpack.c.b16 %v2522, %v2520
    %v2613 = vpack.c.b16 %v2525, %v2523
    %v2614 = vpack.c.b16 %v2526, %v2524
    %v2615 = vpack.c.b16 %v2529, %v2527
    %v2616 = vpack.c.b16 %v2530, %v2528
    %v2617 = vpack.c.b16 %v2533, %v2531
    %v2618 = vpack.c.b16 %v2534, %v2532
    %v2619 = vpack.c.b16 %v2537, %v2535
    %v2620 = vpack.c.b16 %v2538, %v2536
    %v2621 = vpack.c.b16 %v2541, %v2539
    %v2622 = vpack.c.b16 %v2542, %v2540
    %v2623 = vpack.c.b16 %v2545, %v2543
    %v2624 = vpack.c.b16 %v2546, %v2544
    %v2625 = vpack.c.b16 %v2549, %v2547
    %v2626 = vpack.c.b16 %v2550, %v2548
    %v2627 = vpack.c.b16 %v2553, %v2551
    %v2628 = vpack.c.b16 %v2554, %v2552
    %v2629 = vpack.c.b16 %v2557, %v2555
    %v2630 = vpack.c.b16 %v2558, %v2556
    %v2631 = vpack.c.b16 %v2561, %v2559
    %v2632 = vpack.c.b16 %v2562, %v2560
    %v2633 = vpack.c.b16 %v2565, %v2563
    %v2634 = vpack.c.b16 %v2566, %v2564
    %v2635 = vpack.c.b16 %v2569, %v2567
    %v2636 = vpack.c.b16 %v2570, %v2568
    %v2637 = vpack.c.b16 %v2573, %v2571
    %v2638 = vpack.c.b16 %v2574, %v2572
    %2703 = vmatpush.bf16.msra.mxu0 %v2589
    %2704 = vmatpush.bf16.msra.mxu0 %v2587
    %2705 = vmatpush.bf16.msra.mxu0 %v2585
    %2706 = vmatpush.bf16.msra.mxu0 %v2583
    %2707 = vmatpush.bf16.msra.mxu0 %v2581
    %2708 = vmatpush.bf16.msra.mxu0 %v2579
    %2709 = vmatpush.bf16.msra.mxu0 %v2577
    %2710 = vmatpush.bf16.msra.mxu0 %v2575
    %2711 = vmatmul.bf16.gmra.mxu0 %v2309
    %v2712 = vpop.f32.mrf.mxu0
    %v2713 = vadd.f32 %v2379, %v2712
    %v2714 = vpop.f32.mrf.mxu0
    %2715 = vdwg.mxu0
    %2716 = vmatpush.bf16.msra.mxu0 %v2605
    %2717 = vmatpush.bf16.msra.mxu0 %v2603
    %2718 = vmatpush.bf16.msra.mxu0 %v2601
    %2719 = vmatpush.bf16.msra.mxu0 %v2599
    %2720 = vmatpush.bf16.msra.mxu0 %v2597
    %2721 = vmatpush.bf16.msra.mxu0 %v2595
    %2722 = vmatpush.bf16.msra.mxu0 %v2593
    %2723 = vmatpush.bf16.msra.mxu0 %v2591
    %2724 = vmatmul.bf16.gmra.mxu0 %v2310
    %v2725 = vpop.f32.mrf.mxu0
    %v2726 = vadd.f32 %v2713, %v2725
    %v2727 = vpop.f32.mrf.mxu0
    %2728 = vdwg.mxu0
    %2729 = vmatpush.bf16.msra.mxu0 %v2621
    %2730 = vmatpush.bf16.msra.mxu0 %v2619
    %2731 = vmatpush.bf16.msra.mxu0 %v2617
    %2732 = vmatpush.bf16.msra.mxu0 %v2615
    %2733 = vmatpush.bf16.msra.mxu0 %v2613
    %2734 = vmatpush.bf16.msra.mxu0 %v2611
    %2735 = vmatpush.bf16.msra.mxu0 %v2609
    %2736 = vmatpush.bf16.msra.mxu0 %v2607
    %2737 = vmatmul.bf16.gmra.mxu0 %v2311
    %v2738 = vpop.f32.mrf.mxu0
    %v2739 = vadd.f32 %v2726, %v2738
    %v2740 = vpop.f32.mrf.mxu0
    %2741 = vdwg.mxu0
    %2742 = vmatpush.bf16.msra.mxu0 %v2637
    %2743 = vmatpush.bf16.msra.mxu0 %v2635
    %2744 = vmatpush.bf16.msra.mxu0 %v2633
    %2745 = vmatpush.bf16.msra.mxu0 %v2631
    %2746 = vmatpush.bf16.msra.mxu0 %v2629
    %2747 = vmatpush.bf16.msra.mxu0 %v2627
    %2748 = vmatpush.bf16.msra.mxu0 %v2625
    %2749 = vmatpush.bf16.msra.mxu0 %v2623
    %2750 = vmatmul.bf16.gmra.mxu0 %v2312
    %v2751 = vpop.f32.mrf.mxu0
    %v2752 = vadd.f32 %v2739, %v2751
    %v2753 = vpop.f32.mrf.mxu0
    %2754 = vdwg.mxu0
    %2755 = vmatpush.bf16.msra.mxu0 %v2590
    %2756 = vmatpush.bf16.msra.mxu0 %v2588
    %2757 = vmatpush.bf16.msra.mxu0 %v2586
    %2758 = vmatpush.bf16.msra.mxu0 %v2584
    %2759 = vmatpush.bf16.msra.mxu0 %v2582
    %2760 = vmatpush.bf16.msra.mxu0 %v2580
    %2761 = vmatpush.bf16.msra.mxu0 %v2578
    %2762 = vmatpush.bf16.msra.mxu0 %v2576
    %2763 = vmatmul.bf16.gmra.mxu0 %v2309
    %v2764 = vpop.f32.mrf.mxu0
    %v2765 = vadd.f32 %v2380, %v2764
    %v2766 = vpop.f32.mrf.mxu0
    %2767 = vdwg.mxu0
    %2768 = vmatpush.bf16.msra.mxu0 %v2606
    %2769 = vmatpush.bf16.msra.mxu0 %v2604
    %2770 = vmatpush.bf16.msra.mxu0 %v2602
    %2771 = vmatpush.bf16.msra.mxu0 %v2600
    %2772 = vmatpush.bf16.msra.mxu0 %v2598
    %2773 = vmatpush.bf16.msra.mxu0 %v2596
    %2774 = vmatpush.bf16.msra.mxu0 %v2594
    %2775 = vmatpush.bf16.msra.mxu0 %v2592
    %2776 = vmatmul.bf16.gmra.mxu0 %v2310
    %v2777 = vpop.f32.mrf.mxu0
    %v2778 = vadd.f32 %v2765, %v2777
    %v2779 = vpop.f32.mrf.mxu0
    %2780 = vdwg.mxu0
    %2781 = vmatpush.bf16.msra.mxu0 %v2622
    %2782 = vmatpush.bf16.msra.mxu0 %v2620
    %2783 = vmatpush.bf16.msra.mxu0 %v2618
    %2784 = vmatpush.bf16.msra.mxu0 %v2616
    %2785 = vmatpush.bf16.msra.mxu0 %v2614
    %2786 = vmatpush.bf16.msra.mxu0 %v2612
    %2787 = vmatpush.bf16.msra.mxu0 %v2610
    %2788 = vmatpush.bf16.msra.mxu0 %v2608
    %2789 = vmatmul.bf16.gmra.mxu0 %v2311
    %v2790 = vpop.f32.mrf.mxu0
    %v2791 = vadd.f32 %v2778, %v2790
    %v2792 = vpop.f32.mrf.mxu0
    %2793 = vdwg.mxu0
    %2794 = vmatpush.bf16.msra.mxu0 %v2638
    %2795 = vmatpush.bf16.msra.mxu0 %v2636
    %2796 = vmatpush.bf16.msra.mxu0 %v2634
    %2797 = vmatpush.bf16.msra.mxu0 %v2632
    %2798 = vmatpush.bf16.msra.mxu0 %v2630
    %2799 = vmatpush.bf16.msra.mxu0 %v2628
    %2800 = vmatpush.bf16.msra.mxu0 %v2626
    %2801 = vmatpush.bf16.msra.mxu0 %v2624
    %2802 = vmatmul.bf16.gmra.mxu0 %v2312
    %v2803 = vpop.f32.mrf.mxu0
    %v2804 = vadd.f32 %v2791, %v2803
    %v2805 = vpop.f32.mrf.mxu0
    %2806 = vdwg.mxu0
    %v2807 = vpack.c.bf16 %v2752, %v2752
    %v2808 = vpack.c.bf16 %v2804, %v2804
    %v2809 = vunpack.c.l.bf16 %v2807
    %v2810 = vunpack.c.l.bf16 %v2808
    %v2811 = vtanh.pop %v2809
    %v2812 = vtanh.pop %v2810
    %v2813 = vpack.c.bf16 %v2811, %v2811
    %v2814 = vpack.c.bf16 %v2812, %v2812
    %v2815 = vld [vmem:[#allocation7] sm:$0xff]
    %v2816 = vld [vmem:[#allocation7 + $0x8] sm:$0xff]
    %v2817 = vld [vmem:[#allocation7 + $0x10] sm:$0xff]
    %v2818 = vld [vmem:[#allocation7 + $0x18] sm:$0xff]
    %v2819 = vld [vmem:[#allocation7 + $0x20] sm:$0xff]
    %v2820 = vld [vmem:[#allocation7 + $0x28] sm:$0xff]
    %v2821 = vld [vmem:[#allocation7 + $0x30] sm:$0xff]
    %v2822 = vld [vmem:[#allocation7 + $0x38] sm:$0xff]
    %v2823 = vld [vmem:[#allocation7 + $0x40] sm:$0xff]
    %v2824 = vld [vmem:[#allocation7 + $0x48] sm:$0xff]
    %v2825 = vld [vmem:[#allocation7 + $0x50] sm:$0xff]
    %v2826 = vld [vmem:[#allocation7 + $0x58] sm:$0xff]
    %v2827 = vld [vmem:[#allocation7 + $0x60] sm:$0xff]
    %v2828 = vld [vmem:[#allocation7 + $0x68] sm:$0xff]
    %v2829 = vld [vmem:[#allocation7 + $0x70] sm:$0xff]
    %v2830 = vld [vmem:[#allocation7 + $0x78] sm:$0xff]
    %v2831 = vld [vmem:[#allocation7 + $0x80] sm:$0xff]
    %v2832 = vld [vmem:[#allocation7 + $0x88] sm:$0xff]
    %v2833 = vld [vmem:[#allocation7 + $0x90] sm:$0xff]
    %v2834 = vld [vmem:[#allocation7 + $0x98] sm:$0xff]
    %v2835 = vld [vmem:[#allocation7 + $0xa0] sm:$0xff]
    %v2836 = vld [vmem:[#allocation7 + $0xa8] sm:$0xff]
    %v2837 = vld [vmem:[#allocation7 + $0xb0] sm:$0xff]
    %v2838 = vld [vmem:[#allocation7 + $0xb8] sm:$0xff]
    %v2839 = vld [vmem:[#allocation7 + $0xc0] sm:$0xff]
    %v2840 = vld [vmem:[#allocation7 + $0xc8] sm:$0xff]
    %v2841 = vld [vmem:[#allocation7 + $0xd0] sm:$0xff]
    %v2842 = vld [vmem:[#allocation7 + $0xd8] sm:$0xff]
    %v2843 = vld [vmem:[#allocation7 + $0xe0] sm:$0xff]
    %v2844 = vld [vmem:[#allocation7 + $0xe8] sm:$0xff]
    %v2845 = vld [vmem:[#allocation7 + $0xf0] sm:$0xff]
    %v2846 = vld [vmem:[#allocation7 + $0xf8] sm:$0xff]
    %v2847 = vld [vmem:[%s16] sm:$0x3]
    %v2849 = vperm.slane %v2847, 0
    %v2850 = vperm.slane %v2847, 1
    %v2885 = vunpack.c.l.b16 %v2815
    %v2886 = vunpack.c.h.b16 %v2815
    %v2887 = vunpack.c.l.b16 %v2816
    %v2888 = vunpack.c.h.b16 %v2816
    %v2889 = vunpack.c.l.b16 %v2817
    %v2890 = vunpack.c.h.b16 %v2817
    %v2891 = vunpack.c.l.b16 %v2818
    %v2892 = vunpack.c.h.b16 %v2818
    %v2893 = vunpack.c.l.b16 %v2819
    %v2894 = vunpack.c.h.b16 %v2819
    %v2895 = vunpack.c.l.b16 %v2820
    %v2896 = vunpack.c.h.b16 %v2820
    %v2897 = vunpack.c.l.b16 %v2821
    %v2898 = vunpack.c.h.b16 %v2821
    %v2899 = vunpack.c.l.b16 %v2822
    %v2900 = vunpack.c.h.b16 %v2822
    %v2901 = vunpack.c.l.b16 %v2823
    %v2902 = vunpack.c.h.b16 %v2823
    %v2903 = vunpack.c.l.b16 %v2824
    %v2904 = vunpack.c.h.b16 %v2824
    %v2905 = vunpack.c.l.b16 %v2825
    %v2906 = vunpack.c.h.b16 %v2825
    %v2907 = vunpack.c.l.b16 %v2826
    %v2908 = vunpack.c.h.b16 %v2826
    %v2909 = vunpack.c.l.b16 %v2827
    %v2910 = vunpack.c.h.b16 %v2827
    %v2911 = vunpack.c.l.b16 %v2828
    %v2912 = vunpack.c.h.b16 %v2828
    %v2913 = vunpack.c.l.b16 %v2829
    %v2914 = vunpack.c.h.b16 %v2829
    %v2915 = vunpack.c.l.b16 %v2830
    %v2916 = vunpack.c.h.b16 %v2830
    %v2917 = vunpack.c.l.b16 %v2831
    %v2918 = vunpack.c.h.b16 %v2831
    %v2919 = vunpack.c.l.b16 %v2832
    %v2920 = vunpack.c.h.b16 %v2832
    %v2921 = vunpack.c.l.b16 %v2833
    %v2922 = vunpack.c.h.b16 %v2833
    %v2923 = vunpack.c.l.b16 %v2834
    %v2924 = vunpack.c.h.b16 %v2834
    %v2925 = vunpack.c.l.b16 %v2835
    %v2926 = vunpack.c.h.b16 %v2835
    %v2927 = vunpack.c.l.b16 %v2836
    %v2928 = vunpack.c.h.b16 %v2836
    %v2929 = vunpack.c.l.b16 %v2837
    %v2930 = vunpack.c.h.b16 %v2837
    %v2931 = vunpack.c.l.b16 %v2838
    %v2932 = vunpack.c.h.b16 %v2838
    %v2933 = vunpack.c.l.b16 %v2839
    %v2934 = vunpack.c.h.b16 %v2839
    %v2935 = vunpack.c.l.b16 %v2840
    %v2936 = vunpack.c.h.b16 %v2840
    %v2937 = vunpack.c.l.b16 %v2841
    %v2938 = vunpack.c.h.b16 %v2841
    %v2939 = vunpack.c.l.b16 %v2842
    %v2940 = vunpack.c.h.b16 %v2842
    %v2941 = vunpack.c.l.b16 %v2843
    %v2942 = vunpack.c.h.b16 %v2843
    %v2943 = vunpack.c.l.b16 %v2844
    %v2944 = vunpack.c.h.b16 %v2844
    %v2945 = vunpack.c.l.b16 %v2845
    %v2946 = vunpack.c.h.b16 %v2845
    %v2947 = vunpack.c.l.b16 %v2846
    %v2948 = vunpack.c.h.b16 %v2846
    %v2949 = vpack.c.b16 %v2887, %v2885
    %v2950 = vpack.c.b16 %v2888, %v2886
    %v2951 = vpack.c.b16 %v2891, %v2889
    %v2952 = vpack.c.b16 %v2892, %v2890
    %v2953 = vpack.c.b16 %v2895, %v2893
    %v2954 = vpack.c.b16 %v2896, %v2894
    %v2955 = vpack.c.b16 %v2899, %v2897
    %v2956 = vpack.c.b16 %v2900, %v2898
    %v2957 = vpack.c.b16 %v2903, %v2901
    %v2958 = vpack.c.b16 %v2904, %v2902
    %v2959 = vpack.c.b16 %v2907, %v2905
    %v2960 = vpack.c.b16 %v2908, %v2906
    %v2961 = vpack.c.b16 %v2911, %v2909
    %v2962 = vpack.c.b16 %v2912, %v2910
    %v2963 = vpack.c.b16 %v2915, %v2913
    %v2964 = vpack.c.b16 %v2916, %v2914
    %v2965 = vpack.c.b16 %v2919, %v2917
    %v2966 = vpack.c.b16 %v2920, %v2918
    %v2967 = vpack.c.b16 %v2923, %v2921
    %v2968 = vpack.c.b16 %v2924, %v2922
    %v2969 = vpack.c.b16 %v2927, %v2925
    %v2970 = vpack.c.b16 %v2928, %v2926
    %v2971 = vpack.c.b16 %v2931, %v2929
    %v2972 = vpack.c.b16 %v2932, %v2930
    %v2973 = vpack.c.b16 %v2935, %v2933
    %v2974 = vpack.c.b16 %v2936, %v2934
    %v2975 = vpack.c.b16 %v2939, %v2937
    %v2976 = vpack.c.b16 %v2940, %v2938
    %v2977 = vpack.c.b16 %v2943, %v2941
    %v2978 = vpack.c.b16 %v2944, %v2942
    %v2979 = vpack.c.b16 %v2947, %v2945
    %v2980 = vpack.c.b16 %v2948, %v2946
    %3013 = vmatpush.bf16.msra.mxu0 %v2963
    %3014 = vmatpush.bf16.msra.mxu0 %v2961
    %3015 = vmatpush.bf16.msra.mxu0 %v2959
    %3016 = vmatpush.bf16.msra.mxu0 %v2957
    %3017 = vmatpush.bf16.msra.mxu0 %v2955
    %3018 = vmatpush.bf16.msra.mxu0 %v2953
    %3019 = vmatpush.bf16.msra.mxu0 %v2951
    %3020 = vmatpush.bf16.msra.mxu0 %v2949
    %3021 = vmatmul.bf16.gmra.mxu0 %v2813
    %v3022 = vpop.f32.mrf.mxu0
    %v3023 = vadd.f32 %v2849, %v3022
    %v3024 = vpop.f32.mrf.mxu0
    %3025 = vdwg.mxu0
    %3026 = vmatpush.bf16.msra.mxu0 %v2979
    %3027 = vmatpush.bf16.msra.mxu0 %v2977
    %3028 = vmatpush.bf16.msra.mxu0 %v2975
    %3029 = vmatpush.bf16.msra.mxu0 %v2973
    %3030 = vmatpush.bf16.msra.mxu0 %v2971
    %3031 = vmatpush.bf16.msra.mxu0 %v2969
    %3032 = vmatpush.bf16.msra.mxu0 %v2967
    %3033 = vmatpush.bf16.msra.mxu0 %v2965
    %3034 = vmatmul.bf16.gmra.mxu0 %v2814
    %v3035 = vpop.f32.mrf.mxu0
    %v3036 = vadd.f32 %v3023, %v3035
    %v3037 = vpop.f32.mrf.mxu0
    %3038 = vdwg.mxu0
    %3039 = vmatpush.bf16.msra.mxu0 %v2964
    %3040 = vmatpush.bf16.msra.mxu0 %v2962
    %3041 = vmatpush.bf16.msra.mxu0 %v2960
    %3042 = vmatpush.bf16.msra.mxu0 %v2958
    %3043 = vmatpush.bf16.msra.mxu0 %v2956
    %3044 = vmatpush.bf16.msra.mxu0 %v2954
    %3045 = vmatpush.bf16.msra.mxu0 %v2952
    %3046 = vmatpush.bf16.msra.mxu0 %v2950
    %3047 = vmatmul.bf16.gmra.mxu0 %v2813
    %v3048 = vpop.f32.mrf.mxu0
    %v3049 = vadd.f32 %v2850, %v3048
    %v3050 = vpop.f32.mrf.mxu0
    %3051 = vdwg.mxu0
    %3052 = vmatpush.bf16.msra.mxu0 %v2980
    %3053 = vmatpush.bf16.msra.mxu0 %v2978
    %3054 = vmatpush.bf16.msra.mxu0 %v2976
    %3055 = vmatpush.bf16.msra.mxu0 %v2974
    %3056 = vmatpush.bf16.msra.mxu0 %v2972
    %3057 = vmatpush.bf16.msra.mxu0 %v2970
    %3058 = vmatpush.bf16.msra.mxu0 %v2968
    %3059 = vmatpush.bf16.msra.mxu0 %v2966
    %3060 = vmatmul.bf16.gmra.mxu0 %v2814
    %v3061 = vpop.f32.mrf.mxu0
    %v3062 = vadd.f32 %v3049, %v3061
    %v3063 = vpop.f32.mrf.mxu0
    %3064 = vdwg.mxu0
    %v3065 = vpack.c.bf16 %v3036, %v3036
    %v3066 = vpack.c.bf16 %v3062, %v3062
    %v3067 = vunpack.c.l.bf16 %v3065
    %v3068 = vunpack.c.l.bf16 %v3066
    %v3069 = vtanh.pop %v3067
    %v3070 = vtanh.pop %v3068
    %v3071 = vpack.c.bf16 %v3069, %v3069
    %v3072 = vpack.c.bf16 %v3070, %v3070
    %v3073 = vld [vmem:[#allocation9] sm:$0xff]
    %v3074 = vld [vmem:[#allocation9 + $0x8] sm:$0xff]
    %v3075 = vld [vmem:[#allocation9 + $0x10] sm:$0xff]
    %v3076 = vld [vmem:[#allocation9 + $0x18] sm:$0xf]
    %v3077 = vld [vmem:[#allocation9 + $0x1c] sm:$0xff]
    %v3078 = vld [vmem:[#allocation9 + $0x24] sm:$0xff]
    %v3079 = vld [vmem:[#allocation9 + $0x2c] sm:$0xff]
    %v3080 = vld [vmem:[#allocation9 + $0x34] sm:$0xf]
    %v3081 = vld [vmem:[#allocation9 + $0x38] sm:$0xff]
    %v3082 = vld [vmem:[#allocation9 + $0x40] sm:$0xff]
    %v3083 = vld [vmem:[#allocation9 + $0x48] sm:$0xff]
    %v3084 = vld [vmem:[#allocation9 + $0x50] sm:$0xf]
    %v3085 = vld [vmem:[#allocation9 + $0x54] sm:$0xff]
    %v3086 = vld [vmem:[#allocation9 + $0x5c] sm:$0xff]
    %v3087 = vld [vmem:[#allocation9 + $0x64] sm:$0xff]
    %v3088 = vld [vmem:[#allocation9 + $0x6c] sm:$0xf]
    %v3089 = vld [vmem:[#allocation9 + $0x70] sm:$0xff]
    %v3090 = vld [vmem:[#allocation9 + $0x78] sm:$0xff]
    %v3091 = vld [vmem:[#allocation9 + $0x80] sm:$0xff]
    %v3092 = vld [vmem:[#allocation9 + $0x88] sm:$0xf]
    %v3093 = vld [vmem:[#allocation9 + $0x8c] sm:$0xff]
    %v3094 = vld [vmem:[#allocation9 + $0x94] sm:$0xff]
    %v3095 = vld [vmem:[#allocation9 + $0x9c] sm:$0xff]
    %v3096 = vld [vmem:[#allocation9 + $0xa4] sm:$0xf]
    %v3097 = vld [vmem:[#allocation9 + $0xa8] sm:$0xff]
    %v3098 = vld [vmem:[#allocation9 + $0xb0] sm:$0xff]
    %v3099 = vld [vmem:[#allocation9 + $0xb8] sm:$0xff]
    %v3100 = vld [vmem:[#allocation9 + $0xc0] sm:$0xf]
    %v3101 = vld [vmem:[#allocation9 + $0xc4] sm:$0xff]
    %v3102 = vld [vmem:[#allocation9 + $0xcc] sm:$0xff]
    %v3103 = vld [vmem:[#allocation9 + $0xd4] sm:$0xff]
    %v3104 = vld [vmem:[#allocation9 + $0xdc] sm:$0xf]
    %v3105 = vld [vmem:[#allocation9 + $0xe0] sm:$0xff]
    %v3106 = vld [vmem:[#allocation9 + $0xe8] sm:$0xff]
    %v3107 = vld [vmem:[#allocation9 + $0xf0] sm:$0xff]
    %v3108 = vld [vmem:[#allocation9 + $0xf8] sm:$0xf]
    %v3109 = vld [vmem:[#allocation9 + $0xfc] sm:$0xff]
    %v3110 = vld [vmem:[#allocation9 + $0x104] sm:$0xff]
    %v3111 = vld [vmem:[#allocation9 + $0x10c] sm:$0xff]
    %v3112 = vld [vmem:[#allocation9 + $0x114] sm:$0xf]
    %v3113 = vld [vmem:[#allocation9 + $0x118] sm:$0xff]
    %v3114 = vld [vmem:[#allocation9 + $0x120] sm:$0xff]
    %v3115 = vld [vmem:[#allocation9 + $0x128] sm:$0xff]
    %v3116 = vld [vmem:[#allocation9 + $0x130] sm:$0xf]
    %v3117 = vld [vmem:[#allocation9 + $0x134] sm:$0xff]
    %v3118 = vld [vmem:[#allocation9 + $0x13c] sm:$0xff]
    %v3119 = vld [vmem:[#allocation9 + $0x144] sm:$0xff]
    %v3120 = vld [vmem:[#allocation9 + $0x14c] sm:$0xf]
    %v3121 = vld [vmem:[#allocation9 + $0x150] sm:$0xff]
    %v3122 = vld [vmem:[#allocation9 + $0x158] sm:$0xff]
    %v3123 = vld [vmem:[#allocation9 + $0x160] sm:$0xff]
    %v3124 = vld [vmem:[#allocation9 + $0x168] sm:$0xf]
    %v3125 = vld [vmem:[#allocation9 + $0x16c] sm:$0xff]
    %v3126 = vld [vmem:[#allocation9 + $0x174] sm:$0xff]
    %v3127 = vld [vmem:[#allocation9 + $0x17c] sm:$0xff]
    %v3128 = vld [vmem:[#allocation9 + $0x184] sm:$0xf]
    %v3129 = vld [vmem:[#allocation9 + $0x188] sm:$0xff]
    %v3130 = vld [vmem:[#allocation9 + $0x190] sm:$0xff]
    %v3131 = vld [vmem:[#allocation9 + $0x198] sm:$0xff]
    %v3132 = vld [vmem:[#allocation9 + $0x1a0] sm:$0xf]
    %v3133 = vld [vmem:[#allocation9 + $0x1a4] sm:$0xff]
    %v3134 = vld [vmem:[#allocation9 + $0x1ac] sm:$0xff]
    %v3135 = vld [vmem:[#allocation9 + $0x1b4] sm:$0xff]
    %v3136 = vld [vmem:[#allocation9 + $0x1bc] sm:$0xf]
    %v3137 = vld [vmem:[#allocation9 + $0x1c0] sm:$0xff]
    %v3138 = vld [vmem:[#allocation9 + $0x1c8] sm:$0xff]
    %v3139 = vld [vmem:[#allocation9 + $0x1d0] sm:$0xff]
    %v3140 = vld [vmem:[#allocation9 + $0x1d8] sm:$0xf]
    %v3141 = vld [vmem:[#allocation9 + $0x1dc] sm:$0xff]
    %v3142 = vld [vmem:[#allocation9 + $0x1e4] sm:$0xff]
    %v3143 = vld [vmem:[#allocation9 + $0x1ec] sm:$0xff]
    %v3144 = vld [vmem:[#allocation9 + $0x1f4] sm:$0xf]
    %v3145 = vld [vmem:[#allocation9 + $0x1f8] sm:$0xff]
    %v3146 = vld [vmem:[#allocation9 + $0x200] sm:$0xff]
    %v3147 = vld [vmem:[#allocation9 + $0x208] sm:$0xff]
    %v3148 = vld [vmem:[#allocation9 + $0x210] sm:$0xf]
    %v3149 = vld [vmem:[#allocation9 + $0x214] sm:$0xff]
    %v3150 = vld [vmem:[#allocation9 + $0x21c] sm:$0xff]
    %v3151 = vld [vmem:[#allocation9 + $0x224] sm:$0xff]
    %v3152 = vld [vmem:[#allocation9 + $0x22c] sm:$0xf]
    %v3153 = vld [vmem:[#allocation9 + $0x230] sm:$0xff]
    %v3154 = vld [vmem:[#allocation9 + $0x238] sm:$0xff]
    %v3155 = vld [vmem:[#allocation9 + $0x240] sm:$0xff]
    %v3156 = vld [vmem:[#allocation9 + $0x248] sm:$0xf]
    %v3157 = vld [vmem:[#allocation9 + $0x24c] sm:$0xff]
    %v3158 = vld [vmem:[#allocation9 + $0x254] sm:$0xff]
    %v3159 = vld [vmem:[#allocation9 + $0x25c] sm:$0xff]
    %v3160 = vld [vmem:[#allocation9 + $0x264] sm:$0xf]
    %v3161 = vld [vmem:[#allocation9 + $0x268] sm:$0xff]
    %v3162 = vld [vmem:[#allocation9 + $0x270] sm:$0xff]
    %v3163 = vld [vmem:[#allocation9 + $0x278] sm:$0xff]
    %v3164 = vld [vmem:[#allocation9 + $0x280] sm:$0xf]
    %v3165 = vld [vmem:[#allocation9 + $0x284] sm:$0xff]
    %v3166 = vld [vmem:[#allocation9 + $0x28c] sm:$0xff]
    %v3167 = vld [vmem:[#allocation9 + $0x294] sm:$0xff]
    %v3168 = vld [vmem:[#allocation9 + $0x29c] sm:$0xf]
    %v3169 = vld [vmem:[#allocation9 + $0x2a0] sm:$0xff]
    %v3170 = vld [vmem:[#allocation9 + $0x2a8] sm:$0xff]
    %v3171 = vld [vmem:[#allocation9 + $0x2b0] sm:$0xff]
    %v3172 = vld [vmem:[#allocation9 + $0x2b8] sm:$0xf]
    %v3173 = vld [vmem:[#allocation9 + $0x2bc] sm:$0xff]
    %v3174 = vld [vmem:[#allocation9 + $0x2c4] sm:$0xff]
    %v3175 = vld [vmem:[#allocation9 + $0x2cc] sm:$0xff]
    %v3176 = vld [vmem:[#allocation9 + $0x2d4] sm:$0xf]
    %v3177 = vld [vmem:[#allocation9 + $0x2d8] sm:$0xff]
    %v3178 = vld [vmem:[#allocation9 + $0x2e0] sm:$0xff]
    %v3179 = vld [vmem:[#allocation9 + $0x2e8] sm:$0xff]
    %v3180 = vld [vmem:[#allocation9 + $0x2f0] sm:$0xf]
    %v3181 = vld [vmem:[#allocation9 + $0x2f4] sm:$0xff]
    %v3182 = vld [vmem:[#allocation9 + $0x2fc] sm:$0xff]
    %v3183 = vld [vmem:[#allocation9 + $0x304] sm:$0xff]
    %v3184 = vld [vmem:[#allocation9 + $0x30c] sm:$0xf]
    %v3185 = vld [vmem:[#allocation9 + $0x310] sm:$0xff]
    %v3186 = vld [vmem:[#allocation9 + $0x318] sm:$0xff]
    %v3187 = vld [vmem:[#allocation9 + $0x320] sm:$0xff]
    %v3188 = vld [vmem:[#allocation9 + $0x328] sm:$0xf]
    %v3189 = vld [vmem:[#allocation9 + $0x32c] sm:$0xff]
    %v3190 = vld [vmem:[#allocation9 + $0x334] sm:$0xff]
    %v3191 = vld [vmem:[#allocation9 + $0x33c] sm:$0xff]
    %v3192 = vld [vmem:[#allocation9 + $0x344] sm:$0xf]
    %v3193 = vld [vmem:[#allocation9 + $0x348] sm:$0xff]
    %v3194 = vld [vmem:[#allocation9 + $0x350] sm:$0xff]
    %v3195 = vld [vmem:[#allocation9 + $0x358] sm:$0xff]
    %v3196 = vld [vmem:[#allocation9 + $0x360] sm:$0xf]
    %v3197 = vld [vmem:[#allocation9 + $0x364] sm:$0xff]
    %v3198 = vld [vmem:[#allocation9 + $0x36c] sm:$0xff]
    %v3199 = vld [vmem:[#allocation9 + $0x374] sm:$0xff]
    %v3200 = vld [vmem:[#allocation9 + $0x37c] sm:$0xf]
    %v3201 = vld [vmem:[%s18] sm:$0xff]
    %v3203 = vperm.slane %v3201, 0
    %v3204 = vperm.slane %v3201, 1
    %v3205 = vperm.slane %v3201, 2
    %v3206 = vperm.slane %v3201, 3
    %v3207 = vperm.slane %v3201, 4
    %v3208 = vperm.slane %v3201, 5
    %v3209 = vperm.slane %v3201, 6
    %v3345 = vunpack.c.l.b16 %v3073
    %v3346 = vunpack.c.h.b16 %v3073
    %v3347 = vunpack.c.l.b16 %v3074
    %v3348 = vunpack.c.h.b16 %v3074
    %v3349 = vunpack.c.l.b16 %v3075
    %v3350 = vunpack.c.h.b16 %v3075
    %v3351 = vunpack.c.l.b16 %v3076
    %v3352 = vunpack.c.l.b16 %v3077
    %v3353 = vunpack.c.h.b16 %v3077
    %v3354 = vunpack.c.l.b16 %v3078
    %v3355 = vunpack.c.h.b16 %v3078
    %v3356 = vunpack.c.l.b16 %v3079
    %v3357 = vunpack.c.h.b16 %v3079
    %v3358 = vunpack.c.l.b16 %v3080
    %v3359 = vunpack.c.l.b16 %v3081
    %v3360 = vunpack.c.h.b16 %v3081
    %v3361 = vunpack.c.l.b16 %v3082
    %v3362 = vunpack.c.h.b16 %v3082
    %v3363 = vunpack.c.l.b16 %v3083
    %v3364 = vunpack.c.h.b16 %v3083
    %v3365 = vunpack.c.l.b16 %v3084
    %v3366 = vunpack.c.l.b16 %v3085
    %v3367 = vunpack.c.h.b16 %v3085
    %v3368 = vunpack.c.l.b16 %v3086
    %v3369 = vunpack.c.h.b16 %v3086
    %v3370 = vunpack.c.l.b16 %v3087
    %v3371 = vunpack.c.h.b16 %v3087
    %v3372 = vunpack.c.l.b16 %v3088
    %v3373 = vunpack.c.l.b16 %v3089
    %v3374 = vunpack.c.h.b16 %v3089
    %v3375 = vunpack.c.l.b16 %v3090
    %v3376 = vunpack.c.h.b16 %v3090
    %v3377 = vunpack.c.l.b16 %v3091
    %v3378 = vunpack.c.h.b16 %v3091
    %v3379 = vunpack.c.l.b16 %v3092
    %v3380 = vunpack.c.l.b16 %v3093
    %v3381 = vunpack.c.h.b16 %v3093
    %v3382 = vunpack.c.l.b16 %v3094
    %v3383 = vunpack.c.h.b16 %v3094
    %v3384 = vunpack.c.l.b16 %v3095
    %v3385 = vunpack.c.h.b16 %v3095
    %v3386 = vunpack.c.l.b16 %v3096
    %v3387 = vunpack.c.l.b16 %v3097
    %v3388 = vunpack.c.h.b16 %v3097
    %v3389 = vunpack.c.l.b16 %v3098
    %v3390 = vunpack.c.h.b16 %v3098
    %v3391 = vunpack.c.l.b16 %v3099
    %v3392 = vunpack.c.h.b16 %v3099
    %v3393 = vunpack.c.l.b16 %v3100
    %v3394 = vunpack.c.l.b16 %v3101
    %v3395 = vunpack.c.h.b16 %v3101
    %v3396 = vunpack.c.l.b16 %v3102
    %v3397 = vunpack.c.h.b16 %v3102
    %v3398 = vunpack.c.l.b16 %v3103
    %v3399 = vunpack.c.h.b16 %v3103
    %v3400 = vunpack.c.l.b16 %v3104
    %v3401 = vunpack.c.l.b16 %v3105
    %v3402 = vunpack.c.h.b16 %v3105
    %v3403 = vunpack.c.l.b16 %v3106
    %v3404 = vunpack.c.h.b16 %v3106
    %v3405 = vunpack.c.l.b16 %v3107
    %v3406 = vunpack.c.h.b16 %v3107
    %v3407 = vunpack.c.l.b16 %v3108
    %v3408 = vunpack.c.l.b16 %v3109
    %v3409 = vunpack.c.h.b16 %v3109
    %v3410 = vunpack.c.l.b16 %v3110
    %v3411 = vunpack.c.h.b16 %v3110
    %v3412 = vunpack.c.l.b16 %v3111
    %v3413 = vunpack.c.h.b16 %v3111
    %v3414 = vunpack.c.l.b16 %v3112
    %v3415 = vunpack.c.l.b16 %v3113
    %v3416 = vunpack.c.h.b16 %v3113
    %v3417 = vunpack.c.l.b16 %v3114
    %v3418 = vunpack.c.h.b16 %v3114
    %v3419 = vunpack.c.l.b16 %v3115
    %v3420 = vunpack.c.h.b16 %v3115
    %v3421 = vunpack.c.l.b16 %v3116
    %v3422 = vunpack.c.l.b16 %v3117
    %v3423 = vunpack.c.h.b16 %v3117
    %v3424 = vunpack.c.l.b16 %v3118
    %v3425 = vunpack.c.h.b16 %v3118
    %v3426 = vunpack.c.l.b16 %v3119
    %v3427 = vunpack.c.h.b16 %v3119
    %v3428 = vunpack.c.l.b16 %v3120
    %v3429 = vunpack.c.l.b16 %v3121
    %v3430 = vunpack.c.h.b16 %v3121
    %v3431 = vunpack.c.l.b16 %v3122
    %v3432 = vunpack.c.h.b16 %v3122
    %v3433 = vunpack.c.l.b16 %v3123
    %v3434 = vunpack.c.h.b16 %v3123
    %v3435 = vunpack.c.l.b16 %v3124
    %v3436 = vunpack.c.l.b16 %v3125
    %v3437 = vunpack.c.h.b16 %v3125
    %v3438 = vunpack.c.l.b16 %v3126
    %v3439 = vunpack.c.h.b16 %v3126
    %v3440 = vunpack.c.l.b16 %v3127
    %v3441 = vunpack.c.h.b16 %v3127
    %v3442 = vunpack.c.l.b16 %v3128
    %v3443 = vunpack.c.l.b16 %v3129
    %v3444 = vunpack.c.h.b16 %v3129
    %v3445 = vunpack.c.l.b16 %v3130
    %v3446 = vunpack.c.h.b16 %v3130
    %v3447 = vunpack.c.l.b16 %v3131
    %v3448 = vunpack.c.h.b16 %v3131
    %v3449 = vunpack.c.l.b16 %v3132
    %v3450 = vunpack.c.l.b16 %v3133
    %v3451 = vunpack.c.h.b16 %v3133
    %v3452 = vunpack.c.l.b16 %v3134
    %v3453 = vunpack.c.h.b16 %v3134
    %v3454 = vunpack.c.l.b16 %v3135
    %v3455 = vunpack.c.h.b16 %v3135
    %v3456 = vunpack.c.l.b16 %v3136
    %v3457 = vunpack.c.l.b16 %v3137
    %v3458 = vunpack.c.h.b16 %v3137
    %v3459 = vunpack.c.l.b16 %v3138
    %v3460 = vunpack.c.h.b16 %v3138
    %v3461 = vunpack.c.l.b16 %v3139
    %v3462 = vunpack.c.h.b16 %v3139
    %v3463 = vunpack.c.l.b16 %v3140
    %v3464 = vunpack.c.l.b16 %v3141
    %v3465 = vunpack.c.h.b16 %v3141
    %v3466 = vunpack.c.l.b16 %v3142
    %v3467 = vunpack.c.h.b16 %v3142
    %v3468 = vunpack.c.l.b16 %v3143
    %v3469 = vunpack.c.h.b16 %v3143
    %v3470 = vunpack.c.l.b16 %v3144
    %v3471 = vunpack.c.l.b16 %v3145
    %v3472 = vunpack.c.h.b16 %v3145
    %v3473 = vunpack.c.l.b16 %v3146
    %v3474 = vunpack.c.h.b16 %v3146
    %v3475 = vunpack.c.l.b16 %v3147
    %v3476 = vunpack.c.h.b16 %v3147
    %v3477 = vunpack.c.l.b16 %v3148
    %v3478 = vunpack.c.l.b16 %v3149
    %v3479 = vunpack.c.h.b16 %v3149
    %v3480 = vunpack.c.l.b16 %v3150
    %v3481 = vunpack.c.h.b16 %v3150
    %v3482 = vunpack.c.l.b16 %v3151
    %v3483 = vunpack.c.h.b16 %v3151
    %v3484 = vunpack.c.l.b16 %v3152
    %v3485 = vunpack.c.l.b16 %v3153
    %v3486 = vunpack.c.h.b16 %v3153
    %v3487 = vunpack.c.l.b16 %v3154
    %v3488 = vunpack.c.h.b16 %v3154
    %v3489 = vunpack.c.l.b16 %v3155
    %v3490 = vunpack.c.h.b16 %v3155
    %v3491 = vunpack.c.l.b16 %v3156
    %v3492 = vunpack.c.l.b16 %v3157
    %v3493 = vunpack.c.h.b16 %v3157
    %v3494 = vunpack.c.l.b16 %v3158
    %v3495 = vunpack.c.h.b16 %v3158
    %v3496 = vunpack.c.l.b16 %v3159
    %v3497 = vunpack.c.h.b16 %v3159
    %v3498 = vunpack.c.l.b16 %v3160
    %v3499 = vunpack.c.l.b16 %v3161
    %v3500 = vunpack.c.h.b16 %v3161
    %v3501 = vunpack.c.l.b16 %v3162
    %v3502 = vunpack.c.h.b16 %v3162
    %v3503 = vunpack.c.l.b16 %v3163
    %v3504 = vunpack.c.h.b16 %v3163
    %v3505 = vunpack.c.l.b16 %v3164
    %v3506 = vunpack.c.l.b16 %v3165
    %v3507 = vunpack.c.h.b16 %v3165
    %v3508 = vunpack.c.l.b16 %v3166
    %v3509 = vunpack.c.h.b16 %v3166
    %v3510 = vunpack.c.l.b16 %v3167
    %v3511 = vunpack.c.h.b16 %v3167
    %v3512 = vunpack.c.l.b16 %v3168
    %v3513 = vunpack.c.l.b16 %v3169
    %v3514 = vunpack.c.h.b16 %v3169
    %v3515 = vunpack.c.l.b16 %v3170
    %v3516 = vunpack.c.h.b16 %v3170
    %v3517 = vunpack.c.l.b16 %v3171
    %v3518 = vunpack.c.h.b16 %v3171
    %v3519 = vunpack.c.l.b16 %v3172
    %v3520 = vunpack.c.l.b16 %v3173
    %v3521 = vunpack.c.h.b16 %v3173
    %v3522 = vunpack.c.l.b16 %v3174
    %v3523 = vunpack.c.h.b16 %v3174
    %v3524 = vunpack.c.l.b16 %v3175
    %v3525 = vunpack.c.h.b16 %v3175
    %v3526 = vunpack.c.l.b16 %v3176
    %v3527 = vunpack.c.l.b16 %v3177
    %v3528 = vunpack.c.h.b16 %v3177
    %v3529 = vunpack.c.l.b16 %v3178
    %v3530 = vunpack.c.h.b16 %v3178
    %v3531 = vunpack.c.l.b16 %v3179
    %v3532 = vunpack.c.h.b16 %v3179
    %v3533 = vunpack.c.l.b16 %v3180
    %v3534 = vunpack.c.l.b16 %v3181
    %v3535 = vunpack.c.h.b16 %v3181
    %v3536 = vunpack.c.l.b16 %v3182
    %v3537 = vunpack.c.h.b16 %v3182
    %v3538 = vunpack.c.l.b16 %v3183
    %v3539 = vunpack.c.h.b16 %v3183
    %v3540 = vunpack.c.l.b16 %v3184
    %v3541 = vunpack.c.l.b16 %v3185
    %v3542 = vunpack.c.h.b16 %v3185
    %v3543 = vunpack.c.l.b16 %v3186
    %v3544 = vunpack.c.h.b16 %v3186
    %v3545 = vunpack.c.l.b16 %v3187
    %v3546 = vunpack.c.h.b16 %v3187
    %v3547 = vunpack.c.l.b16 %v3188
    %v3548 = vunpack.c.l.b16 %v3189
    %v3549 = vunpack.c.h.b16 %v3189
    %v3550 = vunpack.c.l.b16 %v3190
    %v3551 = vunpack.c.h.b16 %v3190
    %v3552 = vunpack.c.l.b16 %v3191
    %v3553 = vunpack.c.h.b16 %v3191
    %v3554 = vunpack.c.l.b16 %v3192
    %v3555 = vunpack.c.l.b16 %v3193
    %v3556 = vunpack.c.h.b16 %v3193
    %v3557 = vunpack.c.l.b16 %v3194
    %v3558 = vunpack.c.h.b16 %v3194
    %v3559 = vunpack.c.l.b16 %v3195
    %v3560 = vunpack.c.h.b16 %v3195
    %v3561 = vunpack.c.l.b16 %v3196
    %v3562 = vunpack.c.l.b16 %v3197
    %v3563 = vunpack.c.h.b16 %v3197
    %v3564 = vunpack.c.l.b16 %v3198
    %v3565 = vunpack.c.h.b16 %v3198
    %v3566 = vunpack.c.l.b16 %v3199
    %v3567 = vunpack.c.h.b16 %v3199
    %v3568 = vunpack.c.l.b16 %v3200
    %v3569 = vpack.c.b16 %v3352, %v3345
    %v3570 = vpack.c.b16 %v3353, %v3346
    %v3571 = vpack.c.b16 %v3354, %v3347
    %v3572 = vpack.c.b16 %v3355, %v3348
    %v3573 = vpack.c.b16 %v3356, %v3349
    %v3574 = vpack.c.b16 %v3357, %v3350
    %v3575 = vpack.c.b16 %v3358, %v3351
    %v3576 = vpack.c.b16 %v3366, %v3359
    %v3577 = vpack.c.b16 %v3367, %v3360
    %v3578 = vpack.c.b16 %v3368, %v3361
    %v3579 = vpack.c.b16 %v3369, %v3362
    %v3580 = vpack.c.b16 %v3370, %v3363
    %v3581 = vpack.c.b16 %v3371, %v3364
    %v3582 = vpack.c.b16 %v3372, %v3365
    %v3583 = vpack.c.b16 %v3380, %v3373
    %v3584 = vpack.c.b16 %v3381, %v3374
    %v3585 = vpack.c.b16 %v3382, %v3375
    %v3586 = vpack.c.b16 %v3383, %v3376
    %v3587 = vpack.c.b16 %v3384, %v3377
    %v3588 = vpack.c.b16 %v3385, %v3378
    %v3589 = vpack.c.b16 %v3386, %v3379
    %v3590 = vpack.c.b16 %v3394, %v3387
    %v3591 = vpack.c.b16 %v3395, %v3388
    %v3592 = vpack.c.b16 %v3396, %v3389
    %v3593 = vpack.c.b16 %v3397, %v3390
    %v3594 = vpack.c.b16 %v3398, %v3391
    %v3595 = vpack.c.b16 %v3399, %v3392
    %v3596 = vpack.c.b16 %v3400, %v3393
    %v3597 = vpack.c.b16 %v3408, %v3401
    %v3598 = vpack.c.b16 %v3409, %v3402
    %v3599 = vpack.c.b16 %v3410, %v3403
    %v3600 = vpack.c.b16 %v3411, %v3404
    %v3601 = vpack.c.b16 %v3412, %v3405
    %v3602 = vpack.c.b16 %v3413, %v3406
    %v3603 = vpack.c.b16 %v3414, %v3407
    %v3604 = vpack.c.b16 %v3422, %v3415
    %v3605 = vpack.c.b16 %v3423, %v3416
    %v3606 = vpack.c.b16 %v3424, %v3417
    %v3607 = vpack.c.b16 %v3425, %v3418
    %v3608 = vpack.c.b16 %v3426, %v3419
    %v3609 = vpack.c.b16 %v3427, %v3420
    %v3610 = vpack.c.b16 %v3428, %v3421
    %v3611 = vpack.c.b16 %v3436, %v3429
    %v3612 = vpack.c.b16 %v3437, %v3430
    %v3613 = vpack.c.b16 %v3438, %v3431
    %v3614 = vpack.c.b16 %v3439, %v3432
    %v3615 = vpack.c.b16 %v3440, %v3433
    %v3616 = vpack.c.b16 %v3441, %v3434
    %v3617 = vpack.c.b16 %v3442, %v3435
    %v3618 = vpack.c.b16 %v3450, %v3443
    %v3619 = vpack.c.b16 %v3451, %v3444
    %v3620 = vpack.c.b16 %v3452, %v3445
    %v3621 = vpack.c.b16 %v3453, %v3446
    %v3622 = vpack.c.b16 %v3454, %v3447
    %v3623 = vpack.c.b16 %v3455, %v3448
    %v3624 = vpack.c.b16 %v3456, %v3449
    %v3625 = vpack.c.b16 %v3464, %v3457
    %v3626 = vpack.c.b16 %v3465, %v3458
    %v3627 = vpack.c.b16 %v3466, %v3459
    %v3628 = vpack.c.b16 %v3467, %v3460
    %v3629 = vpack.c.b16 %v3468, %v3461
    %v3630 = vpack.c.b16 %v3469, %v3462
    %v3631 = vpack.c.b16 %v3470, %v3463
    %v3632 = vpack.c.b16 %v3478, %v3471
    %v3633 = vpack.c.b16 %v3479, %v3472
    %v3634 = vpack.c.b16 %v3480, %v3473
    %v3635 = vpack.c.b16 %v3481, %v3474
    %v3636 = vpack.c.b16 %v3482, %v3475
    %v3637 = vpack.c.b16 %v3483, %v3476
    %v3638 = vpack.c.b16 %v3484, %v3477
    %v3639 = vpack.c.b16 %v3492, %v3485
    %v3640 = vpack.c.b16 %v3493, %v3486
    %v3641 = vpack.c.b16 %v3494, %v3487
    %v3642 = vpack.c.b16 %v3495, %v3488
    %v3643 = vpack.c.b16 %v3496, %v3489
    %v3644 = vpack.c.b16 %v3497, %v3490
    %v3645 = vpack.c.b16 %v3498, %v3491
    %v3646 = vpack.c.b16 %v3506, %v3499
    %v3647 = vpack.c.b16 %v3507, %v3500
    %v3648 = vpack.c.b16 %v3508, %v3501
    %v3649 = vpack.c.b16 %v3509, %v3502
    %v3650 = vpack.c.b16 %v3510, %v3503
    %v3651 = vpack.c.b16 %v3511, %v3504
    %v3652 = vpack.c.b16 %v3512, %v3505
    %v3653 = vpack.c.b16 %v3520, %v3513
    %v3654 = vpack.c.b16 %v3521, %v3514
    %v3655 = vpack.c.b16 %v3522, %v3515
    %v3656 = vpack.c.b16 %v3523, %v3516
    %v3657 = vpack.c.b16 %v3524, %v3517
    %v3658 = vpack.c.b16 %v3525, %v3518
    %v3659 = vpack.c.b16 %v3526, %v3519
    %v3660 = vpack.c.b16 %v3534, %v3527
    %v3661 = vpack.c.b16 %v3535, %v3528
    %v3662 = vpack.c.b16 %v3536, %v3529
    %v3663 = vpack.c.b16 %v3537, %v3530
    %v3664 = vpack.c.b16 %v3538, %v3531
    %v3665 = vpack.c.b16 %v3539, %v3532
    %v3666 = vpack.c.b16 %v3540, %v3533
    %v3667 = vpack.c.b16 %v3548, %v3541
    %v3668 = vpack.c.b16 %v3549, %v3542
    %v3669 = vpack.c.b16 %v3550, %v3543
    %v3670 = vpack.c.b16 %v3551, %v3544
    %v3671 = vpack.c.b16 %v3552, %v3545
    %v3672 = vpack.c.b16 %v3553, %v3546
    %v3673 = vpack.c.b16 %v3554, %v3547
    %v3674 = vpack.c.b16 %v3562, %v3555
    %v3675 = vpack.c.b16 %v3563, %v3556
    %v3676 = vpack.c.b16 %v3564, %v3557
    %v3677 = vpack.c.b16 %v3565, %v3558
    %v3678 = vpack.c.b16 %v3566, %v3559
    %v3679 = vpack.c.b16 %v3567, %v3560
    %v3680 = vpack.c.b16 %v3568, %v3561
    %3793 = vmatpush.bf16.msra.mxu0 %v3618
    %3794 = vmatpush.bf16.msra.mxu0 %v3611
    %3795 = vmatpush.bf16.msra.mxu0 %v3604
    %3796 = vmatpush.bf16.msra.mxu0 %v3597
    %3797 = vmatpush.bf16.msra.mxu0 %v3590
    %3798 = vmatpush.bf16.msra.mxu0 %v3583
    %3799 = vmatpush.bf16.msra.mxu0 %v3576
    %3800 = vmatpush.bf16.msra.mxu0 %v3569
    %3801 = vmatmul.bf16.gmra.mxu0 %v3071
    %v3802 = vpop.f32.mrf.mxu0
    %v3803 = vadd.f32 %v3203, %v3802
    %v3804 = vpop.f32.mrf.mxu0
    %3805 = vdwg.mxu0
    %3806 = vmatpush.bf16.msra.mxu0 %v3674
    %3807 = vmatpush.bf16.msra.mxu0 %v3667
    %3808 = vmatpush.bf16.msra.mxu0 %v3660
    %3809 = vmatpush.bf16.msra.mxu0 %v3653
    %3810 = vmatpush.bf16.msra.mxu0 %v3646
    %3811 = vmatpush.bf16.msra.mxu0 %v3639
    %3812 = vmatpush.bf16.msra.mxu0 %v3632
    %3813 = vmatpush.bf16.msra.mxu0 %v3625
    %3814 = vmatmul.bf16.gmra.mxu0 %v3072
    %v3815 = vpop.f32.mrf.mxu0
    %v3816 = vadd.f32 %v3803, %v3815
    %v3817 = vpop.f32.mrf.mxu0
    %3818 = vdwg.mxu0
    %3819 = vmatpush.bf16.msra.mxu0 %v3619
    %3820 = vmatpush.bf16.msra.mxu0 %v3612
    %3821 = vmatpush.bf16.msra.mxu0 %v3605
    %3822 = vmatpush.bf16.msra.mxu0 %v3598
    %3823 = vmatpush.bf16.msra.mxu0 %v3591
    %3824 = vmatpush.bf16.msra.mxu0 %v3584
    %3825 = vmatpush.bf16.msra.mxu0 %v3577
    %3826 = vmatpush.bf16.msra.mxu0 %v3570
    %3827 = vmatmul.bf16.gmra.mxu0 %v3071
    %v3828 = vpop.f32.mrf.mxu0
    %v3829 = vadd.f32 %v3204, %v3828
    %v3830 = vpop.f32.mrf.mxu0
    %3831 = vdwg.mxu0
    %3832 = vmatpush.bf16.msra.mxu0 %v3675
    %3833 = vmatpush.bf16.msra.mxu0 %v3668
    %3834 = vmatpush.bf16.msra.mxu0 %v3661
    %3835 = vmatpush.bf16.msra.mxu0 %v3654
    %3836 = vmatpush.bf16.msra.mxu0 %v3647
    %3837 = vmatpush.bf16.msra.mxu0 %v3640
    %3838 = vmatpush.bf16.msra.mxu0 %v3633
    %3839 = vmatpush.bf16.msra.mxu0 %v3626
    %3840 = vmatmul.bf16.gmra.mxu0 %v3072
    %v3841 = vpop.f32.mrf.mxu0
    %v3842 = vadd.f32 %v3829, %v3841
    %v3843 = vpop.f32.mrf.mxu0
    %3844 = vdwg.mxu0
    %3845 = vmatpush.bf16.msra.mxu0 %v3620
    %3846 = vmatpush.bf16.msra.mxu0 %v3613
    %3847 = vmatpush.bf16.msra.mxu0 %v3606
    %3848 = vmatpush.bf16.msra.mxu0 %v3599
    %3849 = vmatpush.bf16.msra.mxu0 %v3592
    %3850 = vmatpush.bf16.msra.mxu0 %v3585
    %3851 = vmatpush.bf16.msra.mxu0 %v3578
    %3852 = vmatpush.bf16.msra.mxu0 %v3571
    %3853 = vmatmul.bf16.gmra.mxu0 %v3071
    %v3854 = vpop.f32.mrf.mxu0
    %v3855 = vadd.f32 %v3205, %v3854
    %v3856 = vpop.f32.mrf.mxu0
    %3857 = vdwg.mxu0
    %3858 = vmatpush.bf16.msra.mxu0 %v3676
    %3859 = vmatpush.bf16.msra.mxu0 %v3669
    %3860 = vmatpush.bf16.msra.mxu0 %v3662
    %3861 = vmatpush.bf16.msra.mxu0 %v3655
    %3862 = vmatpush.bf16.msra.mxu0 %v3648
    %3863 = vmatpush.bf16.msra.mxu0 %v3641
    %3864 = vmatpush.bf16.msra.mxu0 %v3634
    %3865 = vmatpush.bf16.msra.mxu0 %v3627
    %3866 = vmatmul.bf16.gmra.mxu0 %v3072
    %v3867 = vpop.f32.mrf.mxu0
    %v3868 = vadd.f32 %v3855, %v3867
    %v3869 = vpop.f32.mrf.mxu0
    %3870 = vdwg.mxu0
    %3871 = vmatpush.bf16.msra.mxu0 %v3621
    %3872 = vmatpush.bf16.msra.mxu0 %v3614
    %3873 = vmatpush.bf16.msra.mxu0 %v3607
    %3874 = vmatpush.bf16.msra.mxu0 %v3600
    %3875 = vmatpush.bf16.msra.mxu0 %v3593
    %3876 = vmatpush.bf16.msra.mxu0 %v3586
    %3877 = vmatpush.bf16.msra.mxu0 %v3579
    %3878 = vmatpush.bf16.msra.mxu0 %v3572
    %3879 = vmatmul.bf16.gmra.mxu0 %v3071
    %v3880 = vpop.f32.mrf.mxu0
    %v3881 = vadd.f32 %v3206, %v3880
    %v3882 = vpop.f32.mrf.mxu0
    %3883 = vdwg.mxu0
    %3884 = vmatpush.bf16.msra.mxu0 %v3677
    %3885 = vmatpush.bf16.msra.mxu0 %v3670
    %3886 = vmatpush.bf16.msra.mxu0 %v3663
    %3887 = vmatpush.bf16.msra.mxu0 %v3656
    %3888 = vmatpush.bf16.msra.mxu0 %v3649
    %3889 = vmatpush.bf16.msra.mxu0 %v3642
    %3890 = vmatpush.bf16.msra.mxu0 %v3635
    %3891 = vmatpush.bf16.msra.mxu0 %v3628
    %3892 = vmatmul.bf16.gmra.mxu0 %v3072
    %v3893 = vpop.f32.mrf.mxu0
    %v3894 = vadd.f32 %v3881, %v3893
    %v3895 = vpop.f32.mrf.mxu0
    %3896 = vdwg.mxu0
    %3897 = vmatpush.bf16.msra.mxu0 %v3622
    %3898 = vmatpush.bf16.msra.mxu0 %v3615
    %3899 = vmatpush.bf16.msra.mxu0 %v3608
    %3900 = vmatpush.bf16.msra.mxu0 %v3601
    %3901 = vmatpush.bf16.msra.mxu0 %v3594
    %3902 = vmatpush.bf16.msra.mxu0 %v3587
    %3903 = vmatpush.bf16.msra.mxu0 %v3580
    %3904 = vmatpush.bf16.msra.mxu0 %v3573
    %3905 = vmatmul.bf16.gmra.mxu0 %v3071
    %v3906 = vpop.f32.mrf.mxu0
    %v3907 = vadd.f32 %v3207, %v3906
    %v3908 = vpop.f32.mrf.mxu0
    %3909 = vdwg.mxu0
    %3910 = vmatpush.bf16.msra.mxu0 %v3678
    %3911 = vmatpush.bf16.msra.mxu0 %v3671
    %3912 = vmatpush.bf16.msra.mxu0 %v3664
    %3913 = vmatpush.bf16.msra.mxu0 %v3657
    %3914 = vmatpush.bf16.msra.mxu0 %v3650
    %3915 = vmatpush.bf16.msra.mxu0 %v3643
    %3916 = vmatpush.bf16.msra.mxu0 %v3636
    %3917 = vmatpush.bf16.msra.mxu0 %v3629
    %3918 = vmatmul.bf16.gmra.mxu0 %v3072
    %v3919 = vpop.f32.mrf.mxu0
    %v3920 = vadd.f32 %v3907, %v3919
    %v3921 = vpop.f32.mrf.mxu0
    %3922 = vdwg.mxu0
    %3923 = vmatpush.bf16.msra.mxu0 %v3623
    %3924 = vmatpush.bf16.msra.mxu0 %v3616
    %3925 = vmatpush.bf16.msra.mxu0 %v3609
    %3926 = vmatpush.bf16.msra.mxu0 %v3602
    %3927 = vmatpush.bf16.msra.mxu0 %v3595
    %3928 = vmatpush.bf16.msra.mxu0 %v3588
    %3929 = vmatpush.bf16.msra.mxu0 %v3581
    %3930 = vmatpush.bf16.msra.mxu0 %v3574
    %3931 = vmatmul.bf16.gmra.mxu0 %v3071
    %v3932 = vpop.f32.mrf.mxu0
    %v3933 = vadd.f32 %v3208, %v3932
    %v3934 = vpop.f32.mrf.mxu0
    %3935 = vdwg.mxu0
    %3936 = vmatpush.bf16.msra.mxu0 %v3679
    %3937 = vmatpush.bf16.msra.mxu0 %v3672
    %3938 = vmatpush.bf16.msra.mxu0 %v3665
    %3939 = vmatpush.bf16.msra.mxu0 %v3658
    %3940 = vmatpush.bf16.msra.mxu0 %v3651
    %3941 = vmatpush.bf16.msra.mxu0 %v3644
    %3942 = vmatpush.bf16.msra.mxu0 %v3637
    %3943 = vmatpush.bf16.msra.mxu0 %v3630
    %3944 = vmatmul.bf16.gmra.mxu0 %v3072
    %v3945 = vpop.f32.mrf.mxu0
    %v3946 = vadd.f32 %v3933, %v3945
    %v3947 = vpop.f32.mrf.mxu0
    %3948 = vdwg.mxu0
    %3949 = vmatpush.bf16.msra.mxu0 %v3624
    %3950 = vmatpush.bf16.msra.mxu0 %v3617
    %3951 = vmatpush.bf16.msra.mxu0 %v3610
    %3952 = vmatpush.bf16.msra.mxu0 %v3603
    %3953 = vmatpush.bf16.msra.mxu0 %v3596
    %3954 = vmatpush.bf16.msra.mxu0 %v3589
    %3955 = vmatpush.bf16.msra.mxu0 %v3582
    %3956 = vmatpush.bf16.msra.mxu0 %v3575
    %3957 = vmatmul.bf16.gmra.mxu0 %v3071
    %v3958 = vpop.f32.mrf.mxu0
    %v3959 = vadd.f32 %v3209, %v3958
    %v3960 = vpop.f32.mrf.mxu0
    %3961 = vdwg.mxu0
    %3962 = vmatpush.bf16.msra.mxu0 %v3680
    %3963 = vmatpush.bf16.msra.mxu0 %v3673
    %3964 = vmatpush.bf16.msra.mxu0 %v3666
    %3965 = vmatpush.bf16.msra.mxu0 %v3659
    %3966 = vmatpush.bf16.msra.mxu0 %v3652
    %3967 = vmatpush.bf16.msra.mxu0 %v3645
    %3968 = vmatpush.bf16.msra.mxu0 %v3638
    %3969 = vmatpush.bf16.msra.mxu0 %v3631
    %3970 = vmatmul.bf16.gmra.mxu0 %v3072
    %v3971 = vpop.f32.mrf.mxu0
    %v3972 = vadd.f32 %v3959, %v3971
    %v3973 = vpop.f32.mrf.mxu0
    %3974 = vdwg.mxu0
    %v3975 = vpack.c.bf16 %v3842, %v3816
    %v3976 = vpack.c.bf16 %v3894, %v3868
    %v3977 = vpack.c.bf16 %v3946, %v3920
    %v3978 = vpack.c.bf16 %v3972, %v3972
    %v3979 = vunpack.c.l.bf16 %v3975
    %v3980 = vunpack.c.h.bf16 %v3975
    %v3981 = vunpack.c.l.bf16 %v3976
    %v3982 = vunpack.c.h.bf16 %v3976
    %v3983 = vunpack.c.l.bf16 %v3977
    %v3984 = vunpack.c.h.bf16 %v3977
    %v3985 = vunpack.c.l.bf16 %v3978
    %v3986 = vtanh.pop %v3979
    %v3987 = vtanh.pop %v3980
    %v3988 = vtanh.pop %v3981
    %v3989 = vtanh.pop %v3982
    %v3990 = vtanh.pop %v3983
    %v3991 = vtanh.pop %v3984
    %v3992 = vtanh.pop %v3985
    %v3993 = vpack.c.bf16 %v3987, %v3986
    %v3994 = vpack.c.bf16 %v3989, %v3988
    %v3995 = vpack.c.bf16 %v3991, %v3990
    %v3996 = vpack.c.bf16 %v3992, %v3992
    %v3997 = vxor.u32 %v3993, 2147516416
    %v3998 = vxor.u32 %v3994, 2147516416
    %v3999 = vxor.u32 %v3995, 2147516416
    %v4000 = vxor.u32 %v3996, 2147516416
    %v4001 = vunpack.c.l.bf16 %v3997
    %v4002 = vunpack.c.h.bf16 %v3997
    %v4003 = vunpack.c.l.bf16 %v3998
    %v4004 = vunpack.c.h.bf16 %v3998
    %v4005 = vunpack.c.l.bf16 %v3999
    %v4006 = vunpack.c.h.bf16 %v3999
    %v4007 = vunpack.c.l.bf16 %v4000
    %v4008 = vmul.f32 %v4001, 1.442695
    %v4009 = vpow.pop %v4008
    %v4010 = vmul.f32 %v4002, 1.442695
    %v4011 = vpow.pop %v4010
    %v4012 = vmul.f32 %v4003, 1.442695
    %v4013 = vpow.pop %v4012
    %v4014 = vmul.f32 %v4004, 1.442695
    %v4015 = vpow.pop %v4014
    %v4016 = vmul.f32 %v4005, 1.442695
    %v4017 = vpow.pop %v4016
    %v4018 = vmul.f32 %v4006, 1.442695
    %v4019 = vpow.pop %v4018
    %v4020 = vmul.f32 %v4007, 1.442695
    %v4021 = vpow.pop %v4020
    %v4022 = vpack.c.bf16 %v4011, %v4009
    %v4023 = vpack.c.bf16 %v4015, %v4013
    %v4024 = vpack.c.bf16 %v4019, %v4017
    %v4025 = vpack.c.bf16 %v4021, %v4021
    %v4026 = vunpack.c.l.bf16 %v4022
    %v4027 = vunpack.c.h.bf16 %v4022
    %v4028 = vunpack.c.l.bf16 %v4023
    %v4029 = vunpack.c.h.bf16 %v4023
    %v4030 = vunpack.c.l.bf16 %v4024
    %v4031 = vunpack.c.h.bf16 %v4024
    %v4032 = vunpack.c.l.bf16 %v4025
    %v4033 = vadd.f32 %v4026, 1.0
    %v4034 = vadd.f32 %v4027, 1.0
    %v4035 = vadd.f32 %v4028, 1.0
    %v4036 = vadd.f32 %v4029, 1.0
    %v4037 = vadd.f32 %v4030, 1.0
    %v4038 = vadd.f32 %v4031, 1.0
    %v4039 = vadd.f32 %v4032, 1.0
    %v4040 = vpack.c.bf16 %v4034, %v4033
    %v4041 = vpack.c.bf16 %v4036, %v4035
    %v4042 = vpack.c.bf16 %v4038, %v4037
    %v4043 = vpack.c.bf16 %v4039, %v4039
    %v4044 = vunpack.c.h.bf16 1065369472
    %v4045 = vunpack.c.l.bf16 1065369472
    %v4046 = vunpack.c.h.bf16 %v4040
    %v4047 = vunpack.c.l.bf16 %v4040
    %v4048 = vrcp.pop %v4046
    %v4049 = vmul.f32 %v4044, %v4048
    %v4050 = vrcp.pop %v4047
    %v4051 = vmul.f32 %v4045, %v4050
    %v4052 = vpack.c.bf16 %v4049, %v4051
    %v4053 = vunpack.c.h.bf16 %v4041
    %v4054 = vunpack.c.l.bf16 %v4041
    %v4055 = vrcp.pop %v4053
    %v4056 = vmul.f32 %v4044, %v4055
    %v4057 = vrcp.pop %v4054
    %v4058 = vmul.f32 %v4045, %v4057
    %v4059 = vpack.c.bf16 %v4056, %v4058
    %v4060 = vunpack.c.h.bf16 %v4042
    %v4061 = vunpack.c.l.bf16 %v4042
    %v4062 = vrcp.pop %v4060
    %v4063 = vmul.f32 %v4044, %v4062
    %v4064 = vrcp.pop %v4061
    %v4065 = vmul.f32 %v4045, %v4064
    %v4066 = vpack.c.bf16 %v4063, %v4065
    %v4067 = vunpack.c.h.bf16 %v4043
    %v4068 = vunpack.c.l.bf16 %v4043
    %v4069 = vrcp.pop %v4067
    %v4070 = vmul.f32 %v4044, %v4069
    %v4071 = vrcp.pop %v4068
    %v4072 = vmul.f32 %v4045, %v4071
    %v4073 = vpack.c.bf16 %v4070, %v4072
    %4074 = vst [vmem:[%s19] sm:$0xff] %v4052
    %4075 = vst [vmem:[%s19 + $0x8] sm:$0xff] %v4059
    %4076 = vst [vmem:[%s19 + $0x10] sm:$0xff] %v4066
    %4077 = vst [vmem:[%s19 + $0x18] sm:$0xf] %v4073
    // Predicated region
    $region98: #{mlp_vae_forward.1} parent=1 // pred_check
      _
    $region99: #{mlp_vae_forward.1} parent=1 // pred_check_branch
      %4079 = sbr.rel (0) target = $region101
    $region100: #{mlp_vae_forward.1} parent=1 // pred_region
      _
    $region101: #{mlp_vae_forward.1} parent=1 // pred_fallthru
      _
    // Predicated region
    $region102: #{mlp_vae_forward.1} parent=1 // pred_check
      _
    $region103: #{mlp_vae_forward.1} parent=1 // pred_check_branch
      %4081 = sbr.rel (0) target = $region105
    $region104: #{mlp_vae_forward.1} parent=1 // pred_region
      _
    $region105: #{mlp_vae_forward.1} parent=1 // pred_fallthru
      _
    // Predicated region
    $region106: #{mlp_vae_forward.1} parent=1 // pred_check
      _
    $region107: #{mlp_vae_forward.1} parent=1 // pred_check_branch
      %4083 = sbr.rel (0) target = $region109
    $region108: #{mlp_vae_forward.1} parent=1 // pred_region
      _
    $region109: #{mlp_vae_forward.1} parent=1 // pred_fallthru
      _
    // Predicated region
    $region110: #{mlp_vae_forward.1} parent=1 // pred_check
      _
    $region111: #{mlp_vae_forward.1} parent=1 // pred_check_branch
      %4085 = sbr.rel (0) target = $region113
    $region112: #{mlp_vae_forward.1} parent=1 // pred_region
      _
    $region113: #{mlp_vae_forward.1} parent=1 // pred_fallthru
      _
    %4086 = vsyncpa [#allocation3], 1
    %4087 = vsyncpa [#allocation5], 1
    %4088 = vsyncpa [#allocation8], 1

</llo_original>
